<compile_context>
chip_gen: v7x
topology: tpu7x:2x2x1
jax: 0.10.0
libtpu: 0.0.40
codegen_flags: <defaults>
</compile_context>

<pallas_src>
import jax
import jax.numpy as jnp
import numpy as np
from jax.experimental import pallas as pl
from jax.experimental.pallas import tpu as pltpu


def make_kernel(B, T, H, Zdim, n_hidden_layers):
    n_enc_layers = n_hidden_layers + 2   # seq->H, (H->H)*nhl, H->2Z
    L = n_hidden_layers + 1              # decode_inputlstm num_layers

    def kernel(*refs):
        it = iter(refs)
        x_ref = next(it)
        noise_ref = next(it)
        enc_w = [(next(it), next(it)) for _ in range(n_enc_layers)]
        lstm_w = [(next(it), next(it), next(it)) for _ in range(L)]   # (W_ih^T, W_hh^T, b)
        w_iho_ref, w_hho_ref, bo_ref = next(it), next(it), next(it)
        out_ref = next(it)
        kl_ref = next(it)

        # ---------- encoder MLP: Linear + LeakyReLU(0.01), last layer linear --
        h = x_ref[...]
        for li, (w_ref, b_ref) in enumerate(enc_w):
            h = jnp.dot(h, w_ref[...], preferred_element_type=jnp.float32) + b_ref[...]
            if li < n_enc_layers - 1:
                h = jnp.maximum(h, 0.01 * h)          # LeakyReLU, default slope

        # ---------- reparameterization + KL -----------------------------------
        log_var = h[:, :Zdim]          # first half  (as in the PyTorch module)
        mu = h[:, Zdim:]               # second half
        std = jnp.exp(0.5 * log_var)
        kl = 0.5 * jnp.sum(std * std + mu * mu - 1.0 - log_var)
        kl_ref[...] = kl.reshape(1, 1)
        z0 = mu + std * noise_ref[...]   # latent[:, 0, :]; other steps are zero

        # Hoist weight loads out of the (unrolled) time loop. Fine at H=32, L=2;
        # reload per layer / use lax.fori_loop if H or L grow (vreg pressure).
        mats = [(w_ih[...], w_hh[...], b[...]) for (w_ih, w_hh, b) in lstm_w]
        w_iho = w_iho_ref[...]
        w_hho = w_hho_ref[...]
        bo = bo_ref[...]

        def gate_act(g, hid):
            # One sigmoid + one tanh on the full gate slab; slice afterwards.
            sg = jax.nn.sigmoid(g)
            tg = jnp.tanh(g)
            return (sg[:, 0 * hid:1 * hid],    # i
                    sg[:, 1 * hid:2 * hid],    # f
                    tg[:, 2 * hid:3 * hid],    # g
                    sg[:, 3 * hid:4 * hid])    # o

        # ---------- decoder, t = 0 (all LSTM states are zero) ------------------
        hs, cs = [], []
        inp = z0
        for l in range(L):
            w_ih, _, b = mats[l]
            g = jnp.dot(inp, w_ih, preferred_element_type=jnp.float32) + b
            i_g, _, g_g, o_g = gate_act(g, H)
            c_new = i_g * g_g                  # c = f*0 + i*g
            h_new = o_g * jnp.tanh(c_new)
            cs.append(c_new)
            hs.append(h_new)
            inp = h_new
        g = jnp.dot(inp, w_iho, preferred_element_type=jnp.float32) + bo
        i_g, _, g_g, o_g = gate_act(g, 1)
        co = i_g * g_g
        ho = o_g * jnp.tanh(co)
        outs = [ho]

        # ---------- decoder, t = 1 .. T-1 (layer-0 input is zero) --------------
        w_ih0, w_hh0, b0 = mats[0]
        for t in range(1, T):
            # layer 0: input is zero -> recurrent matmul only
            g = jnp.dot(hs[0], w_hh0, preferred_element_type=jnp.float32) + b0
            i_g, f_g, g_g, o_g = gate_act(g, H)
            cs[0] = f_g * cs[0] + i_g * g_g
            hs[0] = o_g * jnp.tanh(cs[0])
            inp = hs[0]
            # layers 1..L-1: two small MXU dots, no per-cell lane concat
            for l in range(1, L):
                w_ih, w_hh, b = mats[l]
                g = (jnp.dot(inp, w_ih, preferred_element_type=jnp.float32)
                     + jnp.dot(hs[l], w_hh, preferred_element_type=jnp.float32)
                     + b)
                i_g, f_g, g_g, o_g = gate_act(g, H)
                cs[l] = f_g * cs[l] + i_g * g_g
                hs[l] = o_g * jnp.tanh(cs[l])
                inp = hs[l]
            # 1-unit output LSTM: recurrent term is a K=1 broadcast multiply
            g = (jnp.dot(inp, w_iho, preferred_element_type=jnp.float32)
                 + ho * w_hho + bo)
            i_g, f_g, g_g, o_g = gate_act(g, 1)
            co = f_g * co + i_g * g_g
            ho = o_g * jnp.tanh(co)
            outs.append(ho)

        # Single lane-dense store of the whole decoded sequence.
        out_ref[...] = jnp.concatenate(outs, axis=1)

    return kernel


def pack_params(params, n_hidden_layers):
    """Re-pack PyTorch-layout params ([in,out] weights) into the kernel layout."""
    n_enc = n_hidden_layers + 2
    L = n_hidden_layers + 1
    idx = 0
    packed = []
    # encoder Linear layers: unchanged
    for _ in range(n_enc):
        packed += [params[idx], params[idx + 1]]
        idx += 2
    # LSTM layers 0..L-1: keep W_ih^T / W_hh^T separate (two-dot cells), fold biases
    for _ in range(L):
        w_ih, w_hh, b_ih, b_hh = params[idx:idx + 4]; idx += 4
        packed += [w_ih, w_hh, b_ih + b_hh]
    # 1-unit output LSTM: W_hh^T is [1,4] -> used as a broadcast multiply
    w_ih, w_hh, b_ih, b_hh = params[idx:idx + 4]; idx += 4
    packed += [w_ih, w_hh, b_ih + b_hh]
    return packed


def hybrid_vae_forward(x, noise, params, *, H, Zdim, n_hidden_layers):
    B, T = x.shape
    packed = pack_params(params, n_hidden_layers)
    kernel = make_kernel(B, T, H, Zdim, n_hidden_layers)
    vmem = pl.BlockSpec(memory_space=pltpu.MemorySpace.VMEM)
    n_in = 2 + len(packed)
    out_shape = (jax.ShapeDtypeStruct((B, T), jnp.float32),
                 jax.ShapeDtypeStruct((1, 1), jnp.float32))
    return pl.pallas_call(
        kernel,
        out_shape=out_shape,
        in_specs=[vmem] * n_in,
        out_specs=(vmem, vmem),
    )(x, noise, *packed)


def init_params(key, seq_length, H, Zdim, n_hidden_layers):
    """Deterministic synthetic parameters (PyTorch-like uniform fan-in init)."""
    params = []
    keys = iter(jax.random.split(key, 64))

    def uni(shape, scale):
        return jax.random.uniform(next(keys), shape, jnp.float32, -scale, scale)

    # encoder: Linear(seq->H), [Linear(H->H)]*nhl, Linear(H->2Z)  (weights stored [in,out])
    dims = [seq_length] + [H] * (n_hidden_layers + 1) + [2 * Zdim]
    for i in range(n_hidden_layers + 2):
        fan_in, fan_out = dims[i], dims[i + 1]
        s = 1.0 / np.sqrt(fan_in)
        params.append(uni((fan_in, fan_out), s))
        params.append(uni((1, fan_out), s))

    # decode_inputlstm: num_layers = nhl+1, hidden = H
    s = 1.0 / np.sqrt(H)
    for l in range(n_hidden_layers + 1):
        in_dim = Zdim if l == 0 else H
        params.append(uni((in_dim, 4 * H), s))   # W_ih^T
        params.append(uni((H, 4 * H), s))        # W_hh^T
        params.append(uni((1, 4 * H), s))        # b_ih
        params.append(uni((1, 4 * H), s))        # b_hh

    # decode_outputlstm: hidden = 1
    s1 = 1.0
    params.append(uni((H, 4), s1))               # W_ih^T
    params.append(uni((1, 4), s1))               # W_hh^T
    params.append(uni((1, 4), s1))               # b_ih
    params.append(uni((1, 4), s1))               # b_hh
    return params


def reference_forward(x, noise, params, H, Zdim, n_hidden_layers, T):
    """Pure-JAX reference mirroring the PyTorch forward (unpacked params)."""
    idx = 0
    enc = []
    for _ in range(n_hidden_layers + 2):
        enc.append((params[idx], params[idx + 1])); idx += 2
    lstm = []
    for _ in range(n_hidden_layers + 1):
        lstm.append(tuple(params[idx:idx + 4])); idx += 4
    olstm = tuple(params[idx:idx + 4])

    h = x
    for i, (w, b) in enumerate(enc):
        h = h @ w + b
        if i < len(enc) - 1:
            h = jnp.where(h > 0, h, 0.01 * h)
    log_var, mu = h[:, :Zdim], h[:, Zdim:]
    std = jnp.exp(0.5 * log_var)
    kl = 0.5 * jnp.sum(std ** 2 + mu ** 2 - 1.0 - log_var)
    z0 = mu + std * noise

    B = x.shape[0]
    n_l = n_hidden_layers + 1
    hs = [jnp.zeros((B, H), jnp.float32) for _ in range(n_l)]
    cs = [jnp.zeros((B, H), jnp.float32) for _ in range(n_l)]
    ho = jnp.zeros((B, 1), jnp.float32)
    co = jnp.zeros((B, 1), jnp.float32)

    def cell(inp, hp, cp, w_ih, w_hh, b_ih, b_hh, hid):
        g = inp @ w_ih + hp @ w_hh + b_ih + b_hh
        i = jax.nn.sigmoid(g[:, :hid]); f = jax.nn.sigmoid(g[:, hid:2 * hid])
        gg = jnp.tanh(g[:, 2 * hid:3 * hid]); o = jax.nn.sigmoid(g[:, 3 * hid:])
        c = f * cp + i * gg
        return o * jnp.tanh(c), c

    outs = []
    for t in range(T):
        inp = z0 if t == 0 else jnp.zeros_like(z0)
        for l in range(n_l):
            hs[l], cs[l] = cell(inp, hs[l], cs[l], *lstm[l], H)
            inp = hs[l]
        ho, co = cell(inp, ho, co, *olstm, 1)
        outs.append(ho)
    return jnp.concatenate(outs, axis=1), kl


if __name__ == "__main__":
    # small shapes consistent with the module
    B, seq_length, H, Zdim, n_hidden_layers = 2, 8, 32, 4, 1

    key = jax.random.PRNGKey(0)
    k_x, k_noise, k_params = jax.random.split(key, 3)
    x = jax.random.normal(k_x, (B, seq_length), jnp.float32)
    # torch.randn noise of the reparameterization trick, generated deterministically here
    noise = jax.random.normal(k_noise, (B, Zdim), jnp.float32)
    params = init_params(k_params, seq_length, H, Zdim, n_hidden_layers)

    out, kl = hybrid_vae_forward(x, noise, params,
                                 H=H, Zdim=Zdim, n_hidden_layers=n_hidden_layers)
    out = jax.block_until_ready(out)
    kl = jax.block_until_ready(kl)

    ref_out, ref_kl = reference_forward(x, noise, params, H, Zdim, n_hidden_layers, seq_length)
    assert out.shape == (B, seq_length)
    np.testing.assert_allclose(np.asarray(out), np.asarray(ref_out), atol=1e-4, rtol=1e-4)
    np.testing.assert_allclose(float(kl[0, 0]), float(ref_kl), atol=1e-3, rtol=1e-3)

    print("KERNEL_OK")
</pallas_src>

<mosaic_0001>
module attributes {stable_mosaic.version = 11 : i64} {
  func.func @kernel(%arg0: memref<2x8xf32, #tpu.memory_space<vmem>>, %arg1: memref<2x4xf32, #tpu.memory_space<vmem>>, %arg2: memref<8x32xf32, #tpu.memory_space<vmem>>, %arg3: memref<1x32xf32, #tpu.memory_space<vmem>>, %arg4: memref<32x32xf32, #tpu.memory_space<vmem>>, %arg5: memref<1x32xf32, #tpu.memory_space<vmem>>, %arg6: memref<32x8xf32, #tpu.memory_space<vmem>>, %arg7: memref<1x8xf32, #tpu.memory_space<vmem>>, %arg8: memref<4x128xf32, #tpu.memory_space<vmem>>, %arg9: memref<32x128xf32, #tpu.memory_space<vmem>>, %arg10: memref<1x128xf32, #tpu.memory_space<vmem>>, %arg11: memref<32x128xf32, #tpu.memory_space<vmem>>, %arg12: memref<32x128xf32, #tpu.memory_space<vmem>>, %arg13: memref<1x128xf32, #tpu.memory_space<vmem>>, %arg14: memref<32x4xf32, #tpu.memory_space<vmem>>, %arg15: memref<1x4xf32, #tpu.memory_space<vmem>>, %arg16: memref<1x4xf32, #tpu.memory_space<vmem>>, %arg17: memref<2x8xf32, #tpu.memory_space<vmem>>, %arg18: memref<1x1xf32, #tpu.memory_space<vmem>>) attributes {dimension_semantics = [], scalar_prefetch = 0 : i64, scratch_operands = 0 : i64, tpu.core_type = #tpu.core_type<tc>} {
    %c0 = arith.constant 0 : index
    %c0_0 = arith.constant 0 : index
    %0 = vector.load %arg0[%c0, %c0_0] : memref<2x8xf32, #tpu.memory_space<vmem>>, vector<2x8xf32>
    %c0_1 = arith.constant 0 : index
    %c0_2 = arith.constant 0 : index
    %1 = vector.load %arg2[%c0_1, %c0_2] : memref<8x32xf32, #tpu.memory_space<vmem>>, vector<8x32xf32>
    %cst = arith.constant dense<0.000000e+00> : vector<2x32xf32>
    %2 = tpu.matmul %0, %1, %cst {dimension_numbers = #tpu.dot_dimension_numbers<[1], [0], [0], [1], [0, 0, 1, 1], [], []>} : vector<2x8xf32>, vector<8x32xf32>, vector<2x32xf32> -> vector<2x32xf32>
    %c0_3 = arith.constant 0 : index
    %c0_4 = arith.constant 0 : index
    %3 = vector.load %arg3[%c0_3, %c0_4] : memref<1x32xf32, #tpu.memory_space<vmem>>, vector<1x32xf32>
    %4 = vector.broadcast %3 : vector<1x32xf32> to vector<2x32xf32>
    %5 = arith.addf %2, %4 : vector<2x32xf32>
    %cst_5 = arith.constant 0.00999999977 : f32
    %6 = vector.broadcast %cst_5 : f32 to vector<2x32xf32>
    %7 = arith.mulf %6, %5 : vector<2x32xf32>
    %8 = arith.maximumf %5, %7 : vector<2x32xf32>
    %c0_6 = arith.constant 0 : index
    %c0_7 = arith.constant 0 : index
    %9 = vector.load %arg4[%c0_6, %c0_7] : memref<32x32xf32, #tpu.memory_space<vmem>>, vector<32x32xf32>
    %cst_8 = arith.constant dense<0.000000e+00> : vector<2x32xf32>
    %10 = tpu.matmul %8, %9, %cst_8 {dimension_numbers = #tpu.dot_dimension_numbers<[1], [0], [0], [1], [0, 0, 1, 1], [], []>} : vector<2x32xf32>, vector<32x32xf32>, vector<2x32xf32> -> vector<2x32xf32>
    %c0_9 = arith.constant 0 : index
    %c0_10 = arith.constant 0 : index
    %11 = vector.load %arg5[%c0_9, %c0_10] : memref<1x32xf32, #tpu.memory_space<vmem>>, vector<1x32xf32>
    %12 = vector.broadcast %11 : vector<1x32xf32> to vector<2x32xf32>
    %13 = arith.addf %10, %12 : vector<2x32xf32>
    %cst_11 = arith.constant 0.00999999977 : f32
    %14 = vector.broadcast %cst_11 : f32 to vector<2x32xf32>
    %15 = arith.mulf %14, %13 : vector<2x32xf32>
    %16 = arith.maximumf %13, %15 : vector<2x32xf32>
    %c0_12 = arith.constant 0 : index
    %c0_13 = arith.constant 0 : index
    %17 = vector.load %arg6[%c0_12, %c0_13] : memref<32x8xf32, #tpu.memory_space<vmem>>, vector<32x8xf32>
    %cst_14 = arith.constant dense<0.000000e+00> : vector<2x8xf32>
    %18 = tpu.matmul %16, %17, %cst_14 {dimension_numbers = #tpu.dot_dimension_numbers<[1], [0], [0], [1], [0, 0, 1, 1], [], []>} : vector<2x32xf32>, vector<32x8xf32>, vector<2x8xf32> -> vector<2x8xf32>
    %c0_15 = arith.constant 0 : index
    %c0_16 = arith.constant 0 : index
    %19 = vector.load %arg7[%c0_15, %c0_16] : memref<1x8xf32, #tpu.memory_space<vmem>>, vector<1x8xf32>
    %20 = vector.broadcast %19 : vector<1x8xf32> to vector<2x8xf32>
    %21 = arith.addf %18, %20 : vector<2x8xf32>
    %22 = vector.extract_strided_slice %21 {offsets = [0, 0], sizes = [2, 4], strides = [1, 1]} : vector<2x8xf32> to vector<2x4xf32>
    %23 = vector.extract_strided_slice %21 {offsets = [0, 4], sizes = [2, 4], strides = [1, 1]} : vector<2x8xf32> to vector<2x4xf32>
    %cst_17 = arith.constant 5.000000e-01 : f32
    %24 = vector.broadcast %cst_17 : f32 to vector<2x4xf32>
    %25 = arith.mulf %24, %22 : vector<2x4xf32>
    %26 = math.exp %25 : vector<2x4xf32>
    %27 = arith.mulf %26, %26 : vector<2x4xf32>
    %28 = arith.mulf %23, %23 : vector<2x4xf32>
    %29 = arith.addf %27, %28 : vector<2x4xf32>
    %cst_18 = arith.constant 1.000000e+00 : f32
    %30 = vector.broadcast %cst_18 : f32 to vector<2x4xf32>
    %31 = arith.subf %29, %30 : vector<2x4xf32>
    %32 = arith.subf %31, %22 : vector<2x4xf32>
    %33 = vector.shape_cast %32 : vector<2x4xf32> to vector<1x2x4xf32>
    %cst_19 = arith.constant dense<0.000000e+00> : vector<1xf32>
    %34 = vector.multi_reduction <add>, %33, %cst_19 [1, 2] : vector<1x2x4xf32> to vector<1xf32>
    %35 = vector.shape_cast %34 : vector<1xf32> to vector<1x1x1xf32>
    %36 = vector.extract %35[0, 0, 0] : f32 from vector<1x1x1xf32>
    %cst_20 = arith.constant 5.000000e-01 : f32
    %37 = arith.mulf %cst_20, %36 : f32
    %38 = vector.broadcast %37 : f32 to vector<1x1xf32>
    %c0_21 = arith.constant 0 : index
    %c0_22 = arith.constant 0 : index
    %39 = vector.load %arg18[%c0_21, %c0_22] : memref<1x1xf32, #tpu.memory_space<vmem>>, vector<1x1xf32>
    tpu.vector_store %arg18[%c0_21, %c0_22], %38 {strides = array<i32>} : memref<1x1xf32, #tpu.memory_space<vmem>>, vector<1x1xf32>,
    %c0_23 = arith.constant 0 : index
    %c0_24 = arith.constant 0 : index
    %40 = vector.load %arg1[%c0_23, %c0_24] : memref<2x4xf32, #tpu.memory_space<vmem>>, vector<2x4xf32>
    %41 = arith.mulf %26, %40 : vector<2x4xf32>
    %42 = arith.addf %23, %41 : vector<2x4xf32>
    %c0_25 = arith.constant 0 : index
    %c0_26 = arith.constant 0 : index
    %43 = vector.load %arg8[%c0_25, %c0_26] : memref<4x128xf32, #tpu.memory_space<vmem>>, vector<4x128xf32>
    %c0_27 = arith.constant 0 : index
    %c0_28 = arith.constant 0 : index
    %44 = vector.load %arg9[%c0_27, %c0_28] : memref<32x128xf32, #tpu.memory_space<vmem>>, vector<32x128xf32>
    %c0_29 = arith.constant 0 : index
    %c0_30 = arith.constant 0 : index
    %45 = vector.load %arg10[%c0_29, %c0_30] : memref<1x128xf32, #tpu.memory_space<vmem>>, vector<1x128xf32>
    %c0_31 = arith.constant 0 : index
    %c0_32 = arith.constant 0 : index
    %46 = vector.load %arg11[%c0_31, %c0_32] : memref<32x128xf32, #tpu.memory_space<vmem>>, vector<32x128xf32>
    %c0_33 = arith.constant 0 : index
    %c0_34 = arith.constant 0 : index
    %47 = vector.load %arg12[%c0_33, %c0_34] : memref<32x128xf32, #tpu.memory_space<vmem>>, vector<32x128xf32>
    %c0_35 = arith.constant 0 : index
    %c0_36 = arith.constant 0 : index
    %48 = vector.load %arg13[%c0_35, %c0_36] : memref<1x128xf32, #tpu.memory_space<vmem>>, vector<1x128xf32>
    %c0_37 = arith.constant 0 : index
    %c0_38 = arith.constant 0 : index
    %49 = vector.load %arg14[%c0_37, %c0_38] : memref<32x4xf32, #tpu.memory_space<vmem>>, vector<32x4xf32>
    %c0_39 = arith.constant 0 : index
    %c0_40 = arith.constant 0 : index
    %50 = vector.load %arg15[%c0_39, %c0_40] : memref<1x4xf32, #tpu.memory_space<vmem>>, vector<1x4xf32>
    %c0_41 = arith.constant 0 : index
    %c0_42 = arith.constant 0 : index
    %51 = vector.load %arg16[%c0_41, %c0_42] : memref<1x4xf32, #tpu.memory_space<vmem>>, vector<1x4xf32>
    %cst_43 = arith.constant dense<0.000000e+00> : vector<2x128xf32>
    %52 = tpu.matmul %42, %43, %cst_43 {dimension_numbers = #tpu.dot_dimension_numbers<[1], [0], [0], [1], [0, 0, 1, 1], [], []>} : vector<2x4xf32>, vector<4x128xf32>, vector<2x128xf32> -> vector<2x128xf32>
    %53 = vector.broadcast %45 : vector<1x128xf32> to vector<2x128xf32>
    %54 = arith.addf %52, %53 : vector<2x128xf32>
    %55 = arith.negf %54 : vector<2x128xf32>
    %56 = math.exp %55 : vector<2x128xf32>
    %cst_44 = arith.constant 1.000000e+00 : f32
    %57 = vector.broadcast %cst_44 : f32 to vector<2x128xf32>
    %58 = arith.addf %57, %56 : vector<2x128xf32>
    %59 = arith.divf %57, %58 : vector<2x128xf32>
    %60 = math.tanh %54 : vector<2x128xf32>
    %61 = vector.extract_strided_slice %59 {offsets = [0, 0], sizes = [2, 32], strides = [1, 1]} : vector<2x128xf32> to vector<2x32xf32>
    %62 = vector.extract_strided_slice %60 {offsets = [0, 64], sizes = [2, 32], strides = [1, 1]} : vector<2x128xf32> to vector<2x32xf32>
    %63 = vector.extract_strided_slice %59 {offsets = [0, 96], sizes = [2, 32], strides = [1, 1]} : vector<2x128xf32> to vector<2x32xf32>
    %64 = arith.mulf %61, %62 : vector<2x32xf32>
    %65 = math.tanh %64 : vector<2x32xf32>
    %66 = arith.mulf %63, %65 : vector<2x32xf32>
    %cst_45 = arith.constant dense<0.000000e+00> : vector<2x128xf32>
    %67 = tpu.matmul %66, %46, %cst_45 {dimension_numbers = #tpu.dot_dimension_numbers<[1], [0], [0], [1], [0, 0, 1, 1], [], []>} : vector<2x32xf32>, vector<32x128xf32>, vector<2x128xf32> -> vector<2x128xf32>
    %68 = vector.broadcast %48 : vector<1x128xf32> to vector<2x128xf32>
    %69 = arith.addf %67, %68 : vector<2x128xf32>
    %70 = arith.negf %69 : vector<2x128xf32>
    %71 = math.exp %70 : vector<2x128xf32>
    %cst_46 = arith.constant 1.000000e+00 : f32
    %72 = vector.broadcast %cst_46 : f32 to vector<2x128xf32>
    %73 = arith.addf %72, %71 : vector<2x128xf32>
    %74 = arith.divf %72, %73 : vector<2x128xf32>
    %75 = math.tanh %69 : vector<2x128xf32>
    %76 = vector.extract_strided_slice %74 {offsets = [0, 0], sizes = [2, 32], strides = [1, 1]} : vector<2x128xf32> to vector<2x32xf32>
    %77 = vector.extract_strided_slice %75 {offsets = [0, 64], sizes = [2, 32], strides = [1, 1]} : vector<2x128xf32> to vector<2x32xf32>
    %78 = vector.extract_strided_slice %74 {offsets = [0, 96], sizes = [2, 32], strides = [1, 1]} : vector<2x128xf32> to vector<2x32xf32>
    %79 = arith.mulf %76, %77 : vector<2x32xf32>
    %80 = math.tanh %79 : vector<2x32xf32>
    %81 = arith.mulf %78, %80 : vector<2x32xf32>
    %cst_47 = arith.constant dense<0.000000e+00> : vector<2x4xf32>
    %82 = tpu.matmul %81, %49, %cst_47 {dimension_numbers = #tpu.dot_dimension_numbers<[1], [0], [0], [1], [0, 0, 1, 1], [], []>} : vector<2x32xf32>, vector<32x4xf32>, vector<2x4xf32> -> vector<2x4xf32>
    %83 = vector.broadcast %51 : vector<1x4xf32> to vector<2x4xf32>
    %84 = arith.addf %82, %83 : vector<2x4xf32>
    %85 = arith.negf %84 : vector<2x4xf32>
    %86 = math.exp %85 : vector<2x4xf32>
    %cst_48 = arith.constant 1.000000e+00 : f32
    %87 = vector.broadcast %cst_48 : f32 to vector<2x4xf32>
    %88 = arith.addf %87, %86 : vector<2x4xf32>
    %89 = arith.divf %87, %88 : vector<2x4xf32>
    %90 = math.tanh %84 : vector<2x4xf32>
    %91 = vector.extract_strided_slice %89 {offsets = [0, 0], sizes = [2, 1], strides = [1, 1]} : vector<2x4xf32> to vector<2x1xf32>
    %92 = vector.extract_strided_slice %90 {offsets = [0, 2], sizes = [2, 1], strides = [1, 1]} : vector<2x4xf32> to vector<2x1xf32>
    %93 = vector.extract_strided_slice %89 {offsets = [0, 3], sizes = [2, 1], strides = [1, 1]} : vector<2x4xf32> to vector<2x1xf32>
    %94 = arith.mulf %91, %92 : vector<2x1xf32>
    %95 = math.tanh %94 : vector<2x1xf32>
    %96 = arith.mulf %93, %95 : vector<2x1xf32>
    %cst_49 = arith.constant dense<0.000000e+00> : vector<2x128xf32>
    %97 = tpu.matmul %66, %44, %cst_49 {dimension_numbers = #tpu.dot_dimension_numbers<[1], [0], [0], [1], [0, 0, 1, 1], [], []>} : vector<2x32xf32>, vector<32x128xf32>, vector<2x128xf32> -> vector<2x128xf32>
    %98 = vector.broadcast %45 : vector<1x128xf32> to vector<2x128xf32>
    %99 = arith.addf %97, %98 : vector<2x128xf32>
    %100 = arith.negf %99 : vector<2x128xf32>
    %101 = math.exp %100 : vector<2x128xf32>
    %cst_50 = arith.constant 1.000000e+00 : f32
    %102 = vector.broadcast %cst_50 : f32 to vector<2x128xf32>
    %103 = arith.addf %102, %101 : vector<2x128xf32>
    %104 = arith.divf %102, %103 : vector<2x128xf32>
    %105 = math.tanh %99 : vector<2x128xf32>
    %106 = vector.extract_strided_slice %104 {offsets = [0, 0], sizes = [2, 32], strides = [1, 1]} : vector<2x128xf32> to vector<2x32xf32>
    %107 = vector.extract_strided_slice %104 {offsets = [0, 32], sizes = [2, 32], strides = [1, 1]} : vector<2x128xf32> to vector<2x32xf32>
    %108 = vector.extract_strided_slice %105 {offsets = [0, 64], sizes = [2, 32], strides = [1, 1]} : vector<2x128xf32> to vector<2x32xf32>
    %109 = vector.extract_strided_slice %104 {offsets = [0, 96], sizes = [2, 32], strides = [1, 1]} : vector<2x128xf32> to vector<2x32xf32>
    %110 = arith.mulf %107, %64 : vector<2x32xf32>
    %111 = arith.mulf %106, %108 : vector<2x32xf32>
    %112 = arith.addf %110, %111 : vector<2x32xf32>
    %113 = math.tanh %112 : vector<2x32xf32>
    %114 = arith.mulf %109, %113 : vector<2x32xf32>
    %cst_51 = arith.constant dense<0.000000e+00> : vector<2x128xf32>
    %115 = tpu.matmul %114, %46, %cst_51 {dimension_numbers = #tpu.dot_dimension_numbers<[1], [0], [0], [1], [0, 0, 1, 1], [], []>} : vector<2x32xf32>, vector<32x128xf32>, vector<2x128xf32> -> vector<2x128xf32>
    %cst_52 = arith.constant dense<0.000000e+00> : vector<2x128xf32>
    %116 = tpu.matmul %81, %47, %cst_52 {dimension_numbers = #tpu.dot_dimension_numbers<[1], [0], [0], [1], [0, 0, 1, 1], [], []>} : vector<2x32xf32>, vector<32x128xf32>, vector<2x128xf32> -> vector<2x128xf32>
    %117 = arith.addf %115, %116 : vector<2x128xf32>
    %118 = vector.broadcast %48 : vector<1x128xf32> to vector<2x128xf32>
    %119 = arith.addf %117, %118 : vector<2x128xf32>
    %120 = arith.negf %119 : vector<2x128xf32>
    %121 = math.exp %120 : vector<2x128xf32>
    %cst_53 = arith.constant 1.000000e+00 : f32
    %122 = vector.broadcast %cst_53 : f32 to vector<2x128xf32>
    %123 = arith.addf %122, %121 : vector<2x128xf32>
    %124 = arith.divf %122, %123 : vector<2x128xf32>
    %125 = math.tanh %119 : vector<2x128xf32>
    %126 = vector.extract_strided_slice %124 {offsets = [0, 0], sizes = [2, 32], strides = [1, 1]} : vector<2x128xf32> to vector<2x32xf32>
    %127 = vector.extract_strided_slice %124 {offsets = [0, 32], sizes = [2, 32], strides = [1, 1]} : vector<2x128xf32> to vector<2x32xf32>
    %128 = vector.extract_strided_slice %125 {offsets = [0, 64], sizes = [2, 32], strides = [1, 1]} : vector<2x128xf32> to vector<2x32xf32>
    %129 = vector.extract_strided_slice %124 {offsets = [0, 96], sizes = [2, 32], strides = [1, 1]} : vector<2x128xf32> to vector<2x32xf32>
    %130 = arith.mulf %127, %79 : vector<2x32xf32>
    %131 = arith.mulf %126, %128 : vector<2x32xf32>
    %132 = arith.addf %130, %131 : vector<2x32xf32>
    %133 = math.tanh %132 : vector<2x32xf32>
    %134 = arith.mulf %129, %133 : vector<2x32xf32>
    %cst_54 = arith.constant dense<0.000000e+00> : vector<2x4xf32>
    %135 = tpu.matmul %134, %49, %cst_54 {dimension_numbers = #tpu.dot_dimension_numbers<[1], [0], [0], [1], [0, 0, 1, 1], [], []>} : vector<2x32xf32>, vector<32x4xf32>, vector<2x4xf32> -> vector<2x4xf32>
    %136 = vector.broadcast %96 : vector<2x1xf32> to vector<2x4xf32>
    %137 = vector.broadcast %50 : vector<1x4xf32> to vector<2x4xf32>
    %138 = arith.mulf %136, %137 : vector<2x4xf32>
    %139 = arith.addf %135, %138 : vector<2x4xf32>
    %140 = vector.broadcast %51 : vector<1x4xf32> to vector<2x4xf32>
    %141 = arith.addf %139, %140 : vector<2x4xf32>
    %142 = arith.negf %141 : vector<2x4xf32>
    %143 = math.exp %142 : vector<2x4xf32>
    %cst_55 = arith.constant 1.000000e+00 : f32
    %144 = vector.broadcast %cst_55 : f32 to vector<2x4xf32>
    %145 = arith.addf %144, %143 : vector<2x4xf32>
    %146 = arith.divf %144, %145 : vector<2x4xf32>
    %147 = math.tanh %141 : vector<2x4xf32>
    %148 = vector.extract_strided_slice %146 {offsets = [0, 0], sizes = [2, 1], strides = [1, 1]} : vector<2x4xf32> to vector<2x1xf32>
    %149 = vector.extract_strided_slice %146 {offsets = [0, 1], sizes = [2, 1], strides = [1, 1]} : vector<2x4xf32> to vector<2x1xf32>
    %150 = vector.extract_strided_slice %147 {offsets = [0, 2], sizes = [2, 1], strides = [1, 1]} : vector<2x4xf32> to vector<2x1xf32>
    %151 = vector.extract_strided_slice %146 {offsets = [0, 3], sizes = [2, 1], strides = [1, 1]} : vector<2x4xf32> to vector<2x1xf32>
    %152 = arith.mulf %149, %94 : vector<2x1xf32>
    %153 = arith.mulf %148, %150 : vector<2x1xf32>
    %154 = arith.addf %152, %153 : vector<2x1xf32>
    %155 = math.tanh %154 : vector<2x1xf32>
    %156 = arith.mulf %151, %155 : vector<2x1xf32>
    %cst_56 = arith.constant dense<0.000000e+00> : vector<2x128xf32>
    %157 = tpu.matmul %114, %44, %cst_56 {dimension_numbers = #tpu.dot_dimension_numbers<[1], [0], [0], [1], [0, 0, 1, 1], [], []>} : vector<2x32xf32>, vector<32x128xf32>, vector<2x128xf32> -> vector<2x128xf32>
    %158 = vector.broadcast %45 : vector<1x128xf32> to vector<2x128xf32>
    %159 = arith.addf %157, %158 : vector<2x128xf32>
    %160 = arith.negf %159 : vector<2x128xf32>
    %161 = math.exp %160 : vector<2x128xf32>
    %cst_57 = arith.constant 1.000000e+00 : f32
    %162 = vector.broadcast %cst_57 : f32 to vector<2x128xf32>
    %163 = arith.addf %162, %161 : vector<2x128xf32>
    %164 = arith.divf %162, %163 : vector<2x128xf32>
    %165 = math.tanh %159 : vector<2x128xf32>
    %166 = vector.extract_strided_slice %164 {offsets = [0, 0], sizes = [2, 32], strides = [1, 1]} : vector<2x128xf32> to vector<2x32xf32>
    %167 = vector.extract_strided_slice %164 {offsets = [0, 32], sizes = [2, 32], strides = [1, 1]} : vector<2x128xf32> to vector<2x32xf32>
    %168 = vector.extract_strided_slice %165 {offsets = [0, 64], sizes = [2, 32], strides = [1, 1]} : vector<2x128xf32> to vector<2x32xf32>
    %169 = vector.extract_strided_slice %164 {offsets = [0, 96], sizes = [2, 32], strides = [1, 1]} : vector<2x128xf32> to vector<2x32xf32>
    %170 = arith.mulf %167, %112 : vector<2x32xf32>
    %171 = arith.mulf %166, %168 : vector<2x32xf32>
    %172 = arith.addf %170, %171 : vector<2x32xf32>
    %173 = math.tanh %172 : vector<2x32xf32>
    %174 = arith.mulf %169, %173 : vector<2x32xf32>
    %cst_58 = arith.constant dense<0.000000e+00> : vector<2x128xf32>
    %175 = tpu.matmul %174, %46, %cst_58 {dimension_numbers = #tpu.dot_dimension_numbers<[1], [0], [0], [1], [0, 0, 1, 1], [], []>} : vector<2x32xf32>, vector<32x128xf32>, vector<2x128xf32> -> vector<2x128xf32>
    %cst_59 = arith.constant dense<0.000000e+00> : vector<2x128xf32>
    %176 = tpu.matmul %134, %47, %cst_59 {dimension_numbers = #tpu.dot_dimension_numbers<[1], [0], [0], [1], [0, 0, 1, 1], [], []>} : vector<2x32xf32>, vector<32x128xf32>, vector<2x128xf32> -> vector<2x128xf32>
    %177 = arith.addf %175, %176 : vector<2x128xf32>
    %178 = vector.broadcast %48 : vector<1x128xf32> to vector<2x128xf32>
    %179 = arith.addf %177, %178 : vector<2x128xf32>
    %180 = arith.negf %179 : vector<2x128xf32>
    %181 = math.exp %180 : vector<2x128xf32>
    %cst_60 = arith.constant 1.000000e+00 : f32
    %182 = vector.broadcast %cst_60 : f32 to vector<2x128xf32>
    %183 = arith.addf %182, %181 : vector<2x128xf32>
    %184 = arith.divf %182, %183 : vector<2x128xf32>
    %185 = math.tanh %179 : vector<2x128xf32>
    %186 = vector.extract_strided_slice %184 {offsets = [0, 0], sizes = [2, 32], strides = [1, 1]} : vector<2x128xf32> to vector<2x32xf32>
    %187 = vector.extract_strided_slice %184 {offsets = [0, 32], sizes = [2, 32], strides = [1, 1]} : vector<2x128xf32> to vector<2x32xf32>
    %188 = vector.extract_strided_slice %185 {offsets = [0, 64], sizes = [2, 32], strides = [1, 1]} : vector<2x128xf32> to vector<2x32xf32>
    %189 = vector.extract_strided_slice %184 {offsets = [0, 96], sizes = [2, 32], strides = [1, 1]} : vector<2x128xf32> to vector<2x32xf32>
    %190 = arith.mulf %187, %132 : vector<2x32xf32>
    %191 = arith.mulf %186, %188 : vector<2x32xf32>
    %192 = arith.addf %190, %191 : vector<2x32xf32>
    %193 = math.tanh %192 : vector<2x32xf32>
    %194 = arith.mulf %189, %193 : vector<2x32xf32>
    %cst_61 = arith.constant dense<0.000000e+00> : vector<2x4xf32>
    %195 = tpu.matmul %194, %49, %cst_61 {dimension_numbers = #tpu.dot_dimension_numbers<[1], [0], [0], [1], [0, 0, 1, 1], [], []>} : vector<2x32xf32>, vector<32x4xf32>, vector<2x4xf32> -> vector<2x4xf32>
    %196 = vector.broadcast %156 : vector<2x1xf32> to vector<2x4xf32>
    %197 = vector.broadcast %50 : vector<1x4xf32> to vector<2x4xf32>
    %198 = arith.mulf %196, %197 : vector<2x4xf32>
    %199 = arith.addf %195, %198 : vector<2x4xf32>
    %200 = vector.broadcast %51 : vector<1x4xf32> to vector<2x4xf32>
    %201 = arith.addf %199, %200 : vector<2x4xf32>
    %202 = arith.negf %201 : vector<2x4xf32>
    %203 = math.exp %202 : vector<2x4xf32>
    %cst_62 = arith.constant 1.000000e+00 : f32
    %204 = vector.broadcast %cst_62 : f32 to vector<2x4xf32>
    %205 = arith.addf %204, %203 : vector<2x4xf32>
    %206 = arith.divf %204, %205 : vector<2x4xf32>
    %207 = math.tanh %201 : vector<2x4xf32>
    %208 = vector.extract_strided_slice %206 {offsets = [0, 0], sizes = [2, 1], strides = [1, 1]} : vector<2x4xf32> to vector<2x1xf32>
    %209 = vector.extract_strided_slice %206 {offsets = [0, 1], sizes = [2, 1], strides = [1, 1]} : vector<2x4xf32> to vector<2x1xf32>
    %210 = vector.extract_strided_slice %207 {offsets = [0, 2], sizes = [2, 1], strides = [1, 1]} : vector<2x4xf32> to vector<2x1xf32>
    %211 = vector.extract_strided_slice %206 {offsets = [0, 3], sizes = [2, 1], strides = [1, 1]} : vector<2x4xf32> to vector<2x1xf32>
    %212 = arith.mulf %209, %154 : vector<2x1xf32>
    %213 = arith.mulf %208, %210 : vector<2x1xf32>
    %214 = arith.addf %212, %213 : vector<2x1xf32>
    %215 = math.tanh %214 : vector<2x1xf32>
    %216 = arith.mulf %211, %215 : vector<2x1xf32>
    %cst_63 = arith.constant dense<0.000000e+00> : vector<2x128xf32>
    %217 = tpu.matmul %174, %44, %cst_63 {dimension_numbers = #tpu.dot_dimension_numbers<[1], [0], [0], [1], [0, 0, 1, 1], [], []>} : vector<2x32xf32>, vector<32x128xf32>, vector<2x128xf32> -> vector<2x128xf32>
    %218 = vector.broadcast %45 : vector<1x128xf32> to vector<2x128xf32>
    %219 = arith.addf %217, %218 : vector<2x128xf32>
    %220 = arith.negf %219 : vector<2x128xf32>
    %221 = math.exp %220 : vector<2x128xf32>
    %cst_64 = arith.constant 1.000000e+00 : f32
    %222 = vector.broadcast %cst_64 : f32 to vector<2x128xf32>
    %223 = arith.addf %222, %221 : vector<2x128xf32>
    %224 = arith.divf %222, %223 : vector<2x128xf32>
    %225 = math.tanh %219 : vector<2x128xf32>
    %226 = vector.extract_strided_slice %224 {offsets = [0, 0], sizes = [2, 32], strides = [1, 1]} : vector<2x128xf32> to vector<2x32xf32>
    %227 = vector.extract_strided_slice %224 {offsets = [0, 32], sizes = [2, 32], strides = [1, 1]} : vector<2x128xf32> to vector<2x32xf32>
    %228 = vector.extract_strided_slice %225 {offsets = [0, 64], sizes = [2, 32], strides = [1, 1]} : vector<2x128xf32> to vector<2x32xf32>
    %229 = vector.extract_strided_slice %224 {offsets = [0, 96], sizes = [2, 32], strides = [1, 1]} : vector<2x128xf32> to vector<2x32xf32>
    %230 = arith.mulf %227, %172 : vector<2x32xf32>
    %231 = arith.mulf %226, %228 : vector<2x32xf32>
    %232 = arith.addf %230, %231 : vector<2x32xf32>
    %233 = math.tanh %232 : vector<2x32xf32>
    %234 = arith.mulf %229, %233 : vector<2x32xf32>
    %cst_65 = arith.constant dense<0.000000e+00> : vector<2x128xf32>
    %235 = tpu.matmul %234, %46, %cst_65 {dimension_numbers = #tpu.dot_dimension_numbers<[1], [0], [0], [1], [0, 0, 1, 1], [], []>} : vector<2x32xf32>, vector<32x128xf32>, vector<2x128xf32> -> vector<2x128xf32>
    %cst_66 = arith.constant dense<0.000000e+00> : vector<2x128xf32>
    %236 = tpu.matmul %194, %47, %cst_66 {dimension_numbers = #tpu.dot_dimension_numbers<[1], [0], [0], [1], [0, 0, 1, 1], [], []>} : vector<2x32xf32>, vector<32x128xf32>, vector<2x128xf32> -> vector<2x128xf32>
    %237 = arith.addf %235, %236 : vector<2x128xf32>
    %238 = vector.broadcast %48 : vector<1x128xf32> to vector<2x128xf32>
    %239 = arith.addf %237, %238 : vector<2x128xf32>
    %240 = arith.negf %239 : vector<2x128xf32>
    %241 = math.exp %240 : vector<2x128xf32>
    %cst_67 = arith.constant 1.000000e+00 : f32
    %242 = vector.broadcast %cst_67 : f32 to vector<2x128xf32>
    %243 = arith.addf %242, %241 : vector<2x128xf32>
    %244 = arith.divf %242, %243 : vector<2x128xf32>
    %245 = math.tanh %239 : vector<2x128xf32>
    %246 = vector.extract_strided_slice %244 {offsets = [0, 0], sizes = [2, 32], strides = [1, 1]} : vector<2x128xf32> to vector<2x32xf32>
    %247 = vector.extract_strided_slice %244 {offsets = [0, 32], sizes = [2, 32], strides = [1, 1]} : vector<2x128xf32> to vector<2x32xf32>
    %248 = vector.extract_strided_slice %245 {offsets = [0, 64], sizes = [2, 32], strides = [1, 1]} : vector<2x128xf32> to vector<2x32xf32>
    %249 = vector.extract_strided_slice %244 {offsets = [0, 96], sizes = [2, 32], strides = [1, 1]} : vector<2x128xf32> to vector<2x32xf32>
    %250 = arith.mulf %247, %192 : vector<2x32xf32>
    %251 = arith.mulf %246, %248 : vector<2x32xf32>
    %252 = arith.addf %250, %251 : vector<2x32xf32>
    %253 = math.tanh %252 : vector<2x32xf32>
    %254 = arith.mulf %249, %253 : vector<2x32xf32>
    %cst_68 = arith.constant dense<0.000000e+00> : vector<2x4xf32>
    %255 = tpu.matmul %254, %49, %cst_68 {dimension_numbers = #tpu.dot_dimension_numbers<[1], [0], [0], [1], [0, 0, 1, 1], [], []>} : vector<2x32xf32>, vector<32x4xf32>, vector<2x4xf32> -> vector<2x4xf32>
    %256 = vector.broadcast %216 : vector<2x1xf32> to vector<2x4xf32>
    %257 = vector.broadcast %50 : vector<1x4xf32> to vector<2x4xf32>
    %258 = arith.mulf %256, %257 : vector<2x4xf32>
    %259 = arith.addf %255, %258 : vector<2x4xf32>
    %260 = vector.broadcast %51 : vector<1x4xf32> to vector<2x4xf32>
    %261 = arith.addf %259, %260 : vector<2x4xf32>
    %262 = arith.negf %261 : vector<2x4xf32>
    %263 = math.exp %262 : vector<2x4xf32>
    %cst_69 = arith.constant 1.000000e+00 : f32
    %264 = vector.broadcast %cst_69 : f32 to vector<2x4xf32>
    %265 = arith.addf %264, %263 : vector<2x4xf32>
    %266 = arith.divf %264, %265 : vector<2x4xf32>
    %267 = math.tanh %261 : vector<2x4xf32>
    %268 = vector.extract_strided_slice %266 {offsets = [0, 0], sizes = [2, 1], strides = [1, 1]} : vector<2x4xf32> to vector<2x1xf32>
    %269 = vector.extract_strided_slice %266 {offsets = [0, 1], sizes = [2, 1], strides = [1, 1]} : vector<2x4xf32> to vector<2x1xf32>
    %270 = vector.extract_strided_slice %267 {offsets = [0, 2], sizes = [2, 1], strides = [1, 1]} : vector<2x4xf32> to vector<2x1xf32>
    %271 = vector.extract_strided_slice %266 {offsets = [0, 3], sizes = [2, 1], strides = [1, 1]} : vector<2x4xf32> to vector<2x1xf32>
    %272 = arith.mulf %269, %214 : vector<2x1xf32>
    %273 = arith.mulf %268, %270 : vector<2x1xf32>
    %274 = arith.addf %272, %273 : vector<2x1xf32>
    %275 = math.tanh %274 : vector<2x1xf32>
    %276 = arith.mulf %271, %275 : vector<2x1xf32>
    %cst_70 = arith.constant dense<0.000000e+00> : vector<2x128xf32>
    %277 = tpu.matmul %234, %44, %cst_70 {dimension_numbers = #tpu.dot_dimension_numbers<[1], [0], [0], [1], [0, 0, 1, 1], [], []>} : vector<2x32xf32>, vector<32x128xf32>, vector<2x128xf32> -> vector<2x128xf32>
    %278 = vector.broadcast %45 : vector<1x128xf32> to vector<2x128xf32>
    %279 = arith.addf %277, %278 : vector<2x128xf32>
    %280 = arith.negf %279 : vector<2x128xf32>
    %281 = math.exp %280 : vector<2x128xf32>
    %cst_71 = arith.constant 1.000000e+00 : f32
    %282 = vector.broadcast %cst_71 : f32 to vector<2x128xf32>
    %283 = arith.addf %282, %281 : vector<2x128xf32>
    %284 = arith.divf %282, %283 : vector<2x128xf32>
    %285 = math.tanh %279 : vector<2x128xf32>
    %286 = vector.extract_strided_slice %284 {offsets = [0, 0], sizes = [2, 32], strides = [1, 1]} : vector<2x128xf32> to vector<2x32xf32>
    %287 = vector.extract_strided_slice %284 {offsets = [0, 32], sizes = [2, 32], strides = [1, 1]} : vector<2x128xf32> to vector<2x32xf32>
    %288 = vector.extract_strided_slice %285 {offsets = [0, 64], sizes = [2, 32], strides = [1, 1]} : vector<2x128xf32> to vector<2x32xf32>
    %289 = vector.extract_strided_slice %284 {offsets = [0, 96], sizes = [2, 32], strides = [1, 1]} : vector<2x128xf32> to vector<2x32xf32>
    %290 = arith.mulf %287, %232 : vector<2x32xf32>
    %291 = arith.mulf %286, %288 : vector<2x32xf32>
    %292 = arith.addf %290, %291 : vector<2x32xf32>
    %293 = math.tanh %292 : vector<2x32xf32>
    %294 = arith.mulf %289, %293 : vector<2x32xf32>
    %cst_72 = arith.constant dense<0.000000e+00> : vector<2x128xf32>
    %295 = tpu.matmul %294, %46, %cst_72 {dimension_numbers = #tpu.dot_dimension_numbers<[1], [0], [0], [1], [0, 0, 1, 1], [], []>} : vector<2x32xf32>, vector<32x128xf32>, vector<2x128xf32> -> vector<2x128xf32>
    %cst_73 = arith.constant dense<0.000000e+00> : vector<2x128xf32>
    %296 = tpu.matmul %254, %47, %cst_73 {dimension_numbers = #tpu.dot_dimension_numbers<[1], [0], [0], [1], [0, 0, 1, 1], [], []>} : vector<2x32xf32>, vector<32x128xf32>, vector<2x128xf32> -> vector<2x128xf32>
    %297 = arith.addf %295, %296 : vector<2x128xf32>
    %298 = vector.broadcast %48 : vector<1x128xf32> to vector<2x128xf32>
    %299 = arith.addf %297, %298 : vector<2x128xf32>
    %300 = arith.negf %299 : vector<2x128xf32>
    %301 = math.exp %300 : vector<2x128xf32>
    %cst_74 = arith.constant 1.000000e+00 : f32
    %302 = vector.broadcast %cst_74 : f32 to vector<2x128xf32>
    %303 = arith.addf %302, %301 : vector<2x128xf32>
    %304 = arith.divf %302, %303 : vector<2x128xf32>
    %305 = math.tanh %299 : vector<2x128xf32>
    %306 = vector.extract_strided_slice %304 {offsets = [0, 0], sizes = [2, 32], strides = [1, 1]} : vector<2x128xf32> to vector<2x32xf32>
    %307 = vector.extract_strided_slice %304 {offsets = [0, 32], sizes = [2, 32], strides = [1, 1]} : vector<2x128xf32> to vector<2x32xf32>
    %308 = vector.extract_strided_slice %305 {offsets = [0, 64], sizes = [2, 32], strides = [1, 1]} : vector<2x128xf32> to vector<2x32xf32>
    %309 = vector.extract_strided_slice %304 {offsets = [0, 96], sizes = [2, 32], strides = [1, 1]} : vector<2x128xf32> to vector<2x32xf32>
    %310 = arith.mulf %307, %252 : vector<2x32xf32>
    %311 = arith.mulf %306, %308 : vector<2x32xf32>
    %312 = arith.addf %310, %311 : vector<2x32xf32>
    %313 = math.tanh %312 : vector<2x32xf32>
    %314 = arith.mulf %309, %313 : vector<2x32xf32>
    %cst_75 = arith.constant dense<0.000000e+00> : vector<2x4xf32>
    %315 = tpu.matmul %314, %49, %cst_75 {dimension_numbers = #tpu.dot_dimension_numbers<[1], [0], [0], [1], [0, 0, 1, 1], [], []>} : vector<2x32xf32>, vector<32x4xf32>, vector<2x4xf32> -> vector<2x4xf32>
    %316 = vector.broadcast %276 : vector<2x1xf32> to vector<2x4xf32>
    %317 = vector.broadcast %50 : vector<1x4xf32> to vector<2x4xf32>
    %318 = arith.mulf %316, %317 : vector<2x4xf32>
    %319 = arith.addf %315, %318 : vector<2x4xf32>
    %320 = vector.broadcast %51 : vector<1x4xf32> to vector<2x4xf32>
    %321 = arith.addf %319, %320 : vector<2x4xf32>
    %322 = arith.negf %321 : vector<2x4xf32>
    %323 = math.exp %322 : vector<2x4xf32>
    %cst_76 = arith.constant 1.000000e+00 : f32
    %324 = vector.broadcast %cst_76 : f32 to vector<2x4xf32>
    %325 = arith.addf %324, %323 : vector<2x4xf32>
    %326 = arith.divf %324, %325 : vector<2x4xf32>
    %327 = math.tanh %321 : vector<2x4xf32>
    %328 = vector.extract_strided_slice %326 {offsets = [0, 0], sizes = [2, 1], strides = [1, 1]} : vector<2x4xf32> to vector<2x1xf32>
    %329 = vector.extract_strided_slice %326 {offsets = [0, 1], sizes = [2, 1], strides = [1, 1]} : vector<2x4xf32> to vector<2x1xf32>
    %330 = vector.extract_strided_slice %327 {offsets = [0, 2], sizes = [2, 1], strides = [1, 1]} : vector<2x4xf32> to vector<2x1xf32>
    %331 = vector.extract_strided_slice %326 {offsets = [0, 3], sizes = [2, 1], strides = [1, 1]} : vector<2x4xf32> to vector<2x1xf32>
    %332 = arith.mulf %329, %274 : vector<2x1xf32>
    %333 = arith.mulf %328, %330 : vector<2x1xf32>
    %334 = arith.addf %332, %333 : vector<2x1xf32>
    %335 = math.tanh %334 : vector<2x1xf32>
    %336 = arith.mulf %331, %335 : vector<2x1xf32>
    %cst_77 = arith.constant dense<0.000000e+00> : vector<2x128xf32>
    %337 = tpu.matmul %294, %44, %cst_77 {dimension_numbers = #tpu.dot_dimension_numbers<[1], [0], [0], [1], [0, 0, 1, 1], [], []>} : vector<2x32xf32>, vector<32x128xf32>, vector<2x128xf32> -> vector<2x128xf32>
    %338 = vector.broadcast %45 : vector<1x128xf32> to vector<2x128xf32>
    %339 = arith.addf %337, %338 : vector<2x128xf32>
    %340 = arith.negf %339 : vector<2x128xf32>
    %341 = math.exp %340 : vector<2x128xf32>
    %cst_78 = arith.constant 1.000000e+00 : f32
    %342 = vector.broadcast %cst_78 : f32 to vector<2x128xf32>
    %343 = arith.addf %342, %341 : vector<2x128xf32>
    %344 = arith.divf %342, %343 : vector<2x128xf32>
    %345 = math.tanh %339 : vector<2x128xf32>
    %346 = vector.extract_strided_slice %344 {offsets = [0, 0], sizes = [2, 32], strides = [1, 1]} : vector<2x128xf32> to vector<2x32xf32>
    %347 = vector.extract_strided_slice %344 {offsets = [0, 32], sizes = [2, 32], strides = [1, 1]} : vector<2x128xf32> to vector<2x32xf32>
    %348 = vector.extract_strided_slice %345 {offsets = [0, 64], sizes = [2, 32], strides = [1, 1]} : vector<2x128xf32> to vector<2x32xf32>
    %349 = vector.extract_strided_slice %344 {offsets = [0, 96], sizes = [2, 32], strides = [1, 1]} : vector<2x128xf32> to vector<2x32xf32>
    %350 = arith.mulf %347, %292 : vector<2x32xf32>
    %351 = arith.mulf %346, %348 : vector<2x32xf32>
    %352 = arith.addf %350, %351 : vector<2x32xf32>
    %353 = math.tanh %352 : vector<2x32xf32>
    %354 = arith.mulf %349, %353 : vector<2x32xf32>
    %cst_79 = arith.constant dense<0.000000e+00> : vector<2x128xf32>
    %355 = tpu.matmul %354, %46, %cst_79 {dimension_numbers = #tpu.dot_dimension_numbers<[1], [0], [0], [1], [0, 0, 1, 1], [], []>} : vector<2x32xf32>, vector<32x128xf32>, vector<2x128xf32> -> vector<2x128xf32>
    %cst_80 = arith.constant dense<0.000000e+00> : vector<2x128xf32>
    %356 = tpu.matmul %314, %47, %cst_80 {dimension_numbers = #tpu.dot_dimension_numbers<[1], [0], [0], [1], [0, 0, 1, 1], [], []>} : vector<2x32xf32>, vector<32x128xf32>, vector<2x128xf32> -> vector<2x128xf32>
    %357 = arith.addf %355, %356 : vector<2x128xf32>
    %358 = vector.broadcast %48 : vector<1x128xf32> to vector<2x128xf32>
    %359 = arith.addf %357, %358 : vector<2x128xf32>
    %360 = arith.negf %359 : vector<2x128xf32>
    %361 = math.exp %360 : vector<2x128xf32>
    %cst_81 = arith.constant 1.000000e+00 : f32
    %362 = vector.broadcast %cst_81 : f32 to vector<2x128xf32>
    %363 = arith.addf %362, %361 : vector<2x128xf32>
    %364 = arith.divf %362, %363 : vector<2x128xf32>
    %365 = math.tanh %359 : vector<2x128xf32>
    %366 = vector.extract_strided_slice %364 {offsets = [0, 0], sizes = [2, 32], strides = [1, 1]} : vector<2x128xf32> to vector<2x32xf32>
    %367 = vector.extract_strided_slice %364 {offsets = [0, 32], sizes = [2, 32], strides = [1, 1]} : vector<2x128xf32> to vector<2x32xf32>
    %368 = vector.extract_strided_slice %365 {offsets = [0, 64], sizes = [2, 32], strides = [1, 1]} : vector<2x128xf32> to vector<2x32xf32>
    %369 = vector.extract_strided_slice %364 {offsets = [0, 96], sizes = [2, 32], strides = [1, 1]} : vector<2x128xf32> to vector<2x32xf32>
    %370 = arith.mulf %367, %312 : vector<2x32xf32>
    %371 = arith.mulf %366, %368 : vector<2x32xf32>
    %372 = arith.addf %370, %371 : vector<2x32xf32>
    %373 = math.tanh %372 : vector<2x32xf32>
    %374 = arith.mulf %369, %373 : vector<2x32xf32>
    %cst_82 = arith.constant dense<0.000000e+00> : vector<2x4xf32>
    %375 = tpu.matmul %374, %49, %cst_82 {dimension_numbers = #tpu.dot_dimension_numbers<[1], [0], [0], [1], [0, 0, 1, 1], [], []>} : vector<2x32xf32>, vector<32x4xf32>, vector<2x4xf32> -> vector<2x4xf32>
    %376 = vector.broadcast %336 : vector<2x1xf32> to vector<2x4xf32>
    %377 = vector.broadcast %50 : vector<1x4xf32> to vector<2x4xf32>
    %378 = arith.mulf %376, %377 : vector<2x4xf32>
    %379 = arith.addf %375, %378 : vector<2x4xf32>
    %380 = vector.broadcast %51 : vector<1x4xf32> to vector<2x4xf32>
    %381 = arith.addf %379, %380 : vector<2x4xf32>
    %382 = arith.negf %381 : vector<2x4xf32>
    %383 = math.exp %382 : vector<2x4xf32>
    %cst_83 = arith.constant 1.000000e+00 : f32
    %384 = vector.broadcast %cst_83 : f32 to vector<2x4xf32>
    %385 = arith.addf %384, %383 : vector<2x4xf32>
    %386 = arith.divf %384, %385 : vector<2x4xf32>
    %387 = math.tanh %381 : vector<2x4xf32>
    %388 = vector.extract_strided_slice %386 {offsets = [0, 0], sizes = [2, 1], strides = [1, 1]} : vector<2x4xf32> to vector<2x1xf32>
    %389 = vector.extract_strided_slice %386 {offsets = [0, 1], sizes = [2, 1], strides = [1, 1]} : vector<2x4xf32> to vector<2x1xf32>
    %390 = vector.extract_strided_slice %387 {offsets = [0, 2], sizes = [2, 1], strides = [1, 1]} : vector<2x4xf32> to vector<2x1xf32>
    %391 = vector.extract_strided_slice %386 {offsets = [0, 3], sizes = [2, 1], strides = [1, 1]} : vector<2x4xf32> to vector<2x1xf32>
    %392 = arith.mulf %389, %334 : vector<2x1xf32>
    %393 = arith.mulf %388, %390 : vector<2x1xf32>
    %394 = arith.addf %392, %393 : vector<2x1xf32>
    %395 = math.tanh %394 : vector<2x1xf32>
    %396 = arith.mulf %391, %395 : vector<2x1xf32>
    %cst_84 = arith.constant dense<0.000000e+00> : vector<2x128xf32>
    %397 = tpu.matmul %354, %44, %cst_84 {dimension_numbers = #tpu.dot_dimension_numbers<[1], [0], [0], [1], [0, 0, 1, 1], [], []>} : vector<2x32xf32>, vector<32x128xf32>, vector<2x128xf32> -> vector<2x128xf32>
    %398 = vector.broadcast %45 : vector<1x128xf32> to vector<2x128xf32>
    %399 = arith.addf %397, %398 : vector<2x128xf32>
    %400 = arith.negf %399 : vector<2x128xf32>
    %401 = math.exp %400 : vector<2x128xf32>
    %cst_85 = arith.constant 1.000000e+00 : f32
    %402 = vector.broadcast %cst_85 : f32 to vector<2x128xf32>
    %403 = arith.addf %402, %401 : vector<2x128xf32>
    %404 = arith.divf %402, %403 : vector<2x128xf32>
    %405 = math.tanh %399 : vector<2x128xf32>
    %406 = vector.extract_strided_slice %404 {offsets = [0, 0], sizes = [2, 32], strides = [1, 1]} : vector<2x128xf32> to vector<2x32xf32>
    %407 = vector.extract_strided_slice %404 {offsets = [0, 32], sizes = [2, 32], strides = [1, 1]} : vector<2x128xf32> to vector<2x32xf32>
    %408 = vector.extract_strided_slice %405 {offsets = [0, 64], sizes = [2, 32], strides = [1, 1]} : vector<2x128xf32> to vector<2x32xf32>
    %409 = vector.extract_strided_slice %404 {offsets = [0, 96], sizes = [2, 32], strides = [1, 1]} : vector<2x128xf32> to vector<2x32xf32>
    %410 = arith.mulf %407, %352 : vector<2x32xf32>
    %411 = arith.mulf %406, %408 : vector<2x32xf32>
    %412 = arith.addf %410, %411 : vector<2x32xf32>
    %413 = math.tanh %412 : vector<2x32xf32>
    %414 = arith.mulf %409, %413 : vector<2x32xf32>
    %cst_86 = arith.constant dense<0.000000e+00> : vector<2x128xf32>
    %415 = tpu.matmul %414, %46, %cst_86 {dimension_numbers = #tpu.dot_dimension_numbers<[1], [0], [0], [1], [0, 0, 1, 1], [], []>} : vector<2x32xf32>, vector<32x128xf32>, vector<2x128xf32> -> vector<2x128xf32>
    %cst_87 = arith.constant dense<0.000000e+00> : vector<2x128xf32>
    %416 = tpu.matmul %374, %47, %cst_87 {dimension_numbers = #tpu.dot_dimension_numbers<[1], [0], [0], [1], [0, 0, 1, 1], [], []>} : vector<2x32xf32>, vector<32x128xf32>, vector<2x128xf32> -> vector<2x128xf32>
    %417 = arith.addf %415, %416 : vector<2x128xf32>
    %418 = vector.broadcast %48 : vector<1x128xf32> to vector<2x128xf32>
    %419 = arith.addf %417, %418 : vector<2x128xf32>
    %420 = arith.negf %419 : vector<2x128xf32>
    %421 = math.exp %420 : vector<2x128xf32>
    %cst_88 = arith.constant 1.000000e+00 : f32
    %422 = vector.broadcast %cst_88 : f32 to vector<2x128xf32>
    %423 = arith.addf %422, %421 : vector<2x128xf32>
    %424 = arith.divf %422, %423 : vector<2x128xf32>
    %425 = math.tanh %419 : vector<2x128xf32>
    %426 = vector.extract_strided_slice %424 {offsets = [0, 0], sizes = [2, 32], strides = [1, 1]} : vector<2x128xf32> to vector<2x32xf32>
    %427 = vector.extract_strided_slice %424 {offsets = [0, 32], sizes = [2, 32], strides = [1, 1]} : vector<2x128xf32> to vector<2x32xf32>
    %428 = vector.extract_strided_slice %425 {offsets = [0, 64], sizes = [2, 32], strides = [1, 1]} : vector<2x128xf32> to vector<2x32xf32>
    %429 = vector.extract_strided_slice %424 {offsets = [0, 96], sizes = [2, 32], strides = [1, 1]} : vector<2x128xf32> to vector<2x32xf32>
    %430 = arith.mulf %427, %372 : vector<2x32xf32>
    %431 = arith.mulf %426, %428 : vector<2x32xf32>
    %432 = arith.addf %430, %431 : vector<2x32xf32>
    %433 = math.tanh %432 : vector<2x32xf32>
    %434 = arith.mulf %429, %433 : vector<2x32xf32>
    %cst_89 = arith.constant dense<0.000000e+00> : vector<2x4xf32>
    %435 = tpu.matmul %434, %49, %cst_89 {dimension_numbers = #tpu.dot_dimension_numbers<[1], [0], [0], [1], [0, 0, 1, 1], [], []>} : vector<2x32xf32>, vector<32x4xf32>, vector<2x4xf32> -> vector<2x4xf32>
    %436 = vector.broadcast %396 : vector<2x1xf32> to vector<2x4xf32>
    %437 = vector.broadcast %50 : vector<1x4xf32> to vector<2x4xf32>
    %438 = arith.mulf %436, %437 : vector<2x4xf32>
    %439 = arith.addf %435, %438 : vector<2x4xf32>
    %440 = vector.broadcast %51 : vector<1x4xf32> to vector<2x4xf32>
    %441 = arith.addf %439, %440 : vector<2x4xf32>
    %442 = arith.negf %441 : vector<2x4xf32>
    %443 = math.exp %442 : vector<2x4xf32>
    %cst_90 = arith.constant 1.000000e+00 : f32
    %444 = vector.broadcast %cst_90 : f32 to vector<2x4xf32>
    %445 = arith.addf %444, %443 : vector<2x4xf32>
    %446 = arith.divf %444, %445 : vector<2x4xf32>
    %447 = math.tanh %441 : vector<2x4xf32>
    %448 = vector.extract_strided_slice %446 {offsets = [0, 0], sizes = [2, 1], strides = [1, 1]} : vector<2x4xf32> to vector<2x1xf32>
    %449 = vector.extract_strided_slice %446 {offsets = [0, 1], sizes = [2, 1], strides = [1, 1]} : vector<2x4xf32> to vector<2x1xf32>
    %450 = vector.extract_strided_slice %447 {offsets = [0, 2], sizes = [2, 1], strides = [1, 1]} : vector<2x4xf32> to vector<2x1xf32>
    %451 = vector.extract_strided_slice %446 {offsets = [0, 3], sizes = [2, 1], strides = [1, 1]} : vector<2x4xf32> to vector<2x1xf32>
    %452 = arith.mulf %449, %394 : vector<2x1xf32>
    %453 = arith.mulf %448, %450 : vector<2x1xf32>
    %454 = arith.addf %452, %453 : vector<2x1xf32>
    %455 = math.tanh %454 : vector<2x1xf32>
    %456 = arith.mulf %451, %455 : vector<2x1xf32>
    %cst_91 = arith.constant dense<0.000000e+00> : vector<2x128xf32>
    %457 = tpu.matmul %414, %44, %cst_91 {dimension_numbers = #tpu.dot_dimension_numbers<[1], [0], [0], [1], [0, 0, 1, 1], [], []>} : vector<2x32xf32>, vector<32x128xf32>, vector<2x128xf32> -> vector<2x128xf32>
    %458 = vector.broadcast %45 : vector<1x128xf32> to vector<2x128xf32>
    %459 = arith.addf %457, %458 : vector<2x128xf32>
    %460 = arith.negf %459 : vector<2x128xf32>
    %461 = math.exp %460 : vector<2x128xf32>
    %cst_92 = arith.constant 1.000000e+00 : f32
    %462 = vector.broadcast %cst_92 : f32 to vector<2x128xf32>
    %463 = arith.addf %462, %461 : vector<2x128xf32>
    %464 = arith.divf %462, %463 : vector<2x128xf32>
    %465 = math.tanh %459 : vector<2x128xf32>
    %466 = vector.extract_strided_slice %464 {offsets = [0, 0], sizes = [2, 32], strides = [1, 1]} : vector<2x128xf32> to vector<2x32xf32>
    %467 = vector.extract_strided_slice %464 {offsets = [0, 32], sizes = [2, 32], strides = [1, 1]} : vector<2x128xf32> to vector<2x32xf32>
    %468 = vector.extract_strided_slice %465 {offsets = [0, 64], sizes = [2, 32], strides = [1, 1]} : vector<2x128xf32> to vector<2x32xf32>
    %469 = vector.extract_strided_slice %464 {offsets = [0, 96], sizes = [2, 32], strides = [1, 1]} : vector<2x128xf32> to vector<2x32xf32>
    %470 = arith.mulf %467, %412 : vector<2x32xf32>
    %471 = arith.mulf %466, %468 : vector<2x32xf32>
    %472 = arith.addf %470, %471 : vector<2x32xf32>
    %473 = math.tanh %472 : vector<2x32xf32>
    %474 = arith.mulf %469, %473 : vector<2x32xf32>
    %cst_93 = arith.constant dense<0.000000e+00> : vector<2x128xf32>
    %475 = tpu.matmul %474, %46, %cst_93 {dimension_numbers = #tpu.dot_dimension_numbers<[1], [0], [0], [1], [0, 0, 1, 1], [], []>} : vector<2x32xf32>, vector<32x128xf32>, vector<2x128xf32> -> vector<2x128xf32>
    %cst_94 = arith.constant dense<0.000000e+00> : vector<2x128xf32>
    %476 = tpu.matmul %434, %47, %cst_94 {dimension_numbers = #tpu.dot_dimension_numbers<[1], [0], [0], [1], [0, 0, 1, 1], [], []>} : vector<2x32xf32>, vector<32x128xf32>, vector<2x128xf32> -> vector<2x128xf32>
    %477 = arith.addf %475, %476 : vector<2x128xf32>
    %478 = vector.broadcast %48 : vector<1x128xf32> to vector<2x128xf32>
    %479 = arith.addf %477, %478 : vector<2x128xf32>
    %480 = arith.negf %479 : vector<2x128xf32>
    %481 = math.exp %480 : vector<2x128xf32>
    %cst_95 = arith.constant 1.000000e+00 : f32
    %482 = vector.broadcast %cst_95 : f32 to vector<2x128xf32>
    %483 = arith.addf %482, %481 : vector<2x128xf32>
    %484 = arith.divf %482, %483 : vector<2x128xf32>
    %485 = math.tanh %479 : vector<2x128xf32>
    %486 = vector.extract_strided_slice %484 {offsets = [0, 0], sizes = [2, 32], strides = [1, 1]} : vector<2x128xf32> to vector<2x32xf32>
    %487 = vector.extract_strided_slice %484 {offsets = [0, 32], sizes = [2, 32], strides = [1, 1]} : vector<2x128xf32> to vector<2x32xf32>
    %488 = vector.extract_strided_slice %485 {offsets = [0, 64], sizes = [2, 32], strides = [1, 1]} : vector<2x128xf32> to vector<2x32xf32>
    %489 = vector.extract_strided_slice %484 {offsets = [0, 96], sizes = [2, 32], strides = [1, 1]} : vector<2x128xf32> to vector<2x32xf32>
    %490 = arith.mulf %487, %432 : vector<2x32xf32>
    %491 = arith.mulf %486, %488 : vector<2x32xf32>
    %492 = arith.addf %490, %491 : vector<2x32xf32>
    %493 = math.tanh %492 : vector<2x32xf32>
    %494 = arith.mulf %489, %493 : vector<2x32xf32>
    %cst_96 = arith.constant dense<0.000000e+00> : vector<2x4xf32>
    %495 = tpu.matmul %494, %49, %cst_96 {dimension_numbers = #tpu.dot_dimension_numbers<[1], [0], [0], [1], [0, 0, 1, 1], [], []>} : vector<2x32xf32>, vector<32x4xf32>, vector<2x4xf32> -> vector<2x4xf32>
    %496 = vector.broadcast %456 : vector<2x1xf32> to vector<2x4xf32>
    %497 = vector.broadcast %50 : vector<1x4xf32> to vector<2x4xf32>
    %498 = arith.mulf %496, %497 : vector<2x4xf32>
    %499 = arith.addf %495, %498 : vector<2x4xf32>
    %500 = vector.broadcast %51 : vector<1x4xf32> to vector<2x4xf32>
    %501 = arith.addf %499, %500 : vector<2x4xf32>
    %502 = arith.negf %501 : vector<2x4xf32>
    %503 = math.exp %502 : vector<2x4xf32>
    %cst_97 = arith.constant 1.000000e+00 : f32
    %504 = vector.broadcast %cst_97 : f32 to vector<2x4xf32>
    %505 = arith.addf %504, %503 : vector<2x4xf32>
    %506 = arith.divf %504, %505 : vector<2x4xf32>
    %507 = math.tanh %501 : vector<2x4xf32>
    %508 = vector.extract_strided_slice %506 {offsets = [0, 0], sizes = [2, 1], strides = [1, 1]} : vector<2x4xf32> to vector<2x1xf32>
    %509 = vector.extract_strided_slice %506 {offsets = [0, 1], sizes = [2, 1], strides = [1, 1]} : vector<2x4xf32> to vector<2x1xf32>
    %510 = vector.extract_strided_slice %507 {offsets = [0, 2], sizes = [2, 1], strides = [1, 1]} : vector<2x4xf32> to vector<2x1xf32>
    %511 = vector.extract_strided_slice %506 {offsets = [0, 3], sizes = [2, 1], strides = [1, 1]} : vector<2x4xf32> to vector<2x1xf32>
    %512 = arith.mulf %509, %454 : vector<2x1xf32>
    %513 = arith.mulf %508, %510 : vector<2x1xf32>
    %514 = arith.addf %512, %513 : vector<2x1xf32>
    %515 = math.tanh %514 : vector<2x1xf32>
    %516 = arith.mulf %511, %515 : vector<2x1xf32>
    %517 = tpu.concatenate %96, %156, %216, %276, %336, %396, %456, %516 in 1 : vector<2x1xf32>, vector<2x1xf32>, vector<2x1xf32>, vector<2x1xf32>, vector<2x1xf32>, vector<2x1xf32>, vector<2x1xf32>, vector<2x1xf32> -> vector<2x8xf32>
    %c0_98 = arith.constant 0 : index
    %c0_99 = arith.constant 0 : index
    %518 = vector.load %arg17[%c0_98, %c0_99] : memref<2x8xf32, #tpu.memory_space<vmem>>, vector<2x8xf32>
    tpu.vector_store %arg17[%c0_98, %c0_99], %517 {strides = array<i32>} : memref<2x8xf32, #tpu.memory_space<vmem>>, vector<2x8xf32>,
    return
  }
}

</mosaic_0001>

<llo_original>
// kernel: tpu_custom_call.1
$region0: #{tpu_custom_call.1}
  #allocation0 [shape = 'u32[]', space=smem, size = 0x4, offset = 0x4, fixed_abs, tag = 'smem constant byte address 0x4 - core index']
  #allocation1 [shape = 'u32[144,128]{1,0:T(1,128)}', space=vmem, size = 0x12000, scoped, tag = 'internal scratch']
  %s0 = inlined_call_operand.vmem [shape: f32[2,8], index: 0, kind: input, shape index: {}]
  %s1 = inlined_call_operand.hbm [shape: f32[2,4], index: 1, kind: input, shape index: {}]
  %s2 = inlined_call_operand.hbm [shape: f32[8,32], index: 2, kind: input, shape index: {}]
  %s3 = inlined_call_operand.hbm [shape: f32[1,32], index: 3, kind: input, shape index: {}]
  %s4 = inlined_call_operand.vmem [shape: f32[32,32], index: 4, kind: input, shape index: {}]
  %s5 = inlined_call_operand.hbm [shape: f32[1,32], index: 5, kind: input, shape index: {}]
  %s6 = inlined_call_operand.vmem [shape: f32[32,8], index: 6, kind: input, shape index: {}]
  %s7 = inlined_call_operand.hbm [shape: f32[1,8], index: 7, kind: input, shape index: {}]
  %s8 = inlined_call_operand.vmem [shape: f32[4,128], index: 8, kind: input, shape index: {}]
  %s9 = inlined_call_operand.vmem [shape: f32[32,128], index: 9, kind: input, shape index: {}]
  %s10 = inlined_call_operand.vmem [shape: f32[1,128], index: 10, kind: input, shape index: {}]
  %s11 = inlined_call_operand.vmem [shape: f32[32,128], index: 11, kind: input, shape index: {}]
  %s12 = inlined_call_operand.hbm [shape: f32[32,128], index: 12, kind: input, shape index: {}]
  %s13 = inlined_call_operand.vmem [shape: f32[1,128], index: 13, kind: input, shape index: {}]
  %s14 = inlined_call_operand.vmem [shape: f32[32,4], index: 14, kind: input, shape index: {}]
  %s15 = inlined_call_operand.vmem [shape: f32[1,4], index: 15, kind: input, shape index: {}]
  %s16 = inlined_call_operand.vmem [shape: f32[1,4], index: 16, kind: input, shape index: {}]
  %s17 = inlined_call_operand.hbm [shape: f32[2,8], index: 17, kind: output, shape index: {0}]
  %s18 = inlined_call_operand.hbm [shape: f32[1,1], index: 18, kind: output, shape index: {1}]
  %19 = xla_tuple %s17, %s18
  %s20 = sld [smem:[#allocation0]]
  $region110: #{tpu_custom_call.1} parent=0
    _
  %s22 = ssub.s32 1, %s20
  %s23 = scalar_select 0, %s22, %s20
  $region1: #{tpu_custom_call.1} parent=0
    #allocation2 [shape = 'u8[1024]{0}', space=vmem, size = 0x400, scoped, tag = 'input window, operand 1, single buffered']
    #allocation3 [shape = 's32[1]{0}', space=sflag, size = 0x4, scoped, tag = 'scoped memory for tpu_custom_call.1']
    #allocation4 [shape = 's32[1]{0}', space=sflag, size = 0x4, scoped, tag = 'scoped memory for tpu_custom_call.1']
    #allocation5 [shape = 'u8[4096]{0}', space=vmem, size = 0x1000, scoped, tag = 'input window, operand 2, single buffered']
    #allocation6 [shape = 's32[1]{0}', space=sflag, size = 0x4, scoped, tag = 'scoped memory for tpu_custom_call.1']
    #allocation7 [shape = 'u8[512]{0}', space=vmem, size = 0x400, scoped, tag = 'input window, operand 3, single buffered']
    #allocation8 [shape = 'u8[512]{0}', space=vmem, size = 0x400, scoped, tag = 'input window, operand 5, single buffered']
    #allocation9 [shape = 's32[1]{0}', space=sflag, size = 0x4, scoped, tag = 'scoped memory for tpu_custom_call.1']
    #allocation10 [shape = 'u8[512]{0}', space=vmem, size = 0x400, scoped, tag = 'input window, operand 7, single buffered']
    #allocation11 [shape = 'u8[16384]{0}', space=vmem, size = 0x4000, scoped, tag = 'input window, operand 12, single buffered']
    #allocation12 [shape = 's32[1]{0}', space=sflag, size = 0x4, scoped, tag = 'scoped memory for tpu_custom_call.1']
    #allocation13 [shape = 'u8[1024]{0}', space=vmem, size = 0x400, scoped, tag = 'output window, operand 0, single buffered']
    #allocation14 [shape = 'u8[512]{0}', space=vmem, size = 0x400, scoped, tag = 'output window, operand 1, single buffered']
    #allocation15 [shape = 's32[1]{0}', space=sflag, size = 0x4, scoped, tag = 'scoped memory for tpu_custom_call.1']
    %24 = vsyncpa [#allocation3], 0
    %25 = vsyncpa [#allocation6], 0
    %26 = vsyncpa [#allocation9], 0
    %27 = vsyncpa [#allocation12], 0
    %28 = vsyncpa [#allocation4], 0
    %29 = vsyncpa [#allocation15], 0
    // Predicated region
    $region2: #{tpu_custom_call.1} parent=1 // pred_check
      _
    $region3: #{tpu_custom_call.1} parent=1 // pred_check_branch
      %31 = sbr.rel (0) target = $region5
    $region4: #{tpu_custom_call.1} parent=1 // pred_region
      _
    $region5: #{tpu_custom_call.1} parent=1 // pred_fallthru
      _
    // Predicated region
    $region6: #{tpu_custom_call.1} parent=1 // pred_check
      _
    $region7: #{tpu_custom_call.1} parent=1 // pred_check_branch
      %33 = sbr.rel (0) target = $region9
    $region8: #{tpu_custom_call.1} parent=1 // pred_region
      %s35 = ssub.s32 32, 32
      %36 = vsyncadd [#allocation3], %s35
      %s38 = sshll.u32 [#allocation2], 4
      %s39 = int_to_ptr.vmem [resolvable:$true] %s38
      %41 = dma.hbm_to_vmem [thread:$0]  %s1, 32, %s39, [#allocation3]
    $region9: #{tpu_custom_call.1} parent=1 // pred_fallthru
      _
    // Predicated region
    $region10: #{tpu_custom_call.1} parent=1 // pred_check
      _
    $region11: #{tpu_custom_call.1} parent=1 // pred_check_branch
      %43 = sbr.rel (0) target = $region13
    $region12: #{tpu_custom_call.1} parent=1 // pred_region
      %s45 = ssub.s32 128, 128
      %46 = vsyncadd [#allocation6], %s45
      %s48 = sshll.u32 [#allocation5], 4
      %s49 = int_to_ptr.vmem [resolvable:$true] %s48
      %51 = dma.hbm_to_vmem [thread:$0]  %s2, 128, %s49, [#allocation6]
    $region13: #{tpu_custom_call.1} parent=1 // pred_fallthru
      _
    // Predicated region
    $region14: #{tpu_custom_call.1} parent=1 // pred_check
      _
    $region15: #{tpu_custom_call.1} parent=1 // pred_check_branch
      %53 = sbr.rel (0) target = $region17
    $region16: #{tpu_custom_call.1} parent=1 // pred_region
      %s55 = ssub.s32 16, 16
      %56 = vsyncadd [#allocation6], %s55
      %s58 = sshll.u32 [#allocation7], 4
      %s59 = int_to_ptr.vmem [resolvable:$true] %s58
      %61 = dma.hbm_to_vmem [thread:$0]  %s3, 16, %s59, [#allocation6]
    $region17: #{tpu_custom_call.1} parent=1 // pred_fallthru
      _
    // Predicated region
    $region18: #{tpu_custom_call.1} parent=1 // pred_check
      _
    $region19: #{tpu_custom_call.1} parent=1 // pred_check_branch
      %63 = sbr.rel (0) target = $region21
    $region20: #{tpu_custom_call.1} parent=1 // pred_region
      _
    $region21: #{tpu_custom_call.1} parent=1 // pred_fallthru
      _
    // Predicated region
    $region22: #{tpu_custom_call.1} parent=1 // pred_check
      _
    $region23: #{tpu_custom_call.1} parent=1 // pred_check_branch
      %65 = sbr.rel (0) target = $region25
    $region24: #{tpu_custom_call.1} parent=1 // pred_region
      %s67 = ssub.s32 16, 16
      %68 = vsyncadd [#allocation9], %s67
      %s70 = sshll.u32 [#allocation8], 4
      %s71 = int_to_ptr.vmem [resolvable:$true] %s70
      %73 = dma.hbm_to_vmem [thread:$0]  %s5, 16, %s71, [#allocation9]
    $region25: #{tpu_custom_call.1} parent=1 // pred_fallthru
      _
    // Predicated region
    $region26: #{tpu_custom_call.1} parent=1 // pred_check
      _
    $region27: #{tpu_custom_call.1} parent=1 // pred_check_branch
      %75 = sbr.rel (0) target = $region29
    $region28: #{tpu_custom_call.1} parent=1 // pred_region
      _
    $region29: #{tpu_custom_call.1} parent=1 // pred_fallthru
      _
    // Predicated region
    $region30: #{tpu_custom_call.1} parent=1 // pred_check
      _
    $region31: #{tpu_custom_call.1} parent=1 // pred_check_branch
      %77 = sbr.rel (0) target = $region33
    $region32: #{tpu_custom_call.1} parent=1 // pred_region
      %s79 = ssub.s32 16, 16
      %80 = vsyncadd [#allocation9], %s79
      %s82 = sshll.u32 [#allocation10], 4
      %s83 = int_to_ptr.vmem [resolvable:$true] %s82
      %85 = dma.hbm_to_vmem [thread:$0]  %s7, 16, %s83, [#allocation9]
    $region33: #{tpu_custom_call.1} parent=1 // pred_fallthru
      _
    // Predicated region
    $region34: #{tpu_custom_call.1} parent=1 // pred_check
      _
    $region35: #{tpu_custom_call.1} parent=1 // pred_check_branch
      %87 = sbr.rel (0) target = $region37
    $region36: #{tpu_custom_call.1} parent=1 // pred_region
      _
    $region37: #{tpu_custom_call.1} parent=1 // pred_fallthru
      _
    // Predicated region
    $region38: #{tpu_custom_call.1} parent=1 // pred_check
      _
    $region39: #{tpu_custom_call.1} parent=1 // pred_check_branch
      %89 = sbr.rel (0) target = $region41
    $region40: #{tpu_custom_call.1} parent=1 // pred_region
      _
    $region41: #{tpu_custom_call.1} parent=1 // pred_fallthru
      _
    // Predicated region
    $region42: #{tpu_custom_call.1} parent=1 // pred_check
      _
    $region43: #{tpu_custom_call.1} parent=1 // pred_check_branch
      %91 = sbr.rel (0) target = $region45
    $region44: #{tpu_custom_call.1} parent=1 // pred_region
      _
    $region45: #{tpu_custom_call.1} parent=1 // pred_fallthru
      _
    // Predicated region
    $region46: #{tpu_custom_call.1} parent=1 // pred_check
      _
    $region47: #{tpu_custom_call.1} parent=1 // pred_check_branch
      %93 = sbr.rel (0) target = $region49
    $region48: #{tpu_custom_call.1} parent=1 // pred_region
      _
    $region49: #{tpu_custom_call.1} parent=1 // pred_fallthru
      _
    // Predicated region
    $region50: #{tpu_custom_call.1} parent=1 // pred_check
      _
    $region51: #{tpu_custom_call.1} parent=1 // pred_check_branch
      %95 = sbr.rel (0) target = $region53
    $region52: #{tpu_custom_call.1} parent=1 // pred_region
      %s97 = ssub.s32 512, 512
      %98 = vsyncadd [#allocation12], %s97
      %s99 = sshll.u32 [#allocation11], 4
      %s100 = int_to_ptr.vmem [resolvable:$true] %s99
      %105 = dma.hbm_to_vmem [thread:$0]  %s12, 512, %s100, [#allocation12], 128, 128, 8
    $region53: #{tpu_custom_call.1} parent=1 // pred_fallthru
      _
    // Predicated region
    $region54: #{tpu_custom_call.1} parent=1 // pred_check
      _
    $region55: #{tpu_custom_call.1} parent=1 // pred_check_branch
      %107 = sbr.rel (0) target = $region57
    $region56: #{tpu_custom_call.1} parent=1 // pred_region
      _
    $region57: #{tpu_custom_call.1} parent=1 // pred_fallthru
      _
    // Predicated region
    $region58: #{tpu_custom_call.1} parent=1 // pred_check
      _
    $region59: #{tpu_custom_call.1} parent=1 // pred_check_branch
      %109 = sbr.rel (0) target = $region61
    $region60: #{tpu_custom_call.1} parent=1 // pred_region
      _
    $region61: #{tpu_custom_call.1} parent=1 // pred_fallthru
      _
    // Predicated region
    $region62: #{tpu_custom_call.1} parent=1 // pred_check
      _
    $region63: #{tpu_custom_call.1} parent=1 // pred_check_branch
      %111 = sbr.rel (0) target = $region65
    $region64: #{tpu_custom_call.1} parent=1 // pred_region
      _
    $region65: #{tpu_custom_call.1} parent=1 // pred_fallthru
      _
    // Predicated region
    $region66: #{tpu_custom_call.1} parent=1 // pred_check
      _
    $region67: #{tpu_custom_call.1} parent=1 // pred_check_branch
      %113 = sbr.rel (0) target = $region69
    $region68: #{tpu_custom_call.1} parent=1 // pred_region
      _
    $region69: #{tpu_custom_call.1} parent=1 // pred_fallthru
      _
    // Predicated region
    $region70: #{tpu_custom_call.1} parent=1 // pred_check
      _
    $region71: #{tpu_custom_call.1} parent=1 // pred_check_branch
      %115 = sbr.rel (0) target = $region73
    $region72: #{tpu_custom_call.1} parent=1 // pred_region
      %116 = dma.done [#allocation3], 32
    $region73: #{tpu_custom_call.1} parent=1 // pred_fallthru
      _
    // Predicated region
    $region74: #{tpu_custom_call.1} parent=1 // pred_check
      _
    $region75: #{tpu_custom_call.1} parent=1 // pred_check_branch
      %118 = sbr.rel (0) target = $region77
    $region76: #{tpu_custom_call.1} parent=1 // pred_region
      %119 = dma.done [#allocation6], 128
    $region77: #{tpu_custom_call.1} parent=1 // pred_fallthru
      _
    // Predicated region
    $region78: #{tpu_custom_call.1} parent=1 // pred_check
      _
    $region79: #{tpu_custom_call.1} parent=1 // pred_check_branch
      %121 = sbr.rel (0) target = $region81
    $region80: #{tpu_custom_call.1} parent=1 // pred_region
      %122 = dma.done [#allocation6], 16
    $region81: #{tpu_custom_call.1} parent=1 // pred_fallthru
      _
    // Predicated region
    $region82: #{tpu_custom_call.1} parent=1 // pred_check
      _
    $region83: #{tpu_custom_call.1} parent=1 // pred_check_branch
      %124 = sbr.rel (0) target = $region85
    $region84: #{tpu_custom_call.1} parent=1 // pred_region
      %125 = dma.done [#allocation9], 16
    $region85: #{tpu_custom_call.1} parent=1 // pred_fallthru
      _
    // Predicated region
    $region86: #{tpu_custom_call.1} parent=1 // pred_check
      _
    $region87: #{tpu_custom_call.1} parent=1 // pred_check_branch
      %127 = sbr.rel (0) target = $region89
    $region88: #{tpu_custom_call.1} parent=1 // pred_region
      %128 = dma.done [#allocation9], 16
    $region89: #{tpu_custom_call.1} parent=1 // pred_fallthru
      _
    // Predicated region
    $region90: #{tpu_custom_call.1} parent=1 // pred_check
      _
    $region91: #{tpu_custom_call.1} parent=1 // pred_check_branch
      %130 = sbr.rel (0) target = $region93
    $region92: #{tpu_custom_call.1} parent=1 // pred_region
      %131 = dma.done [#allocation12], 512
    $region93: #{tpu_custom_call.1} parent=1 // pred_fallthru
      _
    %v132 = vld [vmem:[%s0] sm:$0x3]
    %v133 = vld [vmem:[#allocation5] sm:$0xff]
    %v134 = vld [vmem:[#allocation7] sm:$0x1]
    %v136 = vlaneseq
    %v137 = vshrl.u32 %v136, 7
    %v138 = vsub.s32 0, %v137
    %v139 = vrot.slane %v134, %v138
    %vm141 = vcmask 64512
    %v143 = vsel %vm141, %v132, 0
    %145 = vmatprep.subr.mxu0 0.0
    %146 = vmatpush1.msra.mxu0 %v133
    %147 = vmatprep.subr.mxu0 0.0
    %148 = vmatpush1.msra.mxu0 0.0
    %149 = vmatprep.subr.mxu0 0.0
    %150 = vmatpush1.msra.mxu0 0.0
    %151 = vmatprep.subr.mxu0 0.0
    %152 = vmatpush1.msra.mxu0 0.0
    %153 = vmatprep.subr.mxu0 0.0
    %154 = vmatpush1.msra.mxu0 0.0
    %155 = vmatprep.subr.mxu0 0.0
    %156 = vmatpush1.msra.mxu0 0.0
    %157 = vmatprep.subr.mxu0 0.0
    %158 = vmatpush1.msra.mxu0 0.0
    %159 = vmatprep.subr.mxu0 0.0
    %160 = vmatpush1.msra.mxu0 0.0
    %161 = vmatprep.subr.mxu0 0.0
    %162 = vmatpush1.msra.mxu0 0.0
    %163 = vmatprep.subr.mxu0 0.0
    %164 = vmatpush1.msra.mxu0 0.0
    %165 = vmatprep.subr.mxu0 0.0
    %166 = vmatpush1.msra.mxu0 0.0
    %167 = vmatprep.subr.mxu0 0.0
    %168 = vmatpush1.msra.mxu0 0.0
    %169 = vmatprep.subr.mxu0 0.0
    %170 = vmatpush1.msra.mxu0 0.0
    %171 = vmatprep.subr.mxu0 0.0
    %172 = vmatpush1.msra.mxu0 0.0
    %173 = vmatprep.subr.mxu0 0.0
    %174 = vmatpush1.msra.mxu0 0.0
    %175 = vmatprep.subr.mxu0 0.0
    %176 = vmatpush1.msra.mxu0 0.0
    %177 = vmatprep.subr.mxu0 0.0
    %178 = vmatpush1.msra.mxu0 0.0
    %179 = vmatprep.subr.mxu0 0.0
    %180 = vmatpush1.msra.mxu0 0.0
    %181 = vmatprep.subr.mxu0 0.0
    %182 = vmatpush1.msra.mxu0 0.0
    %183 = vmatprep.subr.mxu0 0.0
    %184 = vmatpush1.msra.mxu0 0.0
    %185 = vmatprep.subr.mxu0 0.0
    %186 = vmatpush1.msra.mxu0 0.0
    %187 = vmatprep.subr.mxu0 0.0
    %188 = vmatpush1.msra.mxu0 0.0
    %189 = vmatprep.subr.mxu0 0.0
    %190 = vmatpush1.msra.mxu0 0.0
    %191 = vmatprep.subr.mxu0 0.0
    %192 = vmatpush1.msra.mxu0 0.0
    %193 = vmatprep.subr.mxu0 0.0
    %194 = vmatpush1.msra.mxu0 0.0
    %195 = vmatprep.subr.mxu0 0.0
    %196 = vmatpush1.msra.mxu0 0.0
    %197 = vmatprep.subr.mxu0 0.0
    %198 = vmatpush1.msra.mxu0 0.0
    %199 = vmatprep.subr.mxu0 0.0
    %200 = vmatpush1.msra.mxu0 0.0
    %201 = vmatprep.subr.mxu0 0.0
    %202 = vmatpush1.msra.mxu0 0.0
    %203 = vmatprep.subr.mxu0 0.0
    %204 = vmatpush1.msra.mxu0 0.0
    %205 = vmatprep.subr.mxu0 0.0
    %206 = vmatpush1.msra.mxu0 0.0
    %207 = vmatprep.subr.mxu0 0.0
    %208 = vmatpush1.msra.mxu0 0.0
    %209 = vmatprep.mubr.f32.mxu0 0.0
    %210 = vmatmul.mubr.f32.gmra.mrb[0].mxu0 %v143
    %v211 = vpop.f32.mrb[0].mxu0
    %v212 = vadd.f32 %v139, %v211
    %v213 = vpop.f32.mrb[0].mxu0
    %214 = vdwg.mxu0
    %v215 = vmul.f32 %v212, 0.01
    %v216 = vmax.f32 %v212, %v215
    %v217 = vld [vmem:[%s4] sm:$0xff]
    %v218 = vld [vmem:[%s4 + $0x8] sm:$0xff]
    %v219 = vld [vmem:[%s4 + $0x10] sm:$0xff]
    %v220 = vld [vmem:[%s4 + $0x18] sm:$0xff]
    %v221 = vld [vmem:[#allocation8] sm:$0x1]
    %v223 = vlaneseq
    %v224 = vshrl.u32 %v223, 7
    %v225 = vsub.s32 0, %v224
    %v226 = vrot.slane %v221, %v225
    %vm228 = vcmask 261120
    %v230 = vsel %vm228, %v216, 0
    %232 = vmatprep.subr.mxu0 0.0
    %233 = vmatpush1.msra.mxu0 %v217
    %234 = vmatprep.subr.mxu0 0.0
    %235 = vmatpush1.msra.mxu0 %v218
    %236 = vmatprep.subr.mxu0 0.0
    %237 = vmatpush1.msra.mxu0 %v219
    %238 = vmatprep.subr.mxu0 0.0
    %239 = vmatpush1.msra.mxu0 %v220
    %240 = vmatprep.subr.mxu0 0.0
    %241 = vmatpush1.msra.mxu0 0.0
    %242 = vmatprep.subr.mxu0 0.0
    %243 = vmatpush1.msra.mxu0 0.0
    %244 = vmatprep.subr.mxu0 0.0
    %245 = vmatpush1.msra.mxu0 0.0
    %246 = vmatprep.subr.mxu0 0.0
    %247 = vmatpush1.msra.mxu0 0.0
    %248 = vmatprep.subr.mxu0 0.0
    %249 = vmatpush1.msra.mxu0 0.0
    %250 = vmatprep.subr.mxu0 0.0
    %251 = vmatpush1.msra.mxu0 0.0
    %252 = vmatprep.subr.mxu0 0.0
    %253 = vmatpush1.msra.mxu0 0.0
    %254 = vmatprep.subr.mxu0 0.0
    %255 = vmatpush1.msra.mxu0 0.0
    %256 = vmatprep.subr.mxu0 0.0
    %257 = vmatpush1.msra.mxu0 0.0
    %258 = vmatprep.subr.mxu0 0.0
    %259 = vmatpush1.msra.mxu0 0.0
    %260 = vmatprep.subr.mxu0 0.0
    %261 = vmatpush1.msra.mxu0 0.0
    %262 = vmatprep.subr.mxu0 0.0
    %263 = vmatpush1.msra.mxu0 0.0
    %264 = vmatprep.subr.mxu0 0.0
    %265 = vmatpush1.msra.mxu0 0.0
    %266 = vmatprep.subr.mxu0 0.0
    %267 = vmatpush1.msra.mxu0 0.0
    %268 = vmatprep.subr.mxu0 0.0
    %269 = vmatpush1.msra.mxu0 0.0
    %270 = vmatprep.subr.mxu0 0.0
    %271 = vmatpush1.msra.mxu0 0.0
    %272 = vmatprep.subr.mxu0 0.0
    %273 = vmatpush1.msra.mxu0 0.0
    %274 = vmatprep.subr.mxu0 0.0
    %275 = vmatpush1.msra.mxu0 0.0
    %276 = vmatprep.subr.mxu0 0.0
    %277 = vmatpush1.msra.mxu0 0.0
    %278 = vmatprep.subr.mxu0 0.0
    %279 = vmatpush1.msra.mxu0 0.0
    %280 = vmatprep.subr.mxu0 0.0
    %281 = vmatpush1.msra.mxu0 0.0
    %282 = vmatprep.subr.mxu0 0.0
    %283 = vmatpush1.msra.mxu0 0.0
    %284 = vmatprep.subr.mxu0 0.0
    %285 = vmatpush1.msra.mxu0 0.0
    %286 = vmatprep.subr.mxu0 0.0
    %287 = vmatpush1.msra.mxu0 0.0
    %288 = vmatprep.subr.mxu0 0.0
    %289 = vmatpush1.msra.mxu0 0.0
    %290 = vmatprep.subr.mxu0 0.0
    %291 = vmatpush1.msra.mxu0 0.0
    %292 = vmatprep.subr.mxu0 0.0
    %293 = vmatpush1.msra.mxu0 0.0
    %294 = vmatprep.subr.mxu0 0.0
    %295 = vmatpush1.msra.mxu0 0.0
    %296 = vmatprep.mubr.f32.mxu0 0.0
    %297 = vmatmul.mubr.f32.gmra.mrb[0].mxu0 %v230
    %v298 = vpop.f32.mrb[0].mxu0
    %v299 = vadd.f32 %v226, %v298
    %v300 = vpop.f32.mrb[0].mxu0
    %301 = vdwg.mxu0
    %v302 = vmul.f32 %v299, 0.01
    %v303 = vmax.f32 %v299, %v302
    %v304 = vld [vmem:[%s6] sm:$0xff]
    %v305 = vld [vmem:[%s6 + $0x8] sm:$0xff]
    %v306 = vld [vmem:[%s6 + $0x10] sm:$0xff]
    %v307 = vld [vmem:[%s6 + $0x18] sm:$0xff]
    %v308 = vld [vmem:[#allocation10] sm:$0x1]
    %v310 = vlaneseq
    %v311 = vshrl.u32 %v310, 7
    %v312 = vsub.s32 0, %v311
    %v313 = vrot.slane %v308, %v312
    %v316 = vsel %vm228, %v303, 0
    %318 = vmatprep.subr.mxu0 0.0
    %319 = vmatpush1.msra.mxu0 %v304
    %320 = vmatprep.subr.mxu0 0.0
    %321 = vmatpush1.msra.mxu0 %v305
    %322 = vmatprep.subr.mxu0 0.0
    %323 = vmatpush1.msra.mxu0 %v306
    %324 = vmatprep.subr.mxu0 0.0
    %325 = vmatpush1.msra.mxu0 %v307
    %326 = vmatprep.subr.mxu0 0.0
    %327 = vmatpush1.msra.mxu0 0.0
    %328 = vmatprep.subr.mxu0 0.0
    %329 = vmatpush1.msra.mxu0 0.0
    %330 = vmatprep.subr.mxu0 0.0
    %331 = vmatpush1.msra.mxu0 0.0
    %332 = vmatprep.subr.mxu0 0.0
    %333 = vmatpush1.msra.mxu0 0.0
    %334 = vmatprep.subr.mxu0 0.0
    %335 = vmatpush1.msra.mxu0 0.0
    %336 = vmatprep.subr.mxu0 0.0
    %337 = vmatpush1.msra.mxu0 0.0
    %338 = vmatprep.subr.mxu0 0.0
    %339 = vmatpush1.msra.mxu0 0.0
    %340 = vmatprep.subr.mxu0 0.0
    %341 = vmatpush1.msra.mxu0 0.0
    %342 = vmatprep.subr.mxu0 0.0
    %343 = vmatpush1.msra.mxu0 0.0
    %344 = vmatprep.subr.mxu0 0.0
    %345 = vmatpush1.msra.mxu0 0.0
    %346 = vmatprep.subr.mxu0 0.0
    %347 = vmatpush1.msra.mxu0 0.0
    %348 = vmatprep.subr.mxu0 0.0
    %349 = vmatpush1.msra.mxu0 0.0
    %350 = vmatprep.subr.mxu0 0.0
    %351 = vmatpush1.msra.mxu0 0.0
    %352 = vmatprep.subr.mxu0 0.0
    %353 = vmatpush1.msra.mxu0 0.0
    %354 = vmatprep.subr.mxu0 0.0
    %355 = vmatpush1.msra.mxu0 0.0
    %356 = vmatprep.subr.mxu0 0.0
    %357 = vmatpush1.msra.mxu0 0.0
    %358 = vmatprep.subr.mxu0 0.0
    %359 = vmatpush1.msra.mxu0 0.0
    %360 = vmatprep.subr.mxu0 0.0
    %361 = vmatpush1.msra.mxu0 0.0
    %362 = vmatprep.subr.mxu0 0.0
    %363 = vmatpush1.msra.mxu0 0.0
    %364 = vmatprep.subr.mxu0 0.0
    %365 = vmatpush1.msra.mxu0 0.0
    %366 = vmatprep.subr.mxu0 0.0
    %367 = vmatpush1.msra.mxu0 0.0
    %368 = vmatprep.subr.mxu0 0.0
    %369 = vmatpush1.msra.mxu0 0.0
    %370 = vmatprep.subr.mxu0 0.0
    %371 = vmatpush1.msra.mxu0 0.0
    %372 = vmatprep.subr.mxu0 0.0
    %373 = vmatpush1.msra.mxu0 0.0
    %374 = vmatprep.subr.mxu0 0.0
    %375 = vmatpush1.msra.mxu0 0.0
    %376 = vmatprep.subr.mxu0 0.0
    %377 = vmatpush1.msra.mxu0 0.0
    %378 = vmatprep.subr.mxu0 0.0
    %379 = vmatpush1.msra.mxu0 0.0
    %380 = vmatprep.subr.mxu0 0.0
    %381 = vmatpush1.msra.mxu0 0.0
    %382 = vmatprep.mubr.f32.mxu0 0.0
    %383 = vmatmul.mubr.f32.gmra.mrb[0].mxu0 %v316
    %v384 = vpop.f32.mrb[0].mxu0
    %v385 = vadd.f32 %v313, %v384
    %v386 = vpop.f32.mrb[0].mxu0
    %387 = vdwg.mxu0
    %v388 = vmul.f32 %v385, 0.5
    %v389 = vmul.f32 %v388, 1.442695
    %v390 = vpow.pop %v389
    %v391 = vmul.f32 %v390, %v390
    %v392 = vmul.f32 %v385, %v385
    %394 = vrot.lane.b32.xlu0 %v392, 124
    %v395 = vpop.permute.xlu0 %394
    %v397 = vadd.f32 %v391, %v395
    %v398 = vsub.f32 %v397, 1.0
    %v399 = vsub.f32 %v398, %v385
    %vm400 = vcmask 25600
    %v401 = vsel %vm400, %v399, 0.0
    %402 = vadd.xlane.f32.xlu0 %v401
    %v403 = vpop.xlane.xlu0 %402
    %v404 = vrot.slane %v403, 4
    %v405 = vadd.f32 %v403, %v404
    %v406 = vrot.slane %v405, 2
    %v407 = vadd.f32 %v405, %v406
    %v408 = vrot.slane %v407, 1
    %v409 = vadd.f32 %v407, %v408
    %s410 = vtos %v409
    %s411 = smul.f32 %s410, 0.5
    %v412 = vstv %s411
    %vm413 = vcmask 0
    %414 = vst.msk [vmem:[#allocation14] sm:$0x1] %vm413, %v412
    %v415 = vld [vmem:[#allocation2] sm:$0x3]
    %v416 = vmul.f32 %v390, %v415
    %418 = vrot.lane.b32.xlu0 %v416, 4
    %v419 = vpop.permute.xlu0 %418
    %v421 = vadd.f32 %v385, %v419
    %v422 = vld [vmem:[%s8] sm:$0xf]
    %v423 = vld [vmem:[%s9] sm:$0xff]
    %v424 = vld [vmem:[%s9 + $0x8] sm:$0xff]
    %v425 = vld [vmem:[%s9 + $0x10] sm:$0xff]
    %v426 = vld [vmem:[%s9 + $0x18] sm:$0xff]
    %v427 = vld [vmem:[%s10] sm:$0x1]
    %v428 = vld [vmem:[%s11] sm:$0xff]
    %v429 = vld [vmem:[%s11 + $0x8] sm:$0xff]
    %v430 = vld [vmem:[%s11 + $0x10] sm:$0xff]
    %v431 = vld [vmem:[%s11 + $0x18] sm:$0xff]
    %v432 = vld [vmem:[#allocation11] sm:$0xff]
    %v433 = vld [vmem:[#allocation11 + $0x8] sm:$0xff]
    %v434 = vld [vmem:[#allocation11 + $0x10] sm:$0xff]
    %v435 = vld [vmem:[#allocation11 + $0x18] sm:$0xff]
    %v436 = vld [vmem:[%s13] sm:$0x1]
    %v437 = vld [vmem:[%s14] sm:$0xff]
    %v438 = vld [vmem:[%s14 + $0x8] sm:$0xff]
    %v439 = vld [vmem:[%s14 + $0x10] sm:$0xff]
    %v440 = vld [vmem:[%s14 + $0x18] sm:$0xff]
    %v441 = vld [vmem:[%s15] sm:$0x1]
    %v442 = vld [vmem:[%s16] sm:$0x1]
    %v444 = vlaneseq
    %v445 = vshrl.u32 %v444, 7
    %v446 = vsub.s32 0, %v445
    %v447 = vrot.slane %v427, %v446
    %450 = vrot.lane.b32.xlu0 %v421, 124
    %v451 = vpop.permute.xlu0 %450
    %vm452 = vcmask 31744
    %v453 = vsel %vm452, %v451, 0
    %vm455 = vcmask 1043456
    %v457 = vsel %vm455, %v422, 0
    %459 = vmatprep.subr.mxu0 0.0
    %460 = vmatpush1.msra.mxu0 %v457
    %461 = vmatprep.subr.mxu0 0.0
    %462 = vmatpush1.msra.mxu0 0.0
    %463 = vmatprep.subr.mxu0 0.0
    %464 = vmatpush1.msra.mxu0 0.0
    %465 = vmatprep.subr.mxu0 0.0
    %466 = vmatpush1.msra.mxu0 0.0
    %467 = vmatprep.subr.mxu0 0.0
    %468 = vmatpush1.msra.mxu0 0.0
    %469 = vmatprep.subr.mxu0 0.0
    %470 = vmatpush1.msra.mxu0 0.0
    %471 = vmatprep.subr.mxu0 0.0
    %472 = vmatpush1.msra.mxu0 0.0
    %473 = vmatprep.subr.mxu0 0.0
    %474 = vmatpush1.msra.mxu0 0.0
    %475 = vmatprep.subr.mxu0 0.0
    %476 = vmatpush1.msra.mxu0 0.0
    %477 = vmatprep.subr.mxu0 0.0
    %478 = vmatpush1.msra.mxu0 0.0
    %479 = vmatprep.subr.mxu0 0.0
    %480 = vmatpush1.msra.mxu0 0.0
    %481 = vmatprep.subr.mxu0 0.0
    %482 = vmatpush1.msra.mxu0 0.0
    %483 = vmatprep.subr.mxu0 0.0
    %484 = vmatpush1.msra.mxu0 0.0
    %485 = vmatprep.subr.mxu0 0.0
    %486 = vmatpush1.msra.mxu0 0.0
    %487 = vmatprep.subr.mxu0 0.0
    %488 = vmatpush1.msra.mxu0 0.0
    %489 = vmatprep.subr.mxu0 0.0
    %490 = vmatpush1.msra.mxu0 0.0
    %491 = vmatprep.subr.mxu0 0.0
    %492 = vmatpush1.msra.mxu0 0.0
    %493 = vmatprep.subr.mxu0 0.0
    %494 = vmatpush1.msra.mxu0 0.0
    %495 = vmatprep.subr.mxu0 0.0
    %496 = vmatpush1.msra.mxu0 0.0
    %497 = vmatprep.subr.mxu0 0.0
    %498 = vmatpush1.msra.mxu0 0.0
    %499 = vmatprep.subr.mxu0 0.0
    %500 = vmatpush1.msra.mxu0 0.0
    %501 = vmatprep.subr.mxu0 0.0
    %502 = vmatpush1.msra.mxu0 0.0
    %503 = vmatprep.subr.mxu0 0.0
    %504 = vmatpush1.msra.mxu0 0.0
    %505 = vmatprep.subr.mxu0 0.0
    %506 = vmatpush1.msra.mxu0 0.0
    %507 = vmatprep.subr.mxu0 0.0
    %508 = vmatpush1.msra.mxu0 0.0
    %509 = vmatprep.subr.mxu0 0.0
    %510 = vmatpush1.msra.mxu0 0.0
    %511 = vmatprep.subr.mxu0 0.0
    %512 = vmatpush1.msra.mxu0 0.0
    %513 = vmatprep.subr.mxu0 0.0
    %514 = vmatpush1.msra.mxu0 0.0
    %515 = vmatprep.subr.mxu0 0.0
    %516 = vmatpush1.msra.mxu0 0.0
    %517 = vmatprep.subr.mxu0 0.0
    %518 = vmatpush1.msra.mxu0 0.0
    %519 = vmatprep.subr.mxu0 0.0
    %520 = vmatpush1.msra.mxu0 0.0
    %521 = vmatprep.subr.mxu0 0.0
    %522 = vmatpush1.msra.mxu0 0.0
    %523 = vmatprep.mubr.f32.mxu0 0.0
    %524 = vmatmul.mubr.f32.gmra.mrb[0].mxu0 %v453
    %v525 = vpop.f32.mrb[0].mxu0
    %v526 = vadd.f32 %v447, %v525
    %v527 = vpop.f32.mrb[0].mxu0
    %528 = vdwg.mxu0
    %v529 = vxor.u32 %v526, 2147483648
    %v530 = vmul.f32 %v529, 1.442695
    %v531 = vpow.pop %v530
    %v532 = vadd.f32 %v531, 1.0
    %v533 = vrcp.pop %v532
    %v534 = vmul.f32 1.0, %v533
    %v535 = vtanh.pop %v526
    %537 = vrot.lane.b32.xlu0 %v535, 64
    %v538 = vpop.permute.xlu0 %537
    %v540 = vmul.f32 %v534, %v538
    %v541 = vtanh.pop %v540
    %543 = vrot.lane.b32.xlu0 %v541, 96
    %v544 = vpop.permute.xlu0 %543
    %v546 = vmul.f32 %v534, %v544
    %v548 = vlaneseq
    %v549 = vshrl.u32 %v548, 7
    %v550 = vsub.s32 0, %v549
    %v551 = vrot.slane %v436, %v550
    %554 = vrot.lane.b32.xlu0 %v546, 32
    %v555 = vpop.permute.xlu0 %554
    %v556 = vsel %vm228, %v555, 0
    %558 = vmatprep.subr.mxu0 0.0
    %559 = vmatpush1.msra.mxu0 %v428
    %560 = vmatprep.subr.mxu0 0.0
    %561 = vmatpush1.msra.mxu0 %v429
    %562 = vmatprep.subr.mxu0 0.0
    %563 = vmatpush1.msra.mxu0 %v430
    %564 = vmatprep.subr.mxu0 0.0
    %565 = vmatpush1.msra.mxu0 %v431
    %566 = vmatprep.subr.mxu0 0.0
    %567 = vmatpush1.msra.mxu0 0.0
    %568 = vmatprep.subr.mxu0 0.0
    %569 = vmatpush1.msra.mxu0 0.0
    %570 = vmatprep.subr.mxu0 0.0
    %571 = vmatpush1.msra.mxu0 0.0
    %572 = vmatprep.subr.mxu0 0.0
    %573 = vmatpush1.msra.mxu0 0.0
    %574 = vmatprep.subr.mxu0 0.0
    %575 = vmatpush1.msra.mxu0 0.0
    %576 = vmatprep.subr.mxu0 0.0
    %577 = vmatpush1.msra.mxu0 0.0
    %578 = vmatprep.subr.mxu0 0.0
    %579 = vmatpush1.msra.mxu0 0.0
    %580 = vmatprep.subr.mxu0 0.0
    %581 = vmatpush1.msra.mxu0 0.0
    %582 = vmatprep.subr.mxu0 0.0
    %583 = vmatpush1.msra.mxu0 0.0
    %584 = vmatprep.subr.mxu0 0.0
    %585 = vmatpush1.msra.mxu0 0.0
    %586 = vmatprep.subr.mxu0 0.0
    %587 = vmatpush1.msra.mxu0 0.0
    %588 = vmatprep.subr.mxu0 0.0
    %589 = vmatpush1.msra.mxu0 0.0
    %590 = vmatprep.subr.mxu0 0.0
    %591 = vmatpush1.msra.mxu0 0.0
    %592 = vmatprep.subr.mxu0 0.0
    %593 = vmatpush1.msra.mxu0 0.0
    %594 = vmatprep.subr.mxu0 0.0
    %595 = vmatpush1.msra.mxu0 0.0
    %596 = vmatprep.subr.mxu0 0.0
    %597 = vmatpush1.msra.mxu0 0.0
    %598 = vmatprep.subr.mxu0 0.0
    %599 = vmatpush1.msra.mxu0 0.0
    %600 = vmatprep.subr.mxu0 0.0
    %601 = vmatpush1.msra.mxu0 0.0
    %602 = vmatprep.subr.mxu0 0.0
    %603 = vmatpush1.msra.mxu0 0.0
    %604 = vmatprep.subr.mxu0 0.0
    %605 = vmatpush1.msra.mxu0 0.0
    %606 = vmatprep.subr.mxu0 0.0
    %607 = vmatpush1.msra.mxu0 0.0
    %608 = vmatprep.subr.mxu0 0.0
    %609 = vmatpush1.msra.mxu0 0.0
    %610 = vmatprep.subr.mxu0 0.0
    %611 = vmatpush1.msra.mxu0 0.0
    %612 = vmatprep.subr.mxu0 0.0
    %613 = vmatpush1.msra.mxu0 0.0
    %614 = vmatprep.subr.mxu0 0.0
    %615 = vmatpush1.msra.mxu0 0.0
    %616 = vmatprep.subr.mxu0 0.0
    %617 = vmatpush1.msra.mxu0 0.0
    %618 = vmatprep.subr.mxu0 0.0
    %619 = vmatpush1.msra.mxu0 0.0
    %620 = vmatprep.subr.mxu0 0.0
    %621 = vmatpush1.msra.mxu0 0.0
    %622 = vmatprep.mubr.f32.mxu0 0.0
    %623 = vmatmul.mubr.f32.gmra.mrb[0].mxu0 %v556
    %v624 = vpop.f32.mrb[0].mxu0
    %v625 = vadd.f32 %v551, %v624
    %v626 = vpop.f32.mrb[0].mxu0
    %627 = vdwg.mxu0
    %v628 = vxor.u32 %v625, 2147483648
    %v629 = vmul.f32 %v628, 1.442695
    %v630 = vpow.pop %v629
    %v631 = vadd.f32 %v630, 1.0
    %v632 = vrcp.pop %v631
    %v633 = vmul.f32 1.0, %v632
    %v634 = vtanh.pop %v625
    %636 = vrot.lane.b32.xlu0 %v634, 64
    %v637 = vpop.permute.xlu0 %636
    %v639 = vmul.f32 %v633, %v637
    %v640 = vtanh.pop %v639
    %642 = vrot.lane.b32.xlu0 %v640, 96
    %v643 = vpop.permute.xlu0 %642
    %v645 = vmul.f32 %v633, %v643
    %v647 = vlaneseq
    %v648 = vshrl.u32 %v647, 7
    %v649 = vsub.s32 0, %v648
    %v650 = vrot.slane %v442, %v649
    %653 = vrot.lane.b32.xlu0 %v645, 32
    %v654 = vpop.permute.xlu0 %653
    %v655 = vsel %vm228, %v654, 0
    %657 = vmatprep.subr.mxu0 0.0
    %658 = vmatpush1.msra.mxu0 %v437
    %659 = vmatprep.subr.mxu0 0.0
    %660 = vmatpush1.msra.mxu0 %v438
    %661 = vmatprep.subr.mxu0 0.0
    %662 = vmatpush1.msra.mxu0 %v439
    %663 = vmatprep.subr.mxu0 0.0
    %664 = vmatpush1.msra.mxu0 %v440
    %665 = vmatprep.subr.mxu0 0.0
    %666 = vmatpush1.msra.mxu0 0.0
    %667 = vmatprep.subr.mxu0 0.0
    %668 = vmatpush1.msra.mxu0 0.0
    %669 = vmatprep.subr.mxu0 0.0
    %670 = vmatpush1.msra.mxu0 0.0
    %671 = vmatprep.subr.mxu0 0.0
    %672 = vmatpush1.msra.mxu0 0.0
    %673 = vmatprep.subr.mxu0 0.0
    %674 = vmatpush1.msra.mxu0 0.0
    %675 = vmatprep.subr.mxu0 0.0
    %676 = vmatpush1.msra.mxu0 0.0
    %677 = vmatprep.subr.mxu0 0.0
    %678 = vmatpush1.msra.mxu0 0.0
    %679 = vmatprep.subr.mxu0 0.0
    %680 = vmatpush1.msra.mxu0 0.0
    %681 = vmatprep.subr.mxu0 0.0
    %682 = vmatpush1.msra.mxu0 0.0
    %683 = vmatprep.subr.mxu0 0.0
    %684 = vmatpush1.msra.mxu0 0.0
    %685 = vmatprep.subr.mxu0 0.0
    %686 = vmatpush1.msra.mxu0 0.0
    %687 = vmatprep.subr.mxu0 0.0
    %688 = vmatpush1.msra.mxu0 0.0
    %689 = vmatprep.subr.mxu0 0.0
    %690 = vmatpush1.msra.mxu0 0.0
    %691 = vmatprep.subr.mxu0 0.0
    %692 = vmatpush1.msra.mxu0 0.0
    %693 = vmatprep.subr.mxu0 0.0
    %694 = vmatpush1.msra.mxu0 0.0
    %695 = vmatprep.subr.mxu0 0.0
    %696 = vmatpush1.msra.mxu0 0.0
    %697 = vmatprep.subr.mxu0 0.0
    %698 = vmatpush1.msra.mxu0 0.0
    %699 = vmatprep.subr.mxu0 0.0
    %700 = vmatpush1.msra.mxu0 0.0
    %701 = vmatprep.subr.mxu0 0.0
    %702 = vmatpush1.msra.mxu0 0.0
    %703 = vmatprep.subr.mxu0 0.0
    %704 = vmatpush1.msra.mxu0 0.0
    %705 = vmatprep.subr.mxu0 0.0
    %706 = vmatpush1.msra.mxu0 0.0
    %707 = vmatprep.subr.mxu0 0.0
    %708 = vmatpush1.msra.mxu0 0.0
    %709 = vmatprep.subr.mxu0 0.0
    %710 = vmatpush1.msra.mxu0 0.0
    %711 = vmatprep.subr.mxu0 0.0
    %712 = vmatpush1.msra.mxu0 0.0
    %713 = vmatprep.subr.mxu0 0.0
    %714 = vmatpush1.msra.mxu0 0.0
    %715 = vmatprep.subr.mxu0 0.0
    %716 = vmatpush1.msra.mxu0 0.0
    %717 = vmatprep.subr.mxu0 0.0
    %718 = vmatpush1.msra.mxu0 0.0
    %719 = vmatprep.subr.mxu0 0.0
    %720 = vmatpush1.msra.mxu0 0.0
    %721 = vmatprep.mubr.f32.mxu0 0.0
    %722 = vmatmul.mubr.f32.gmra.mrb[0].mxu0 %v655
    %v723 = vpop.f32.mrb[0].mxu0
    %v724 = vadd.f32 %v650, %v723
    %v725 = vpop.f32.mrb[0].mxu0
    %726 = vdwg.mxu0
    %v727 = vxor.u32 %v724, 2147483648
    %v728 = vmul.f32 %v727, 1.442695
    %v729 = vpow.pop %v728
    %v730 = vadd.f32 %v729, 1.0
    %v731 = vrcp.pop %v730
    %v732 = vmul.f32 1.0, %v731
    %v733 = vtanh.pop %v724
    %735 = vrot.lane.b32.xlu0 %v733, 126
    %v736 = vpop.permute.xlu0 %735
    %v738 = vmul.f32 %v732, %v736
    %v739 = vtanh.pop %v738
    %741 = vrot.lane.b32.xlu0 %v739, 3
    %v742 = vpop.permute.xlu0 %741
    %v744 = vmul.f32 %v732, %v742
    %745 = vmatprep.subr.mxu0 0.0
    %746 = vmatpush1.msra.mxu0 %v423
    %747 = vmatprep.subr.mxu0 0.0
    %748 = vmatpush1.msra.mxu0 %v424
    %749 = vmatprep.subr.mxu0 0.0
    %750 = vmatpush1.msra.mxu0 %v425
    %751 = vmatprep.subr.mxu0 0.0
    %752 = vmatpush1.msra.mxu0 %v426
    %753 = vmatprep.subr.mxu0 0.0
    %754 = vmatpush1.msra.mxu0 0.0
    %755 = vmatprep.subr.mxu0 0.0
    %756 = vmatpush1.msra.mxu0 0.0
    %757 = vmatprep.subr.mxu0 0.0
    %758 = vmatpush1.msra.mxu0 0.0
    %759 = vmatprep.subr.mxu0 0.0
    %760 = vmatpush1.msra.mxu0 0.0
    %761 = vmatprep.subr.mxu0 0.0
    %762 = vmatpush1.msra.mxu0 0.0
    %763 = vmatprep.subr.mxu0 0.0
    %764 = vmatpush1.msra.mxu0 0.0
    %765 = vmatprep.subr.mxu0 0.0
    %766 = vmatpush1.msra.mxu0 0.0
    %767 = vmatprep.subr.mxu0 0.0
    %768 = vmatpush1.msra.mxu0 0.0
    %769 = vmatprep.subr.mxu0 0.0
    %770 = vmatpush1.msra.mxu0 0.0
    %771 = vmatprep.subr.mxu0 0.0
    %772 = vmatpush1.msra.mxu0 0.0
    %773 = vmatprep.subr.mxu0 0.0
    %774 = vmatpush1.msra.mxu0 0.0
    %775 = vmatprep.subr.mxu0 0.0
    %776 = vmatpush1.msra.mxu0 0.0
    %777 = vmatprep.subr.mxu0 0.0
    %778 = vmatpush1.msra.mxu0 0.0
    %779 = vmatprep.subr.mxu0 0.0
    %780 = vmatpush1.msra.mxu0 0.0
    %781 = vmatprep.subr.mxu0 0.0
    %782 = vmatpush1.msra.mxu0 0.0
    %783 = vmatprep.subr.mxu0 0.0
    %784 = vmatpush1.msra.mxu0 0.0
    %785 = vmatprep.subr.mxu0 0.0
    %786 = vmatpush1.msra.mxu0 0.0
    %787 = vmatprep.subr.mxu0 0.0
    %788 = vmatpush1.msra.mxu0 0.0
    %789 = vmatprep.subr.mxu0 0.0
    %790 = vmatpush1.msra.mxu0 0.0
    %791 = vmatprep.subr.mxu0 0.0
    %792 = vmatpush1.msra.mxu0 0.0
    %793 = vmatprep.subr.mxu0 0.0
    %794 = vmatpush1.msra.mxu0 0.0
    %795 = vmatprep.subr.mxu0 0.0
    %796 = vmatpush1.msra.mxu0 0.0
    %797 = vmatprep.subr.mxu0 0.0
    %798 = vmatpush1.msra.mxu0 0.0
    %799 = vmatprep.subr.mxu0 0.0
    %800 = vmatpush1.msra.mxu0 0.0
    %801 = vmatprep.subr.mxu0 0.0
    %802 = vmatpush1.msra.mxu0 0.0
    %803 = vmatprep.subr.mxu0 0.0
    %804 = vmatpush1.msra.mxu0 0.0
    %805 = vmatprep.subr.mxu0 0.0
    %806 = vmatpush1.msra.mxu0 0.0
    %807 = vmatprep.subr.mxu0 0.0
    %808 = vmatpush1.msra.mxu0 0.0
    %809 = vmatprep.mubr.f32.mxu0 0.0
    %810 = vmatmul.mubr.f32.gmra.mrb[0].mxu0 %v556
    %v811 = vpop.f32.mrb[0].mxu0
    %v812 = vadd.f32 %v447, %v811
    %v813 = vpop.f32.mrb[0].mxu0
    %814 = vdwg.mxu0
    %v815 = vxor.u32 %v812, 2147483648
    %v816 = vmul.f32 %v815, 1.442695
    %v817 = vpow.pop %v816
    %v818 = vadd.f32 %v817, 1.0
    %v819 = vrcp.pop %v818
    %v820 = vmul.f32 1.0, %v819
    %v821 = vtanh.pop %v812
    %823 = vrot.lane.b32.xlu0 %v540, 32
    %v824 = vpop.permute.xlu0 %823
    %v826 = vmul.f32 %v820, %v824
    %828 = vrot.lane.b32.xlu0 %v821, 64
    %v829 = vpop.permute.xlu0 %828
    %v831 = vmul.f32 %v820, %v829
    %833 = vrot.lane.b32.xlu0 %v831, 32
    %v834 = vpop.permute.xlu0 %833
    %v836 = vadd.f32 %v826, %v834
    %v837 = vtanh.pop %v836
    %839 = vrot.lane.b32.xlu0 %v837, 64
    %v840 = vpop.permute.xlu0 %839
    %v842 = vmul.f32 %v820, %v840
    %843 = vmatprep.subr.mxu0 0.0
    %844 = vmatpush1.msra.mxu0 %v432
    %845 = vmatprep.subr.mxu0 0.0
    %846 = vmatpush1.msra.mxu0 %v433
    %847 = vmatprep.subr.mxu0 0.0
    %848 = vmatpush1.msra.mxu0 %v434
    %849 = vmatprep.subr.mxu0 0.0
    %850 = vmatpush1.msra.mxu0 %v435
    %851 = vmatprep.subr.mxu0 0.0
    %852 = vmatpush1.msra.mxu0 0.0
    %853 = vmatprep.subr.mxu0 0.0
    %854 = vmatpush1.msra.mxu0 0.0
    %855 = vmatprep.subr.mxu0 0.0
    %856 = vmatpush1.msra.mxu0 0.0
    %857 = vmatprep.subr.mxu0 0.0
    %858 = vmatpush1.msra.mxu0 0.0
    %859 = vmatprep.subr.mxu0 0.0
    %860 = vmatpush1.msra.mxu0 0.0
    %861 = vmatprep.subr.mxu0 0.0
    %862 = vmatpush1.msra.mxu0 0.0
    %863 = vmatprep.subr.mxu0 0.0
    %864 = vmatpush1.msra.mxu0 0.0
    %865 = vmatprep.subr.mxu0 0.0
    %866 = vmatpush1.msra.mxu0 0.0
    %867 = vmatprep.subr.mxu0 0.0
    %868 = vmatpush1.msra.mxu0 0.0
    %869 = vmatprep.subr.mxu0 0.0
    %870 = vmatpush1.msra.mxu0 0.0
    %871 = vmatprep.subr.mxu0 0.0
    %872 = vmatpush1.msra.mxu0 0.0
    %873 = vmatprep.subr.mxu0 0.0
    %874 = vmatpush1.msra.mxu0 0.0
    %875 = vmatprep.subr.mxu0 0.0
    %876 = vmatpush1.msra.mxu0 0.0
    %877 = vmatprep.subr.mxu0 0.0
    %878 = vmatpush1.msra.mxu0 0.0
    %879 = vmatprep.subr.mxu0 0.0
    %880 = vmatpush1.msra.mxu0 0.0
    %881 = vmatprep.subr.mxu0 0.0
    %882 = vmatpush1.msra.mxu0 0.0
    %883 = vmatprep.subr.mxu0 0.0
    %884 = vmatpush1.msra.mxu0 0.0
    %885 = vmatprep.subr.mxu0 0.0
    %886 = vmatpush1.msra.mxu0 0.0
    %887 = vmatprep.subr.mxu0 0.0
    %888 = vmatpush1.msra.mxu0 0.0
    %889 = vmatprep.subr.mxu0 0.0
    %890 = vmatpush1.msra.mxu0 0.0
    %891 = vmatprep.subr.mxu0 0.0
    %892 = vmatpush1.msra.mxu0 0.0
    %893 = vmatprep.subr.mxu0 0.0
    %894 = vmatpush1.msra.mxu0 0.0
    %895 = vmatprep.subr.mxu0 0.0
    %896 = vmatpush1.msra.mxu0 0.0
    %897 = vmatprep.subr.mxu0 0.0
    %898 = vmatpush1.msra.mxu0 0.0
    %899 = vmatprep.subr.mxu0 0.0
    %900 = vmatpush1.msra.mxu0 0.0
    %901 = vmatprep.subr.mxu0 0.0
    %902 = vmatpush1.msra.mxu0 0.0
    %903 = vmatprep.subr.mxu0 0.0
    %904 = vmatpush1.msra.mxu0 0.0
    %905 = vmatprep.subr.mxu0 0.0
    %906 = vmatpush1.msra.mxu0 0.0
    %907 = vmatprep.mubr.f32.mxu0 0.0
    %908 = vmatmul.mubr.f32.gmra.mrb[0].mxu0 %v655
    %v909 = vpop.f32.mrb[0].mxu0
    %v910 = vadd.f32 0.0, %v909
    %v911 = vpop.f32.mrb[0].mxu0
    %912 = vdwg.mxu0
    %914 = vrot.lane.b32.xlu0 %v842, 32
    %v915 = vpop.permute.xlu0 %914
    %v916 = vsel %vm228, %v915, 0
    %918 = vmatprep.subr.mxu0 0.0
    %919 = vmatpush1.msra.mxu0 %v428
    %920 = vmatprep.subr.mxu0 0.0
    %921 = vmatpush1.msra.mxu0 %v429
    %922 = vmatprep.subr.mxu0 0.0
    %923 = vmatpush1.msra.mxu0 %v430
    %924 = vmatprep.subr.mxu0 0.0
    %925 = vmatpush1.msra.mxu0 %v431
    %926 = vmatprep.subr.mxu0 0.0
    %927 = vmatpush1.msra.mxu0 0.0
    %928 = vmatprep.subr.mxu0 0.0
    %929 = vmatpush1.msra.mxu0 0.0
    %930 = vmatprep.subr.mxu0 0.0
    %931 = vmatpush1.msra.mxu0 0.0
    %932 = vmatprep.subr.mxu0 0.0
    %933 = vmatpush1.msra.mxu0 0.0
    %934 = vmatprep.subr.mxu0 0.0
    %935 = vmatpush1.msra.mxu0 0.0
    %936 = vmatprep.subr.mxu0 0.0
    %937 = vmatpush1.msra.mxu0 0.0
    %938 = vmatprep.subr.mxu0 0.0
    %939 = vmatpush1.msra.mxu0 0.0
    %940 = vmatprep.subr.mxu0 0.0
    %941 = vmatpush1.msra.mxu0 0.0
    %942 = vmatprep.subr.mxu0 0.0
    %943 = vmatpush1.msra.mxu0 0.0
    %944 = vmatprep.subr.mxu0 0.0
    %945 = vmatpush1.msra.mxu0 0.0
    %946 = vmatprep.subr.mxu0 0.0
    %947 = vmatpush1.msra.mxu0 0.0
    %948 = vmatprep.subr.mxu0 0.0
    %949 = vmatpush1.msra.mxu0 0.0
    %950 = vmatprep.subr.mxu0 0.0
    %951 = vmatpush1.msra.mxu0 0.0
    %952 = vmatprep.subr.mxu0 0.0
    %953 = vmatpush1.msra.mxu0 0.0
    %954 = vmatprep.subr.mxu0 0.0
    %955 = vmatpush1.msra.mxu0 0.0
    %956 = vmatprep.subr.mxu0 0.0
    %957 = vmatpush1.msra.mxu0 0.0
    %958 = vmatprep.subr.mxu0 0.0
    %959 = vmatpush1.msra.mxu0 0.0
    %960 = vmatprep.subr.mxu0 0.0
    %961 = vmatpush1.msra.mxu0 0.0
    %962 = vmatprep.subr.mxu0 0.0
    %963 = vmatpush1.msra.mxu0 0.0
    %964 = vmatprep.subr.mxu0 0.0
    %965 = vmatpush1.msra.mxu0 0.0
    %966 = vmatprep.subr.mxu0 0.0
    %967 = vmatpush1.msra.mxu0 0.0
    %968 = vmatprep.subr.mxu0 0.0
    %969 = vmatpush1.msra.mxu0 0.0
    %970 = vmatprep.subr.mxu0 0.0
    %971 = vmatpush1.msra.mxu0 0.0
    %972 = vmatprep.subr.mxu0 0.0
    %973 = vmatpush1.msra.mxu0 0.0
    %974 = vmatprep.subr.mxu0 0.0
    %975 = vmatpush1.msra.mxu0 0.0
    %976 = vmatprep.subr.mxu0 0.0
    %977 = vmatpush1.msra.mxu0 0.0
    %978 = vmatprep.subr.mxu0 0.0
    %979 = vmatpush1.msra.mxu0 0.0
    %980 = vmatprep.subr.mxu0 0.0
    %981 = vmatpush1.msra.mxu0 0.0
    %982 = vmatprep.mubr.f32.mxu0 0.0
    %983 = vmatmul.mubr.f32.gmra.mrb[0].mxu0 %v916
    %v984 = vpop.f32.mrb[0].mxu0
    %v985 = vadd.f32 %v910, %v984
    %v986 = vpop.f32.mrb[0].mxu0
    %987 = vdwg.mxu0
    %v988 = vadd.f32 %v985, %v551
    %v989 = vxor.u32 %v988, 2147483648
    %v990 = vmul.f32 %v989, 1.442695
    %v991 = vpow.pop %v990
    %v992 = vadd.f32 %v991, 1.0
    %v993 = vrcp.pop %v992
    %v994 = vmul.f32 1.0, %v993
    %v995 = vtanh.pop %v988
    %997 = vrot.lane.b32.xlu0 %v639, 32
    %v998 = vpop.permute.xlu0 %997
    %v1000 = vmul.f32 %v994, %v998
    %1002 = vrot.lane.b32.xlu0 %v995, 64
    %v1003 = vpop.permute.xlu0 %1002
    %v1005 = vmul.f32 %v994, %v1003
    %1007 = vrot.lane.b32.xlu0 %v1005, 32
    %v1008 = vpop.permute.xlu0 %1007
    %v1010 = vadd.f32 %v1000, %v1008
    %v1011 = vtanh.pop %v1010
    %1013 = vrot.lane.b32.xlu0 %v1011, 64
    %v1014 = vpop.permute.xlu0 %1013
    %v1016 = vmul.f32 %v994, %v1014
    %1018 = vset.pattern.permute.xlu0 3
    %1019 = vperm.xlu0 %1018, %v744
    %v1020 = vpop.permute.xlu0 %1019
    %v1023 = vlaneseq
    %v1024 = vshrl.u32 %v1023, 7
    %v1025 = vsub.s32 0, %v1024
    %v1026 = vrot.slane %v441, %v1025
    %v1028 = vmul.f32 %v1020, %v1026
    %1030 = vrot.lane.b32.xlu0 %v1016, 32
    %v1031 = vpop.permute.xlu0 %1030
    %v1032 = vsel %vm228, %v1031, 0
    %1034 = vmatprep.subr.mxu0 0.0
    %1035 = vmatpush1.msra.mxu0 %v437
    %1036 = vmatprep.subr.mxu0 0.0
    %1037 = vmatpush1.msra.mxu0 %v438
    %1038 = vmatprep.subr.mxu0 0.0
    %1039 = vmatpush1.msra.mxu0 %v439
    %1040 = vmatprep.subr.mxu0 0.0
    %1041 = vmatpush1.msra.mxu0 %v440
    %1042 = vmatprep.subr.mxu0 0.0
    %1043 = vmatpush1.msra.mxu0 0.0
    %1044 = vmatprep.subr.mxu0 0.0
    %1045 = vmatpush1.msra.mxu0 0.0
    %1046 = vmatprep.subr.mxu0 0.0
    %1047 = vmatpush1.msra.mxu0 0.0
    %1048 = vmatprep.subr.mxu0 0.0
    %1049 = vmatpush1.msra.mxu0 0.0
    %1050 = vmatprep.subr.mxu0 0.0
    %1051 = vmatpush1.msra.mxu0 0.0
    %1052 = vmatprep.subr.mxu0 0.0
    %1053 = vmatpush1.msra.mxu0 0.0
    %1054 = vmatprep.subr.mxu0 0.0
    %1055 = vmatpush1.msra.mxu0 0.0
    %1056 = vmatprep.subr.mxu0 0.0
    %1057 = vmatpush1.msra.mxu0 0.0
    %1058 = vmatprep.subr.mxu0 0.0
    %1059 = vmatpush1.msra.mxu0 0.0
    %1060 = vmatprep.subr.mxu0 0.0
    %1061 = vmatpush1.msra.mxu0 0.0
    %1062 = vmatprep.subr.mxu0 0.0
    %1063 = vmatpush1.msra.mxu0 0.0
    %1064 = vmatprep.subr.mxu0 0.0
    %1065 = vmatpush1.msra.mxu0 0.0
    %1066 = vmatprep.subr.mxu0 0.0
    %1067 = vmatpush1.msra.mxu0 0.0
    %1068 = vmatprep.subr.mxu0 0.0
    %1069 = vmatpush1.msra.mxu0 0.0
    %1070 = vmatprep.subr.mxu0 0.0
    %1071 = vmatpush1.msra.mxu0 0.0
    %1072 = vmatprep.subr.mxu0 0.0
    %1073 = vmatpush1.msra.mxu0 0.0
    %1074 = vmatprep.subr.mxu0 0.0
    %1075 = vmatpush1.msra.mxu0 0.0
    %1076 = vmatprep.subr.mxu0 0.0
    %1077 = vmatpush1.msra.mxu0 0.0
    %1078 = vmatprep.subr.mxu0 0.0
    %1079 = vmatpush1.msra.mxu0 0.0
    %1080 = vmatprep.subr.mxu0 0.0
    %1081 = vmatpush1.msra.mxu0 0.0
    %1082 = vmatprep.subr.mxu0 0.0
    %1083 = vmatpush1.msra.mxu0 0.0
    %1084 = vmatprep.subr.mxu0 0.0
    %1085 = vmatpush1.msra.mxu0 0.0
    %1086 = vmatprep.subr.mxu0 0.0
    %1087 = vmatpush1.msra.mxu0 0.0
    %1088 = vmatprep.subr.mxu0 0.0
    %1089 = vmatpush1.msra.mxu0 0.0
    %1090 = vmatprep.subr.mxu0 0.0
    %1091 = vmatpush1.msra.mxu0 0.0
    %1092 = vmatprep.subr.mxu0 0.0
    %1093 = vmatpush1.msra.mxu0 0.0
    %1094 = vmatprep.subr.mxu0 0.0
    %1095 = vmatpush1.msra.mxu0 0.0
    %1096 = vmatprep.subr.mxu0 0.0
    %1097 = vmatpush1.msra.mxu0 0.0
    %1098 = vmatprep.mubr.f32.mxu0 0.0
    %1099 = vmatmul.mubr.f32.gmra.mrb[0].mxu0 %v1032
    %v1100 = vpop.f32.mrb[0].mxu0
    %v1101 = vadd.f32 %v1028, %v1100
    %v1102 = vpop.f32.mrb[0].mxu0
    %1103 = vdwg.mxu0
    %v1104 = vadd.f32 %v1101, %v650
    %v1105 = vxor.u32 %v1104, 2147483648
    %v1106 = vmul.f32 %v1105, 1.442695
    %v1107 = vpow.pop %v1106
    %v1108 = vadd.f32 %v1107, 1.0
    %v1109 = vrcp.pop %v1108
    %v1110 = vmul.f32 1.0, %v1109
    %v1111 = vtanh.pop %v1104
    %1113 = vrot.lane.b32.xlu0 %v738, 1
    %v1114 = vpop.permute.xlu0 %1113
    %v1116 = vmul.f32 %v1110, %v1114
    %1118 = vrot.lane.b32.xlu0 %v1111, 126
    %v1119 = vpop.permute.xlu0 %1118
    %v1121 = vmul.f32 %v1110, %v1119
    %1123 = vrot.lane.b32.xlu0 %v1121, 1
    %v1124 = vpop.permute.xlu0 %1123
    %v1126 = vadd.f32 %v1116, %v1124
    %v1127 = vtanh.pop %v1126
    %1129 = vrot.lane.b32.xlu0 %v1127, 2
    %v1130 = vpop.permute.xlu0 %1129
    %v1132 = vmul.f32 %v1110, %v1130
    %1133 = vmatprep.subr.mxu0 0.0
    %1134 = vmatpush1.msra.mxu0 %v423
    %1135 = vmatprep.subr.mxu0 0.0
    %1136 = vmatpush1.msra.mxu0 %v424
    %1137 = vmatprep.subr.mxu0 0.0
    %1138 = vmatpush1.msra.mxu0 %v425
    %1139 = vmatprep.subr.mxu0 0.0
    %1140 = vmatpush1.msra.mxu0 %v426
    %1141 = vmatprep.subr.mxu0 0.0
    %1142 = vmatpush1.msra.mxu0 0.0
    %1143 = vmatprep.subr.mxu0 0.0
    %1144 = vmatpush1.msra.mxu0 0.0
    %1145 = vmatprep.subr.mxu0 0.0
    %1146 = vmatpush1.msra.mxu0 0.0
    %1147 = vmatprep.subr.mxu0 0.0
    %1148 = vmatpush1.msra.mxu0 0.0
    %1149 = vmatprep.subr.mxu0 0.0
    %1150 = vmatpush1.msra.mxu0 0.0
    %1151 = vmatprep.subr.mxu0 0.0
    %1152 = vmatpush1.msra.mxu0 0.0
    %1153 = vmatprep.subr.mxu0 0.0
    %1154 = vmatpush1.msra.mxu0 0.0
    %1155 = vmatprep.subr.mxu0 0.0
    %1156 = vmatpush1.msra.mxu0 0.0
    %1157 = vmatprep.subr.mxu0 0.0
    %1158 = vmatpush1.msra.mxu0 0.0
    %1159 = vmatprep.subr.mxu0 0.0
    %1160 = vmatpush1.msra.mxu0 0.0
    %1161 = vmatprep.subr.mxu0 0.0
    %1162 = vmatpush1.msra.mxu0 0.0
    %1163 = vmatprep.subr.mxu0 0.0
    %1164 = vmatpush1.msra.mxu0 0.0
    %1165 = vmatprep.subr.mxu0 0.0
    %1166 = vmatpush1.msra.mxu0 0.0
    %1167 = vmatprep.subr.mxu0 0.0
    %1168 = vmatpush1.msra.mxu0 0.0
    %1169 = vmatprep.subr.mxu0 0.0
    %1170 = vmatpush1.msra.mxu0 0.0
    %1171 = vmatprep.subr.mxu0 0.0
    %1172 = vmatpush1.msra.mxu0 0.0
    %1173 = vmatprep.subr.mxu0 0.0
    %1174 = vmatpush1.msra.mxu0 0.0
    %1175 = vmatprep.subr.mxu0 0.0
    %1176 = vmatpush1.msra.mxu0 0.0
    %1177 = vmatprep.subr.mxu0 0.0
    %1178 = vmatpush1.msra.mxu0 0.0
    %1179 = vmatprep.subr.mxu0 0.0
    %1180 = vmatpush1.msra.mxu0 0.0
    %1181 = vmatprep.subr.mxu0 0.0
    %1182 = vmatpush1.msra.mxu0 0.0
    %1183 = vmatprep.subr.mxu0 0.0
    %1184 = vmatpush1.msra.mxu0 0.0
    %1185 = vmatprep.subr.mxu0 0.0
    %1186 = vmatpush1.msra.mxu0 0.0
    %1187 = vmatprep.subr.mxu0 0.0
    %1188 = vmatpush1.msra.mxu0 0.0
    %1189 = vmatprep.subr.mxu0 0.0
    %1190 = vmatpush1.msra.mxu0 0.0
    %1191 = vmatprep.subr.mxu0 0.0
    %1192 = vmatpush1.msra.mxu0 0.0
    %1193 = vmatprep.subr.mxu0 0.0
    %1194 = vmatpush1.msra.mxu0 0.0
    %1195 = vmatprep.subr.mxu0 0.0
    %1196 = vmatpush1.msra.mxu0 0.0
    %1197 = vmatprep.mubr.f32.mxu0 0.0
    %1198 = vmatmul.mubr.f32.gmra.mrb[0].mxu0 %v916
    %v1199 = vpop.f32.mrb[0].mxu0
    %v1200 = vadd.f32 %v447, %v1199
    %v1201 = vpop.f32.mrb[0].mxu0
    %1202 = vdwg.mxu0
    %v1203 = vxor.u32 %v1200, 2147483648
    %v1204 = vmul.f32 %v1203, 1.442695
    %v1205 = vpow.pop %v1204
    %v1206 = vadd.f32 %v1205, 1.0
    %v1207 = vrcp.pop %v1206
    %v1208 = vmul.f32 1.0, %v1207
    %v1209 = vtanh.pop %v1200
    %v1210 = vmul.f32 %v1208, %v836
    %1212 = vrot.lane.b32.xlu0 %v1209, 64
    %v1213 = vpop.permute.xlu0 %1212
    %v1215 = vmul.f32 %v1208, %v1213
    %1217 = vrot.lane.b32.xlu0 %v1215, 32
    %v1218 = vpop.permute.xlu0 %1217
    %v1220 = vadd.f32 %v1210, %v1218
    %v1221 = vtanh.pop %v1220
    %1223 = vrot.lane.b32.xlu0 %v1221, 64
    %v1224 = vpop.permute.xlu0 %1223
    %v1226 = vmul.f32 %v1208, %v1224
    %1227 = vmatprep.subr.mxu0 0.0
    %1228 = vmatpush1.msra.mxu0 %v432
    %1229 = vmatprep.subr.mxu0 0.0
    %1230 = vmatpush1.msra.mxu0 %v433
    %1231 = vmatprep.subr.mxu0 0.0
    %1232 = vmatpush1.msra.mxu0 %v434
    %1233 = vmatprep.subr.mxu0 0.0
    %1234 = vmatpush1.msra.mxu0 %v435
    %1235 = vmatprep.subr.mxu0 0.0
    %1236 = vmatpush1.msra.mxu0 0.0
    %1237 = vmatprep.subr.mxu0 0.0
    %1238 = vmatpush1.msra.mxu0 0.0
    %1239 = vmatprep.subr.mxu0 0.0
    %1240 = vmatpush1.msra.mxu0 0.0
    %1241 = vmatprep.subr.mxu0 0.0
    %1242 = vmatpush1.msra.mxu0 0.0
    %1243 = vmatprep.subr.mxu0 0.0
    %1244 = vmatpush1.msra.mxu0 0.0
    %1245 = vmatprep.subr.mxu0 0.0
    %1246 = vmatpush1.msra.mxu0 0.0
    %1247 = vmatprep.subr.mxu0 0.0
    %1248 = vmatpush1.msra.mxu0 0.0
    %1249 = vmatprep.subr.mxu0 0.0
    %1250 = vmatpush1.msra.mxu0 0.0
    %1251 = vmatprep.subr.mxu0 0.0
    %1252 = vmatpush1.msra.mxu0 0.0
    %1253 = vmatprep.subr.mxu0 0.0
    %1254 = vmatpush1.msra.mxu0 0.0
    %1255 = vmatprep.subr.mxu0 0.0
    %1256 = vmatpush1.msra.mxu0 0.0
    %1257 = vmatprep.subr.mxu0 0.0
    %1258 = vmatpush1.msra.mxu0 0.0
    %1259 = vmatprep.subr.mxu0 0.0
    %1260 = vmatpush1.msra.mxu0 0.0
    %1261 = vmatprep.subr.mxu0 0.0
    %1262 = vmatpush1.msra.mxu0 0.0
    %1263 = vmatprep.subr.mxu0 0.0
    %1264 = vmatpush1.msra.mxu0 0.0
    %1265 = vmatprep.subr.mxu0 0.0
    %1266 = vmatpush1.msra.mxu0 0.0
    %1267 = vmatprep.subr.mxu0 0.0
    %1268 = vmatpush1.msra.mxu0 0.0
    %1269 = vmatprep.subr.mxu0 0.0
    %1270 = vmatpush1.msra.mxu0 0.0
    %1271 = vmatprep.subr.mxu0 0.0
    %1272 = vmatpush1.msra.mxu0 0.0
    %1273 = vmatprep.subr.mxu0 0.0
    %1274 = vmatpush1.msra.mxu0 0.0
    %1275 = vmatprep.subr.mxu0 0.0
    %1276 = vmatpush1.msra.mxu0 0.0
    %1277 = vmatprep.subr.mxu0 0.0
    %1278 = vmatpush1.msra.mxu0 0.0
    %1279 = vmatprep.subr.mxu0 0.0
    %1280 = vmatpush1.msra.mxu0 0.0
    %1281 = vmatprep.subr.mxu0 0.0
    %1282 = vmatpush1.msra.mxu0 0.0
    %1283 = vmatprep.subr.mxu0 0.0
    %1284 = vmatpush1.msra.mxu0 0.0
    %1285 = vmatprep.subr.mxu0 0.0
    %1286 = vmatpush1.msra.mxu0 0.0
    %1287 = vmatprep.subr.mxu0 0.0
    %1288 = vmatpush1.msra.mxu0 0.0
    %1289 = vmatprep.subr.mxu0 0.0
    %1290 = vmatpush1.msra.mxu0 0.0
    %1291 = vmatprep.mubr.f32.mxu0 0.0
    %1292 = vmatmul.mubr.f32.gmra.mrb[0].mxu0 %v1032
    %v1293 = vpop.f32.mrb[0].mxu0
    %v1294 = vadd.f32 0.0, %v1293
    %v1295 = vpop.f32.mrb[0].mxu0
    %1296 = vdwg.mxu0
    %1298 = vrot.lane.b32.xlu0 %v1226, 32
    %v1299 = vpop.permute.xlu0 %1298
    %v1300 = vsel %vm228, %v1299, 0
    %1302 = vmatprep.subr.mxu0 0.0
    %1303 = vmatpush1.msra.mxu0 %v428
    %1304 = vmatprep.subr.mxu0 0.0
    %1305 = vmatpush1.msra.mxu0 %v429
    %1306 = vmatprep.subr.mxu0 0.0
    %1307 = vmatpush1.msra.mxu0 %v430
    %1308 = vmatprep.subr.mxu0 0.0
    %1309 = vmatpush1.msra.mxu0 %v431
    %1310 = vmatprep.subr.mxu0 0.0
    %1311 = vmatpush1.msra.mxu0 0.0
    %1312 = vmatprep.subr.mxu0 0.0
    %1313 = vmatpush1.msra.mxu0 0.0
    %1314 = vmatprep.subr.mxu0 0.0
    %1315 = vmatpush1.msra.mxu0 0.0
    %1316 = vmatprep.subr.mxu0 0.0
    %1317 = vmatpush1.msra.mxu0 0.0
    %1318 = vmatprep.subr.mxu0 0.0
    %1319 = vmatpush1.msra.mxu0 0.0
    %1320 = vmatprep.subr.mxu0 0.0
    %1321 = vmatpush1.msra.mxu0 0.0
    %1322 = vmatprep.subr.mxu0 0.0
    %1323 = vmatpush1.msra.mxu0 0.0
    %1324 = vmatprep.subr.mxu0 0.0
    %1325 = vmatpush1.msra.mxu0 0.0
    %1326 = vmatprep.subr.mxu0 0.0
    %1327 = vmatpush1.msra.mxu0 0.0
    %1328 = vmatprep.subr.mxu0 0.0
    %1329 = vmatpush1.msra.mxu0 0.0
    %1330 = vmatprep.subr.mxu0 0.0
    %1331 = vmatpush1.msra.mxu0 0.0
    %1332 = vmatprep.subr.mxu0 0.0
    %1333 = vmatpush1.msra.mxu0 0.0
    %1334 = vmatprep.subr.mxu0 0.0
    %1335 = vmatpush1.msra.mxu0 0.0
    %1336 = vmatprep.subr.mxu0 0.0
    %1337 = vmatpush1.msra.mxu0 0.0
    %1338 = vmatprep.subr.mxu0 0.0
    %1339 = vmatpush1.msra.mxu0 0.0
    %1340 = vmatprep.subr.mxu0 0.0
    %1341 = vmatpush1.msra.mxu0 0.0
    %1342 = vmatprep.subr.mxu0 0.0
    %1343 = vmatpush1.msra.mxu0 0.0
    %1344 = vmatprep.subr.mxu0 0.0
    %1345 = vmatpush1.msra.mxu0 0.0
    %1346 = vmatprep.subr.mxu0 0.0
    %1347 = vmatpush1.msra.mxu0 0.0
    %1348 = vmatprep.subr.mxu0 0.0
    %1349 = vmatpush1.msra.mxu0 0.0
    %1350 = vmatprep.subr.mxu0 0.0
    %1351 = vmatpush1.msra.mxu0 0.0
    %1352 = vmatprep.subr.mxu0 0.0
    %1353 = vmatpush1.msra.mxu0 0.0
    %1354 = vmatprep.subr.mxu0 0.0
    %1355 = vmatpush1.msra.mxu0 0.0
    %1356 = vmatprep.subr.mxu0 0.0
    %1357 = vmatpush1.msra.mxu0 0.0
    %1358 = vmatprep.subr.mxu0 0.0
    %1359 = vmatpush1.msra.mxu0 0.0
    %1360 = vmatprep.subr.mxu0 0.0
    %1361 = vmatpush1.msra.mxu0 0.0
    %1362 = vmatprep.subr.mxu0 0.0
    %1363 = vmatpush1.msra.mxu0 0.0
    %1364 = vmatprep.subr.mxu0 0.0
    %1365 = vmatpush1.msra.mxu0 0.0
    %1366 = vmatprep.mubr.f32.mxu0 0.0
    %1367 = vmatmul.mubr.f32.gmra.mrb[0].mxu0 %v1300
    %v1368 = vpop.f32.mrb[0].mxu0
    %v1369 = vadd.f32 %v1294, %v1368
    %v1370 = vpop.f32.mrb[0].mxu0
    %1371 = vdwg.mxu0
    %v1372 = vadd.f32 %v1369, %v551
    %v1373 = vxor.u32 %v1372, 2147483648
    %v1374 = vmul.f32 %v1373, 1.442695
    %v1375 = vpow.pop %v1374
    %v1376 = vadd.f32 %v1375, 1.0
    %v1377 = vrcp.pop %v1376
    %v1378 = vmul.f32 1.0, %v1377
    %v1379 = vtanh.pop %v1372
    %v1380 = vmul.f32 %v1378, %v1010
    %1382 = vrot.lane.b32.xlu0 %v1379, 64
    %v1383 = vpop.permute.xlu0 %1382
    %v1385 = vmul.f32 %v1378, %v1383
    %1387 = vrot.lane.b32.xlu0 %v1385, 32
    %v1388 = vpop.permute.xlu0 %1387
    %v1390 = vadd.f32 %v1380, %v1388
    %v1391 = vtanh.pop %v1390
    %1393 = vrot.lane.b32.xlu0 %v1391, 64
    %v1394 = vpop.permute.xlu0 %1393
    %v1396 = vmul.f32 %v1378, %v1394
    %1398 = vset.pattern.permute.xlu0 3
    %1399 = vperm.xlu0 %1398, %v1132
    %v1400 = vpop.permute.xlu0 %1399
    %v1402 = vmul.f32 %v1400, %v1026
    %1404 = vrot.lane.b32.xlu0 %v1396, 32
    %v1405 = vpop.permute.xlu0 %1404
    %v1406 = vsel %vm228, %v1405, 0
    %1408 = vmatprep.subr.mxu0 0.0
    %1409 = vmatpush1.msra.mxu0 %v437
    %1410 = vmatprep.subr.mxu0 0.0
    %1411 = vmatpush1.msra.mxu0 %v438
    %1412 = vmatprep.subr.mxu0 0.0
    %1413 = vmatpush1.msra.mxu0 %v439
    %1414 = vmatprep.subr.mxu0 0.0
    %1415 = vmatpush1.msra.mxu0 %v440
    %1416 = vmatprep.subr.mxu0 0.0
    %1417 = vmatpush1.msra.mxu0 0.0
    %1418 = vmatprep.subr.mxu0 0.0
    %1419 = vmatpush1.msra.mxu0 0.0
    %1420 = vmatprep.subr.mxu0 0.0
    %1421 = vmatpush1.msra.mxu0 0.0
    %1422 = vmatprep.subr.mxu0 0.0
    %1423 = vmatpush1.msra.mxu0 0.0
    %1424 = vmatprep.subr.mxu0 0.0
    %1425 = vmatpush1.msra.mxu0 0.0
    %1426 = vmatprep.subr.mxu0 0.0
    %1427 = vmatpush1.msra.mxu0 0.0
    %1428 = vmatprep.subr.mxu0 0.0
    %1429 = vmatpush1.msra.mxu0 0.0
    %1430 = vmatprep.subr.mxu0 0.0
    %1431 = vmatpush1.msra.mxu0 0.0
    %1432 = vmatprep.subr.mxu0 0.0
    %1433 = vmatpush1.msra.mxu0 0.0
    %1434 = vmatprep.subr.mxu0 0.0
    %1435 = vmatpush1.msra.mxu0 0.0
    %1436 = vmatprep.subr.mxu0 0.0
    %1437 = vmatpush1.msra.mxu0 0.0
    %1438 = vmatprep.subr.mxu0 0.0
    %1439 = vmatpush1.msra.mxu0 0.0
    %1440 = vmatprep.subr.mxu0 0.0
    %1441 = vmatpush1.msra.mxu0 0.0
    %1442 = vmatprep.subr.mxu0 0.0
    %1443 = vmatpush1.msra.mxu0 0.0
    %1444 = vmatprep.subr.mxu0 0.0
    %1445 = vmatpush1.msra.mxu0 0.0
    %1446 = vmatprep.subr.mxu0 0.0
    %1447 = vmatpush1.msra.mxu0 0.0
    %1448 = vmatprep.subr.mxu0 0.0
    %1449 = vmatpush1.msra.mxu0 0.0
    %1450 = vmatprep.subr.mxu0 0.0
    %1451 = vmatpush1.msra.mxu0 0.0
    %1452 = vmatprep.subr.mxu0 0.0
    %1453 = vmatpush1.msra.mxu0 0.0
    %1454 = vmatprep.subr.mxu0 0.0
    %1455 = vmatpush1.msra.mxu0 0.0
    %1456 = vmatprep.subr.mxu0 0.0
    %1457 = vmatpush1.msra.mxu0 0.0
    %1458 = vmatprep.subr.mxu0 0.0
    %1459 = vmatpush1.msra.mxu0 0.0
    %1460 = vmatprep.subr.mxu0 0.0
    %1461 = vmatpush1.msra.mxu0 0.0
    %1462 = vmatprep.subr.mxu0 0.0
    %1463 = vmatpush1.msra.mxu0 0.0
    %1464 = vmatprep.subr.mxu0 0.0
    %1465 = vmatpush1.msra.mxu0 0.0
    %1466 = vmatprep.subr.mxu0 0.0
    %1467 = vmatpush1.msra.mxu0 0.0
    %1468 = vmatprep.subr.mxu0 0.0
    %1469 = vmatpush1.msra.mxu0 0.0
    %1470 = vmatprep.subr.mxu0 0.0
    %1471 = vmatpush1.msra.mxu0 0.0
    %1472 = vmatprep.mubr.f32.mxu0 0.0
    %1473 = vmatmul.mubr.f32.gmra.mrb[0].mxu0 %v1406
    %v1474 = vpop.f32.mrb[0].mxu0
    %v1475 = vadd.f32 %v1402, %v1474
    %v1476 = vpop.f32.mrb[0].mxu0
    %1477 = vdwg.mxu0
    %v1478 = vadd.f32 %v1475, %v650
    %v1479 = vxor.u32 %v1478, 2147483648
    %v1480 = vmul.f32 %v1479, 1.442695
    %v1481 = vpow.pop %v1480
    %v1482 = vadd.f32 %v1481, 1.0
    %v1483 = vrcp.pop %v1482
    %v1484 = vmul.f32 1.0, %v1483
    %v1485 = vtanh.pop %v1478
    %v1486 = vmul.f32 %v1484, %v1126
    %1488 = vrot.lane.b32.xlu0 %v1485, 126
    %v1489 = vpop.permute.xlu0 %1488
    %v1491 = vmul.f32 %v1484, %v1489
    %1493 = vrot.lane.b32.xlu0 %v1491, 1
    %v1494 = vpop.permute.xlu0 %1493
    %v1496 = vadd.f32 %v1486, %v1494
    %v1497 = vtanh.pop %v1496
    %1499 = vrot.lane.b32.xlu0 %v1497, 2
    %v1500 = vpop.permute.xlu0 %1499
    %v1502 = vmul.f32 %v1484, %v1500
    %1503 = vmatprep.subr.mxu0 0.0
    %1504 = vmatpush1.msra.mxu0 %v423
    %1505 = vmatprep.subr.mxu0 0.0
    %1506 = vmatpush1.msra.mxu0 %v424
    %1507 = vmatprep.subr.mxu0 0.0
    %1508 = vmatpush1.msra.mxu0 %v425
    %1509 = vmatprep.subr.mxu0 0.0
    %1510 = vmatpush1.msra.mxu0 %v426
    %1511 = vmatprep.subr.mxu0 0.0
    %1512 = vmatpush1.msra.mxu0 0.0
    %1513 = vmatprep.subr.mxu0 0.0
    %1514 = vmatpush1.msra.mxu0 0.0
    %1515 = vmatprep.subr.mxu0 0.0
    %1516 = vmatpush1.msra.mxu0 0.0
    %1517 = vmatprep.subr.mxu0 0.0
    %1518 = vmatpush1.msra.mxu0 0.0
    %1519 = vmatprep.subr.mxu0 0.0
    %1520 = vmatpush1.msra.mxu0 0.0
    %1521 = vmatprep.subr.mxu0 0.0
    %1522 = vmatpush1.msra.mxu0 0.0
    %1523 = vmatprep.subr.mxu0 0.0
    %1524 = vmatpush1.msra.mxu0 0.0
    %1525 = vmatprep.subr.mxu0 0.0
    %1526 = vmatpush1.msra.mxu0 0.0
    %1527 = vmatprep.subr.mxu0 0.0
    %1528 = vmatpush1.msra.mxu0 0.0
    %1529 = vmatprep.subr.mxu0 0.0
    %1530 = vmatpush1.msra.mxu0 0.0
    %1531 = vmatprep.subr.mxu0 0.0
    %1532 = vmatpush1.msra.mxu0 0.0
    %1533 = vmatprep.subr.mxu0 0.0
    %1534 = vmatpush1.msra.mxu0 0.0
    %1535 = vmatprep.subr.mxu0 0.0
    %1536 = vmatpush1.msra.mxu0 0.0
    %1537 = vmatprep.subr.mxu0 0.0
    %1538 = vmatpush1.msra.mxu0 0.0
    %1539 = vmatprep.subr.mxu0 0.0
    %1540 = vmatpush1.msra.mxu0 0.0
    %1541 = vmatprep.subr.mxu0 0.0
    %1542 = vmatpush1.msra.mxu0 0.0
    %1543 = vmatprep.subr.mxu0 0.0
    %1544 = vmatpush1.msra.mxu0 0.0
    %1545 = vmatprep.subr.mxu0 0.0
    %1546 = vmatpush1.msra.mxu0 0.0
    %1547 = vmatprep.subr.mxu0 0.0
    %1548 = vmatpush1.msra.mxu0 0.0
    %1549 = vmatprep.subr.mxu0 0.0
    %1550 = vmatpush1.msra.mxu0 0.0
    %1551 = vmatprep.subr.mxu0 0.0
    %1552 = vmatpush1.msra.mxu0 0.0
    %1553 = vmatprep.subr.mxu0 0.0
    %1554 = vmatpush1.msra.mxu0 0.0
    %1555 = vmatprep.subr.mxu0 0.0
    %1556 = vmatpush1.msra.mxu0 0.0
    %1557 = vmatprep.subr.mxu0 0.0
    %1558 = vmatpush1.msra.mxu0 0.0
    %1559 = vmatprep.subr.mxu0 0.0
    %1560 = vmatpush1.msra.mxu0 0.0
    %1561 = vmatprep.subr.mxu0 0.0
    %1562 = vmatpush1.msra.mxu0 0.0
    %1563 = vmatprep.subr.mxu0 0.0
    %1564 = vmatpush1.msra.mxu0 0.0
    %1565 = vmatprep.subr.mxu0 0.0
    %1566 = vmatpush1.msra.mxu0 0.0
    %1567 = vmatprep.mubr.f32.mxu0 0.0
    %1568 = vmatmul.mubr.f32.gmra.mrb[0].mxu0 %v1300
    %v1569 = vpop.f32.mrb[0].mxu0
    %v1570 = vadd.f32 %v447, %v1569
    %v1571 = vpop.f32.mrb[0].mxu0
    %1572 = vdwg.mxu0
    %v1573 = vxor.u32 %v1570, 2147483648
    %v1574 = vmul.f32 %v1573, 1.442695
    %v1575 = vpow.pop %v1574
    %v1576 = vadd.f32 %v1575, 1.0
    %v1577 = vrcp.pop %v1576
    %v1578 = vmul.f32 1.0, %v1577
    %v1579 = vtanh.pop %v1570
    %v1580 = vmul.f32 %v1578, %v1220
    %1582 = vrot.lane.b32.xlu0 %v1579, 64
    %v1583 = vpop.permute.xlu0 %1582
    %v1585 = vmul.f32 %v1578, %v1583
    %1587 = vrot.lane.b32.xlu0 %v1585, 32
    %v1588 = vpop.permute.xlu0 %1587
    %v1590 = vadd.f32 %v1580, %v1588
    %v1591 = vtanh.pop %v1590
    %1593 = vrot.lane.b32.xlu0 %v1591, 64
    %v1594 = vpop.permute.xlu0 %1593
    %v1596 = vmul.f32 %v1578, %v1594
    %1597 = vmatprep.subr.mxu0 0.0
    %1598 = vmatpush1.msra.mxu0 %v432
    %1599 = vmatprep.subr.mxu0 0.0
    %1600 = vmatpush1.msra.mxu0 %v433
    %1601 = vmatprep.subr.mxu0 0.0
    %1602 = vmatpush1.msra.mxu0 %v434
    %1603 = vmatprep.subr.mxu0 0.0
    %1604 = vmatpush1.msra.mxu0 %v435
    %1605 = vmatprep.subr.mxu0 0.0
    %1606 = vmatpush1.msra.mxu0 0.0
    %1607 = vmatprep.subr.mxu0 0.0
    %1608 = vmatpush1.msra.mxu0 0.0
    %1609 = vmatprep.subr.mxu0 0.0
    %1610 = vmatpush1.msra.mxu0 0.0
    %1611 = vmatprep.subr.mxu0 0.0
    %1612 = vmatpush1.msra.mxu0 0.0
    %1613 = vmatprep.subr.mxu0 0.0
    %1614 = vmatpush1.msra.mxu0 0.0
    %1615 = vmatprep.subr.mxu0 0.0
    %1616 = vmatpush1.msra.mxu0 0.0
    %1617 = vmatprep.subr.mxu0 0.0
    %1618 = vmatpush1.msra.mxu0 0.0
    %1619 = vmatprep.subr.mxu0 0.0
    %1620 = vmatpush1.msra.mxu0 0.0
    %1621 = vmatprep.subr.mxu0 0.0
    %1622 = vmatpush1.msra.mxu0 0.0
    %1623 = vmatprep.subr.mxu0 0.0
    %1624 = vmatpush1.msra.mxu0 0.0
    %1625 = vmatprep.subr.mxu0 0.0
    %1626 = vmatpush1.msra.mxu0 0.0
    %1627 = vmatprep.subr.mxu0 0.0
    %1628 = vmatpush1.msra.mxu0 0.0
    %1629 = vmatprep.subr.mxu0 0.0
    %1630 = vmatpush1.msra.mxu0 0.0
    %1631 = vmatprep.subr.mxu0 0.0
    %1632 = vmatpush1.msra.mxu0 0.0
    %1633 = vmatprep.subr.mxu0 0.0
    %1634 = vmatpush1.msra.mxu0 0.0
    %1635 = vmatprep.subr.mxu0 0.0
    %1636 = vmatpush1.msra.mxu0 0.0
    %1637 = vmatprep.subr.mxu0 0.0
    %1638 = vmatpush1.msra.mxu0 0.0
    %1639 = vmatprep.subr.mxu0 0.0
    %1640 = vmatpush1.msra.mxu0 0.0
    %1641 = vmatprep.subr.mxu0 0.0
    %1642 = vmatpush1.msra.mxu0 0.0
    %1643 = vmatprep.subr.mxu0 0.0
    %1644 = vmatpush1.msra.mxu0 0.0
    %1645 = vmatprep.subr.mxu0 0.0
    %1646 = vmatpush1.msra.mxu0 0.0
    %1647 = vmatprep.subr.mxu0 0.0
    %1648 = vmatpush1.msra.mxu0 0.0
    %1649 = vmatprep.subr.mxu0 0.0
    %1650 = vmatpush1.msra.mxu0 0.0
    %1651 = vmatprep.subr.mxu0 0.0
    %1652 = vmatpush1.msra.mxu0 0.0
    %1653 = vmatprep.subr.mxu0 0.0
    %1654 = vmatpush1.msra.mxu0 0.0
    %1655 = vmatprep.subr.mxu0 0.0
    %1656 = vmatpush1.msra.mxu0 0.0
    %1657 = vmatprep.subr.mxu0 0.0
    %1658 = vmatpush1.msra.mxu0 0.0
    %1659 = vmatprep.subr.mxu0 0.0
    %1660 = vmatpush1.msra.mxu0 0.0
    %1661 = vmatprep.mubr.f32.mxu0 0.0
    %1662 = vmatmul.mubr.f32.gmra.mrb[0].mxu0 %v1406
    %v1663 = vpop.f32.mrb[0].mxu0
    %v1664 = vadd.f32 0.0, %v1663
    %v1665 = vpop.f32.mrb[0].mxu0
    %1666 = vdwg.mxu0
    %1668 = vrot.lane.b32.xlu0 %v1596, 32
    %v1669 = vpop.permute.xlu0 %1668
    %v1670 = vsel %vm228, %v1669, 0
    %1672 = vmatprep.subr.mxu0 0.0
    %1673 = vmatpush1.msra.mxu0 %v428
    %1674 = vmatprep.subr.mxu0 0.0
    %1675 = vmatpush1.msra.mxu0 %v429
    %1676 = vmatprep.subr.mxu0 0.0
    %1677 = vmatpush1.msra.mxu0 %v430
    %1678 = vmatprep.subr.mxu0 0.0
    %1679 = vmatpush1.msra.mxu0 %v431
    %1680 = vmatprep.subr.mxu0 0.0
    %1681 = vmatpush1.msra.mxu0 0.0
    %1682 = vmatprep.subr.mxu0 0.0
    %1683 = vmatpush1.msra.mxu0 0.0
    %1684 = vmatprep.subr.mxu0 0.0
    %1685 = vmatpush1.msra.mxu0 0.0
    %1686 = vmatprep.subr.mxu0 0.0
    %1687 = vmatpush1.msra.mxu0 0.0
    %1688 = vmatprep.subr.mxu0 0.0
    %1689 = vmatpush1.msra.mxu0 0.0
    %1690 = vmatprep.subr.mxu0 0.0
    %1691 = vmatpush1.msra.mxu0 0.0
    %1692 = vmatprep.subr.mxu0 0.0
    %1693 = vmatpush1.msra.mxu0 0.0
    %1694 = vmatprep.subr.mxu0 0.0
    %1695 = vmatpush1.msra.mxu0 0.0
    %1696 = vmatprep.subr.mxu0 0.0
    %1697 = vmatpush1.msra.mxu0 0.0
    %1698 = vmatprep.subr.mxu0 0.0
    %1699 = vmatpush1.msra.mxu0 0.0
    %1700 = vmatprep.subr.mxu0 0.0
    %1701 = vmatpush1.msra.mxu0 0.0
    %1702 = vmatprep.subr.mxu0 0.0
    %1703 = vmatpush1.msra.mxu0 0.0
    %1704 = vmatprep.subr.mxu0 0.0
    %1705 = vmatpush1.msra.mxu0 0.0
    %1706 = vmatprep.subr.mxu0 0.0
    %1707 = vmatpush1.msra.mxu0 0.0
    %1708 = vmatprep.subr.mxu0 0.0
    %1709 = vmatpush1.msra.mxu0 0.0
    %1710 = vmatprep.subr.mxu0 0.0
    %1711 = vmatpush1.msra.mxu0 0.0
    %1712 = vmatprep.subr.mxu0 0.0
    %1713 = vmatpush1.msra.mxu0 0.0
    %1714 = vmatprep.subr.mxu0 0.0
    %1715 = vmatpush1.msra.mxu0 0.0
    %1716 = vmatprep.subr.mxu0 0.0
    %1717 = vmatpush1.msra.mxu0 0.0
    %1718 = vmatprep.subr.mxu0 0.0
    %1719 = vmatpush1.msra.mxu0 0.0
    %1720 = vmatprep.subr.mxu0 0.0
    %1721 = vmatpush1.msra.mxu0 0.0
    %1722 = vmatprep.subr.mxu0 0.0
    %1723 = vmatpush1.msra.mxu0 0.0
    %1724 = vmatprep.subr.mxu0 0.0
    %1725 = vmatpush1.msra.mxu0 0.0
    %1726 = vmatprep.subr.mxu0 0.0
    %1727 = vmatpush1.msra.mxu0 0.0
    %1728 = vmatprep.subr.mxu0 0.0
    %1729 = vmatpush1.msra.mxu0 0.0
    %1730 = vmatprep.subr.mxu0 0.0
    %1731 = vmatpush1.msra.mxu0 0.0
    %1732 = vmatprep.subr.mxu0 0.0
    %1733 = vmatpush1.msra.mxu0 0.0
    %1734 = vmatprep.subr.mxu0 0.0
    %1735 = vmatpush1.msra.mxu0 0.0
    %1736 = vmatprep.mubr.f32.mxu0 0.0
    %1737 = vmatmul.mubr.f32.gmra.mrb[0].mxu0 %v1670
    %v1738 = vpop.f32.mrb[0].mxu0
    %v1739 = vadd.f32 %v1664, %v1738
    %v1740 = vpop.f32.mrb[0].mxu0
    %1741 = vdwg.mxu0
    %v1742 = vadd.f32 %v1739, %v551
    %v1743 = vxor.u32 %v1742, 2147483648
    %v1744 = vmul.f32 %v1743, 1.442695
    %v1745 = vpow.pop %v1744
    %v1746 = vadd.f32 %v1745, 1.0
    %v1747 = vrcp.pop %v1746
    %v1748 = vmul.f32 1.0, %v1747
    %v1749 = vtanh.pop %v1742
    %v1750 = vmul.f32 %v1748, %v1390
    %1752 = vrot.lane.b32.xlu0 %v1749, 64
    %v1753 = vpop.permute.xlu0 %1752
    %v1755 = vmul.f32 %v1748, %v1753
    %1757 = vrot.lane.b32.xlu0 %v1755, 32
    %v1758 = vpop.permute.xlu0 %1757
    %v1760 = vadd.f32 %v1750, %v1758
    %v1761 = vtanh.pop %v1760
    %1763 = vrot.lane.b32.xlu0 %v1761, 64
    %v1764 = vpop.permute.xlu0 %1763
    %v1766 = vmul.f32 %v1748, %v1764
    %1768 = vset.pattern.permute.xlu0 3
    %1769 = vperm.xlu0 %1768, %v1502
    %v1770 = vpop.permute.xlu0 %1769
    %v1772 = vmul.f32 %v1770, %v1026
    %1774 = vrot.lane.b32.xlu0 %v1766, 32
    %v1775 = vpop.permute.xlu0 %1774
    %v1776 = vsel %vm228, %v1775, 0
    %1778 = vmatprep.subr.mxu0 0.0
    %1779 = vmatpush1.msra.mxu0 %v437
    %1780 = vmatprep.subr.mxu0 0.0
    %1781 = vmatpush1.msra.mxu0 %v438
    %1782 = vmatprep.subr.mxu0 0.0
    %1783 = vmatpush1.msra.mxu0 %v439
    %1784 = vmatprep.subr.mxu0 0.0
    %1785 = vmatpush1.msra.mxu0 %v440
    %1786 = vmatprep.subr.mxu0 0.0
    %1787 = vmatpush1.msra.mxu0 0.0
    %1788 = vmatprep.subr.mxu0 0.0
    %1789 = vmatpush1.msra.mxu0 0.0
    %1790 = vmatprep.subr.mxu0 0.0
    %1791 = vmatpush1.msra.mxu0 0.0
    %1792 = vmatprep.subr.mxu0 0.0
    %1793 = vmatpush1.msra.mxu0 0.0
    %1794 = vmatprep.subr.mxu0 0.0
    %1795 = vmatpush1.msra.mxu0 0.0
    %1796 = vmatprep.subr.mxu0 0.0
    %1797 = vmatpush1.msra.mxu0 0.0
    %1798 = vmatprep.subr.mxu0 0.0
    %1799 = vmatpush1.msra.mxu0 0.0
    %1800 = vmatprep.subr.mxu0 0.0
    %1801 = vmatpush1.msra.mxu0 0.0
    %1802 = vmatprep.subr.mxu0 0.0
    %1803 = vmatpush1.msra.mxu0 0.0
    %1804 = vmatprep.subr.mxu0 0.0
    %1805 = vmatpush1.msra.mxu0 0.0
    %1806 = vmatprep.subr.mxu0 0.0
    %1807 = vmatpush1.msra.mxu0 0.0
    %1808 = vmatprep.subr.mxu0 0.0
    %1809 = vmatpush1.msra.mxu0 0.0
    %1810 = vmatprep.subr.mxu0 0.0
    %1811 = vmatpush1.msra.mxu0 0.0
    %1812 = vmatprep.subr.mxu0 0.0
    %1813 = vmatpush1.msra.mxu0 0.0
    %1814 = vmatprep.subr.mxu0 0.0
    %1815 = vmatpush1.msra.mxu0 0.0
    %1816 = vmatprep.subr.mxu0 0.0
    %1817 = vmatpush1.msra.mxu0 0.0
    %1818 = vmatprep.subr.mxu0 0.0
    %1819 = vmatpush1.msra.mxu0 0.0
    %1820 = vmatprep.subr.mxu0 0.0
    %1821 = vmatpush1.msra.mxu0 0.0
    %1822 = vmatprep.subr.mxu0 0.0
    %1823 = vmatpush1.msra.mxu0 0.0
    %1824 = vmatprep.subr.mxu0 0.0
    %1825 = vmatpush1.msra.mxu0 0.0
    %1826 = vmatprep.subr.mxu0 0.0
    %1827 = vmatpush1.msra.mxu0 0.0
    %1828 = vmatprep.subr.mxu0 0.0
    %1829 = vmatpush1.msra.mxu0 0.0
    %1830 = vmatprep.subr.mxu0 0.0
    %1831 = vmatpush1.msra.mxu0 0.0
    %1832 = vmatprep.subr.mxu0 0.0
    %1833 = vmatpush1.msra.mxu0 0.0
    %1834 = vmatprep.subr.mxu0 0.0
    %1835 = vmatpush1.msra.mxu0 0.0
    %1836 = vmatprep.subr.mxu0 0.0
    %1837 = vmatpush1.msra.mxu0 0.0
    %1838 = vmatprep.subr.mxu0 0.0
    %1839 = vmatpush1.msra.mxu0 0.0
    %1840 = vmatprep.subr.mxu0 0.0
    %1841 = vmatpush1.msra.mxu0 0.0
    %1842 = vmatprep.mubr.f32.mxu0 0.0
    %1843 = vmatmul.mubr.f32.gmra.mrb[0].mxu0 %v1776
    %v1844 = vpop.f32.mrb[0].mxu0
    %v1845 = vadd.f32 %v1772, %v1844
    %v1846 = vpop.f32.mrb[0].mxu0
    %1847 = vdwg.mxu0
    %v1848 = vadd.f32 %v1845, %v650
    %v1849 = vxor.u32 %v1848, 2147483648
    %v1850 = vmul.f32 %v1849, 1.442695
    %v1851 = vpow.pop %v1850
    %v1852 = vadd.f32 %v1851, 1.0
    %v1853 = vrcp.pop %v1852
    %v1854 = vmul.f32 1.0, %v1853
    %v1855 = vtanh.pop %v1848
    %v1856 = vmul.f32 %v1854, %v1496
    %1858 = vrot.lane.b32.xlu0 %v1855, 126
    %v1859 = vpop.permute.xlu0 %1858
    %v1861 = vmul.f32 %v1854, %v1859
    %1863 = vrot.lane.b32.xlu0 %v1861, 1
    %v1864 = vpop.permute.xlu0 %1863
    %v1866 = vadd.f32 %v1856, %v1864
    %v1867 = vtanh.pop %v1866
    %1869 = vrot.lane.b32.xlu0 %v1867, 2
    %v1870 = vpop.permute.xlu0 %1869
    %v1872 = vmul.f32 %v1854, %v1870
    %1873 = vmatprep.subr.mxu0 0.0
    %1874 = vmatpush1.msra.mxu0 %v423
    %1875 = vmatprep.subr.mxu0 0.0
    %1876 = vmatpush1.msra.mxu0 %v424
    %1877 = vmatprep.subr.mxu0 0.0
    %1878 = vmatpush1.msra.mxu0 %v425
    %1879 = vmatprep.subr.mxu0 0.0
    %1880 = vmatpush1.msra.mxu0 %v426
    %1881 = vmatprep.subr.mxu0 0.0
    %1882 = vmatpush1.msra.mxu0 0.0
    %1883 = vmatprep.subr.mxu0 0.0
    %1884 = vmatpush1.msra.mxu0 0.0
    %1885 = vmatprep.subr.mxu0 0.0
    %1886 = vmatpush1.msra.mxu0 0.0
    %1887 = vmatprep.subr.mxu0 0.0
    %1888 = vmatpush1.msra.mxu0 0.0
    %1889 = vmatprep.subr.mxu0 0.0
    %1890 = vmatpush1.msra.mxu0 0.0
    %1891 = vmatprep.subr.mxu0 0.0
    %1892 = vmatpush1.msra.mxu0 0.0
    %1893 = vmatprep.subr.mxu0 0.0
    %1894 = vmatpush1.msra.mxu0 0.0
    %1895 = vmatprep.subr.mxu0 0.0
    %1896 = vmatpush1.msra.mxu0 0.0
    %1897 = vmatprep.subr.mxu0 0.0
    %1898 = vmatpush1.msra.mxu0 0.0
    %1899 = vmatprep.subr.mxu0 0.0
    %1900 = vmatpush1.msra.mxu0 0.0
    %1901 = vmatprep.subr.mxu0 0.0
    %1902 = vmatpush1.msra.mxu0 0.0
    %1903 = vmatprep.subr.mxu0 0.0
    %1904 = vmatpush1.msra.mxu0 0.0
    %1905 = vmatprep.subr.mxu0 0.0
    %1906 = vmatpush1.msra.mxu0 0.0
    %1907 = vmatprep.subr.mxu0 0.0
    %1908 = vmatpush1.msra.mxu0 0.0
    %1909 = vmatprep.subr.mxu0 0.0
    %1910 = vmatpush1.msra.mxu0 0.0
    %1911 = vmatprep.subr.mxu0 0.0
    %1912 = vmatpush1.msra.mxu0 0.0
    %1913 = vmatprep.subr.mxu0 0.0
    %1914 = vmatpush1.msra.mxu0 0.0
    %1915 = vmatprep.subr.mxu0 0.0
    %1916 = vmatpush1.msra.mxu0 0.0
    %1917 = vmatprep.subr.mxu0 0.0
    %1918 = vmatpush1.msra.mxu0 0.0
    %1919 = vmatprep.subr.mxu0 0.0
    %1920 = vmatpush1.msra.mxu0 0.0
    %1921 = vmatprep.subr.mxu0 0.0
    %1922 = vmatpush1.msra.mxu0 0.0
    %1923 = vmatprep.subr.mxu0 0.0
    %1924 = vmatpush1.msra.mxu0 0.0
    %1925 = vmatprep.subr.mxu0 0.0
    %1926 = vmatpush1.msra.mxu0 0.0
    %1927 = vmatprep.subr.mxu0 0.0
    %1928 = vmatpush1.msra.mxu0 0.0
    %1929 = vmatprep.subr.mxu0 0.0
    %1930 = vmatpush1.msra.mxu0 0.0
    %1931 = vmatprep.subr.mxu0 0.0
    %1932 = vmatpush1.msra.mxu0 0.0
    %1933 = vmatprep.subr.mxu0 0.0
    %1934 = vmatpush1.msra.mxu0 0.0
    %1935 = vmatprep.subr.mxu0 0.0
    %1936 = vmatpush1.msra.mxu0 0.0
    %1937 = vmatprep.mubr.f32.mxu0 0.0
    %1938 = vmatmul.mubr.f32.gmra.mrb[0].mxu0 %v1670
    %v1939 = vpop.f32.mrb[0].mxu0
    %v1940 = vadd.f32 %v447, %v1939
    %v1941 = vpop.f32.mrb[0].mxu0
    %1942 = vdwg.mxu0
    %v1943 = vxor.u32 %v1940, 2147483648
    %v1944 = vmul.f32 %v1943, 1.442695
    %v1945 = vpow.pop %v1944
    %v1946 = vadd.f32 %v1945, 1.0
    %v1947 = vrcp.pop %v1946
    %v1948 = vmul.f32 1.0, %v1947
    %v1949 = vtanh.pop %v1940
    %v1950 = vmul.f32 %v1948, %v1590
    %1952 = vrot.lane.b32.xlu0 %v1949, 64
    %v1953 = vpop.permute.xlu0 %1952
    %v1955 = vmul.f32 %v1948, %v1953
    %1957 = vrot.lane.b32.xlu0 %v1955, 32
    %v1958 = vpop.permute.xlu0 %1957
    %v1960 = vadd.f32 %v1950, %v1958
    %v1961 = vtanh.pop %v1960
    %1963 = vrot.lane.b32.xlu0 %v1961, 64
    %v1964 = vpop.permute.xlu0 %1963
    %v1966 = vmul.f32 %v1948, %v1964
    %1967 = vmatprep.subr.mxu0 0.0
    %1968 = vmatpush1.msra.mxu0 %v432
    %1969 = vmatprep.subr.mxu0 0.0
    %1970 = vmatpush1.msra.mxu0 %v433
    %1971 = vmatprep.subr.mxu0 0.0
    %1972 = vmatpush1.msra.mxu0 %v434
    %1973 = vmatprep.subr.mxu0 0.0
    %1974 = vmatpush1.msra.mxu0 %v435
    %1975 = vmatprep.subr.mxu0 0.0
    %1976 = vmatpush1.msra.mxu0 0.0
    %1977 = vmatprep.subr.mxu0 0.0
    %1978 = vmatpush1.msra.mxu0 0.0
    %1979 = vmatprep.subr.mxu0 0.0
    %1980 = vmatpush1.msra.mxu0 0.0
    %1981 = vmatprep.subr.mxu0 0.0
    %1982 = vmatpush1.msra.mxu0 0.0
    %1983 = vmatprep.subr.mxu0 0.0
    %1984 = vmatpush1.msra.mxu0 0.0
    %1985 = vmatprep.subr.mxu0 0.0
    %1986 = vmatpush1.msra.mxu0 0.0
    %1987 = vmatprep.subr.mxu0 0.0
    %1988 = vmatpush1.msra.mxu0 0.0
    %1989 = vmatprep.subr.mxu0 0.0
    %1990 = vmatpush1.msra.mxu0 0.0
    %1991 = vmatprep.subr.mxu0 0.0
    %1992 = vmatpush1.msra.mxu0 0.0
    %1993 = vmatprep.subr.mxu0 0.0
    %1994 = vmatpush1.msra.mxu0 0.0
    %1995 = vmatprep.subr.mxu0 0.0
    %1996 = vmatpush1.msra.mxu0 0.0
    %1997 = vmatprep.subr.mxu0 0.0
    %1998 = vmatpush1.msra.mxu0 0.0
    %1999 = vmatprep.subr.mxu0 0.0
    %2000 = vmatpush1.msra.mxu0 0.0
    %2001 = vmatprep.subr.mxu0 0.0
    %2002 = vmatpush1.msra.mxu0 0.0
    %2003 = vmatprep.subr.mxu0 0.0
    %2004 = vmatpush1.msra.mxu0 0.0
    %2005 = vmatprep.subr.mxu0 0.0
    %2006 = vmatpush1.msra.mxu0 0.0
    %2007 = vmatprep.subr.mxu0 0.0
    %2008 = vmatpush1.msra.mxu0 0.0
    %2009 = vmatprep.subr.mxu0 0.0
    %2010 = vmatpush1.msra.mxu0 0.0
    %2011 = vmatprep.subr.mxu0 0.0
    %2012 = vmatpush1.msra.mxu0 0.0
    %2013 = vmatprep.subr.mxu0 0.0
    %2014 = vmatpush1.msra.mxu0 0.0
    %2015 = vmatprep.subr.mxu0 0.0
    %2016 = vmatpush1.msra.mxu0 0.0
    %2017 = vmatprep.subr.mxu0 0.0
    %2018 = vmatpush1.msra.mxu0 0.0
    %2019 = vmatprep.subr.mxu0 0.0
    %2020 = vmatpush1.msra.mxu0 0.0
    %2021 = vmatprep.subr.mxu0 0.0
    %2022 = vmatpush1.msra.mxu0 0.0
    %2023 = vmatprep.subr.mxu0 0.0
    %2024 = vmatpush1.msra.mxu0 0.0
    %2025 = vmatprep.subr.mxu0 0.0
    %2026 = vmatpush1.msra.mxu0 0.0
    %2027 = vmatprep.subr.mxu0 0.0
    %2028 = vmatpush1.msra.mxu0 0.0
    %2029 = vmatprep.subr.mxu0 0.0
    %2030 = vmatpush1.msra.mxu0 0.0
    %2031 = vmatprep.mubr.f32.mxu0 0.0
    %2032 = vmatmul.mubr.f32.gmra.mrb[0].mxu0 %v1776
    %v2033 = vpop.f32.mrb[0].mxu0
    %v2034 = vadd.f32 0.0, %v2033
    %v2035 = vpop.f32.mrb[0].mxu0
    %2036 = vdwg.mxu0
    %2038 = vrot.lane.b32.xlu0 %v1966, 32
    %v2039 = vpop.permute.xlu0 %2038
    %v2040 = vsel %vm228, %v2039, 0
    %2042 = vmatprep.subr.mxu0 0.0
    %2043 = vmatpush1.msra.mxu0 %v428
    %2044 = vmatprep.subr.mxu0 0.0
    %2045 = vmatpush1.msra.mxu0 %v429
    %2046 = vmatprep.subr.mxu0 0.0
    %2047 = vmatpush1.msra.mxu0 %v430
    %2048 = vmatprep.subr.mxu0 0.0
    %2049 = vmatpush1.msra.mxu0 %v431
    %2050 = vmatprep.subr.mxu0 0.0
    %2051 = vmatpush1.msra.mxu0 0.0
    %2052 = vmatprep.subr.mxu0 0.0
    %2053 = vmatpush1.msra.mxu0 0.0
    %2054 = vmatprep.subr.mxu0 0.0
    %2055 = vmatpush1.msra.mxu0 0.0
    %2056 = vmatprep.subr.mxu0 0.0
    %2057 = vmatpush1.msra.mxu0 0.0
    %2058 = vmatprep.subr.mxu0 0.0
    %2059 = vmatpush1.msra.mxu0 0.0
    %2060 = vmatprep.subr.mxu0 0.0
    %2061 = vmatpush1.msra.mxu0 0.0
    %2062 = vmatprep.subr.mxu0 0.0
    %2063 = vmatpush1.msra.mxu0 0.0
    %2064 = vmatprep.subr.mxu0 0.0
    %2065 = vmatpush1.msra.mxu0 0.0
    %2066 = vmatprep.subr.mxu0 0.0
    %2067 = vmatpush1.msra.mxu0 0.0
    %2068 = vmatprep.subr.mxu0 0.0
    %2069 = vmatpush1.msra.mxu0 0.0
    %2070 = vmatprep.subr.mxu0 0.0
    %2071 = vmatpush1.msra.mxu0 0.0
    %2072 = vmatprep.subr.mxu0 0.0
    %2073 = vmatpush1.msra.mxu0 0.0
    %2074 = vmatprep.subr.mxu0 0.0
    %2075 = vmatpush1.msra.mxu0 0.0
    %2076 = vmatprep.subr.mxu0 0.0
    %2077 = vmatpush1.msra.mxu0 0.0
    %2078 = vmatprep.subr.mxu0 0.0
    %2079 = vmatpush1.msra.mxu0 0.0
    %2080 = vmatprep.subr.mxu0 0.0
    %2081 = vmatpush1.msra.mxu0 0.0
    %2082 = vmatprep.subr.mxu0 0.0
    %2083 = vmatpush1.msra.mxu0 0.0
    %2084 = vmatprep.subr.mxu0 0.0
    %2085 = vmatpush1.msra.mxu0 0.0
    %2086 = vmatprep.subr.mxu0 0.0
    %2087 = vmatpush1.msra.mxu0 0.0
    %2088 = vmatprep.subr.mxu0 0.0
    %2089 = vmatpush1.msra.mxu0 0.0
    %2090 = vmatprep.subr.mxu0 0.0
    %2091 = vmatpush1.msra.mxu0 0.0
    %2092 = vmatprep.subr.mxu0 0.0
    %2093 = vmatpush1.msra.mxu0 0.0
    %2094 = vmatprep.subr.mxu0 0.0
    %2095 = vmatpush1.msra.mxu0 0.0
    %2096 = vmatprep.subr.mxu0 0.0
    %2097 = vmatpush1.msra.mxu0 0.0
    %2098 = vmatprep.subr.mxu0 0.0
    %2099 = vmatpush1.msra.mxu0 0.0
    %2100 = vmatprep.subr.mxu0 0.0
    %2101 = vmatpush1.msra.mxu0 0.0
    %2102 = vmatprep.subr.mxu0 0.0
    %2103 = vmatpush1.msra.mxu0 0.0
    %2104 = vmatprep.subr.mxu0 0.0
    %2105 = vmatpush1.msra.mxu0 0.0
    %2106 = vmatprep.mubr.f32.mxu0 0.0
    %2107 = vmatmul.mubr.f32.gmra.mrb[0].mxu0 %v2040
    %v2108 = vpop.f32.mrb[0].mxu0
    %v2109 = vadd.f32 %v2034, %v2108
    %v2110 = vpop.f32.mrb[0].mxu0
    %2111 = vdwg.mxu0
    %v2112 = vadd.f32 %v2109, %v551
    %v2113 = vxor.u32 %v2112, 2147483648
    %v2114 = vmul.f32 %v2113, 1.442695
    %v2115 = vpow.pop %v2114
    %v2116 = vadd.f32 %v2115, 1.0
    %v2117 = vrcp.pop %v2116
    %v2118 = vmul.f32 1.0, %v2117
    %v2119 = vtanh.pop %v2112
    %v2120 = vmul.f32 %v2118, %v1760
    %2122 = vrot.lane.b32.xlu0 %v2119, 64
    %v2123 = vpop.permute.xlu0 %2122
    %v2125 = vmul.f32 %v2118, %v2123
    %2127 = vrot.lane.b32.xlu0 %v2125, 32
    %v2128 = vpop.permute.xlu0 %2127
    %v2130 = vadd.f32 %v2120, %v2128
    %v2131 = vtanh.pop %v2130
    %2133 = vrot.lane.b32.xlu0 %v2131, 64
    %v2134 = vpop.permute.xlu0 %2133
    %v2136 = vmul.f32 %v2118, %v2134
    %2138 = vset.pattern.permute.xlu0 3
    %2139 = vperm.xlu0 %2138, %v1872
    %v2140 = vpop.permute.xlu0 %2139
    %v2142 = vmul.f32 %v2140, %v1026
    %2144 = vrot.lane.b32.xlu0 %v2136, 32
    %v2145 = vpop.permute.xlu0 %2144
    %v2146 = vsel %vm228, %v2145, 0
    %2148 = vmatprep.subr.mxu0 0.0
    %2149 = vmatpush1.msra.mxu0 %v437
    %2150 = vmatprep.subr.mxu0 0.0
    %2151 = vmatpush1.msra.mxu0 %v438
    %2152 = vmatprep.subr.mxu0 0.0
    %2153 = vmatpush1.msra.mxu0 %v439
    %2154 = vmatprep.subr.mxu0 0.0
    %2155 = vmatpush1.msra.mxu0 %v440
    %2156 = vmatprep.subr.mxu0 0.0
    %2157 = vmatpush1.msra.mxu0 0.0
    %2158 = vmatprep.subr.mxu0 0.0
    %2159 = vmatpush1.msra.mxu0 0.0
    %2160 = vmatprep.subr.mxu0 0.0
    %2161 = vmatpush1.msra.mxu0 0.0
    %2162 = vmatprep.subr.mxu0 0.0
    %2163 = vmatpush1.msra.mxu0 0.0
    %2164 = vmatprep.subr.mxu0 0.0
    %2165 = vmatpush1.msra.mxu0 0.0
    %2166 = vmatprep.subr.mxu0 0.0
    %2167 = vmatpush1.msra.mxu0 0.0
    %2168 = vmatprep.subr.mxu0 0.0
    %2169 = vmatpush1.msra.mxu0 0.0
    %2170 = vmatprep.subr.mxu0 0.0
    %2171 = vmatpush1.msra.mxu0 0.0
    %2172 = vmatprep.subr.mxu0 0.0
    %2173 = vmatpush1.msra.mxu0 0.0
    %2174 = vmatprep.subr.mxu0 0.0
    %2175 = vmatpush1.msra.mxu0 0.0
    %2176 = vmatprep.subr.mxu0 0.0
    %2177 = vmatpush1.msra.mxu0 0.0
    %2178 = vmatprep.subr.mxu0 0.0
    %2179 = vmatpush1.msra.mxu0 0.0
    %2180 = vmatprep.subr.mxu0 0.0
    %2181 = vmatpush1.msra.mxu0 0.0
    %2182 = vmatprep.subr.mxu0 0.0
    %2183 = vmatpush1.msra.mxu0 0.0
    %2184 = vmatprep.subr.mxu0 0.0
    %2185 = vmatpush1.msra.mxu0 0.0
    %2186 = vmatprep.subr.mxu0 0.0
    %2187 = vmatpush1.msra.mxu0 0.0
    %2188 = vmatprep.subr.mxu0 0.0
    %2189 = vmatpush1.msra.mxu0 0.0
    %2190 = vmatprep.subr.mxu0 0.0
    %2191 = vmatpush1.msra.mxu0 0.0
    %2192 = vmatprep.subr.mxu0 0.0
    %2193 = vmatpush1.msra.mxu0 0.0
    %2194 = vmatprep.subr.mxu0 0.0
    %2195 = vmatpush1.msra.mxu0 0.0
    %2196 = vmatprep.subr.mxu0 0.0
    %2197 = vmatpush1.msra.mxu0 0.0
    %2198 = vmatprep.subr.mxu0 0.0
    %2199 = vmatpush1.msra.mxu0 0.0
    %2200 = vmatprep.subr.mxu0 0.0
    %2201 = vmatpush1.msra.mxu0 0.0
    %2202 = vmatprep.subr.mxu0 0.0
    %2203 = vmatpush1.msra.mxu0 0.0
    %2204 = vmatprep.subr.mxu0 0.0
    %2205 = vmatpush1.msra.mxu0 0.0
    %2206 = vmatprep.subr.mxu0 0.0
    %2207 = vmatpush1.msra.mxu0 0.0
    %2208 = vmatprep.subr.mxu0 0.0
    %2209 = vmatpush1.msra.mxu0 0.0
    %2210 = vmatprep.subr.mxu0 0.0
    %2211 = vmatpush1.msra.mxu0 0.0
    %2212 = vmatprep.mubr.f32.mxu0 0.0
    %2213 = vmatmul.mubr.f32.gmra.mrb[0].mxu0 %v2146
    %v2214 = vpop.f32.mrb[0].mxu0
    %v2215 = vadd.f32 %v2142, %v2214
    %v2216 = vpop.f32.mrb[0].mxu0
    %2217 = vdwg.mxu0
    %v2218 = vadd.f32 %v2215, %v650
    %v2219 = vxor.u32 %v2218, 2147483648
    %v2220 = vmul.f32 %v2219, 1.442695
    %v2221 = vpow.pop %v2220
    %v2222 = vadd.f32 %v2221, 1.0
    %v2223 = vrcp.pop %v2222
    %v2224 = vmul.f32 1.0, %v2223
    %v2225 = vtanh.pop %v2218
    %v2226 = vmul.f32 %v2224, %v1866
    %2228 = vrot.lane.b32.xlu0 %v2225, 126
    %v2229 = vpop.permute.xlu0 %2228
    %v2231 = vmul.f32 %v2224, %v2229
    %2233 = vrot.lane.b32.xlu0 %v2231, 1
    %v2234 = vpop.permute.xlu0 %2233
    %v2236 = vadd.f32 %v2226, %v2234
    %v2237 = vtanh.pop %v2236
    %2239 = vrot.lane.b32.xlu0 %v2237, 2
    %v2240 = vpop.permute.xlu0 %2239
    %v2242 = vmul.f32 %v2224, %v2240
    %2243 = vmatprep.subr.mxu0 0.0
    %2244 = vmatpush1.msra.mxu0 %v423
    %2245 = vmatprep.subr.mxu0 0.0
    %2246 = vmatpush1.msra.mxu0 %v424
    %2247 = vmatprep.subr.mxu0 0.0
    %2248 = vmatpush1.msra.mxu0 %v425
    %2249 = vmatprep.subr.mxu0 0.0
    %2250 = vmatpush1.msra.mxu0 %v426
    %2251 = vmatprep.subr.mxu0 0.0
    %2252 = vmatpush1.msra.mxu0 0.0
    %2253 = vmatprep.subr.mxu0 0.0
    %2254 = vmatpush1.msra.mxu0 0.0
    %2255 = vmatprep.subr.mxu0 0.0
    %2256 = vmatpush1.msra.mxu0 0.0
    %2257 = vmatprep.subr.mxu0 0.0
    %2258 = vmatpush1.msra.mxu0 0.0
    %2259 = vmatprep.subr.mxu0 0.0
    %2260 = vmatpush1.msra.mxu0 0.0
    %2261 = vmatprep.subr.mxu0 0.0
    %2262 = vmatpush1.msra.mxu0 0.0
    %2263 = vmatprep.subr.mxu0 0.0
    %2264 = vmatpush1.msra.mxu0 0.0
    %2265 = vmatprep.subr.mxu0 0.0
    %2266 = vmatpush1.msra.mxu0 0.0
    %2267 = vmatprep.subr.mxu0 0.0
    %2268 = vmatpush1.msra.mxu0 0.0
    %2269 = vmatprep.subr.mxu0 0.0
    %2270 = vmatpush1.msra.mxu0 0.0
    %2271 = vmatprep.subr.mxu0 0.0
    %2272 = vmatpush1.msra.mxu0 0.0
    %2273 = vmatprep.subr.mxu0 0.0
    %2274 = vmatpush1.msra.mxu0 0.0
    %2275 = vmatprep.subr.mxu0 0.0
    %2276 = vmatpush1.msra.mxu0 0.0
    %2277 = vmatprep.subr.mxu0 0.0
    %2278 = vmatpush1.msra.mxu0 0.0
    %2279 = vmatprep.subr.mxu0 0.0
    %2280 = vmatpush1.msra.mxu0 0.0
    %2281 = vmatprep.subr.mxu0 0.0
    %2282 = vmatpush1.msra.mxu0 0.0
    %2283 = vmatprep.subr.mxu0 0.0
    %2284 = vmatpush1.msra.mxu0 0.0
    %2285 = vmatprep.subr.mxu0 0.0
    %2286 = vmatpush1.msra.mxu0 0.0
    %2287 = vmatprep.subr.mxu0 0.0
    %2288 = vmatpush1.msra.mxu0 0.0
    %2289 = vmatprep.subr.mxu0 0.0
    %2290 = vmatpush1.msra.mxu0 0.0
    %2291 = vmatprep.subr.mxu0 0.0
    %2292 = vmatpush1.msra.mxu0 0.0
    %2293 = vmatprep.subr.mxu0 0.0
    %2294 = vmatpush1.msra.mxu0 0.0
    %2295 = vmatprep.subr.mxu0 0.0
    %2296 = vmatpush1.msra.mxu0 0.0
    %2297 = vmatprep.subr.mxu0 0.0
    %2298 = vmatpush1.msra.mxu0 0.0
    %2299 = vmatprep.subr.mxu0 0.0
    %2300 = vmatpush1.msra.mxu0 0.0
    %2301 = vmatprep.subr.mxu0 0.0
    %2302 = vmatpush1.msra.mxu0 0.0
    %2303 = vmatprep.subr.mxu0 0.0
    %2304 = vmatpush1.msra.mxu0 0.0
    %2305 = vmatprep.subr.mxu0 0.0
    %2306 = vmatpush1.msra.mxu0 0.0
    %2307 = vmatprep.mubr.f32.mxu0 0.0
    %2308 = vmatmul.mubr.f32.gmra.mrb[0].mxu0 %v2040
    %v2309 = vpop.f32.mrb[0].mxu0
    %v2310 = vadd.f32 %v447, %v2309
    %v2311 = vpop.f32.mrb[0].mxu0
    %2312 = vdwg.mxu0
    %v2313 = vxor.u32 %v2310, 2147483648
    %v2314 = vmul.f32 %v2313, 1.442695
    %v2315 = vpow.pop %v2314
    %v2316 = vadd.f32 %v2315, 1.0
    %v2317 = vrcp.pop %v2316
    %v2318 = vmul.f32 1.0, %v2317
    %v2319 = vtanh.pop %v2310
    %v2320 = vmul.f32 %v2318, %v1960
    %2322 = vrot.lane.b32.xlu0 %v2319, 64
    %v2323 = vpop.permute.xlu0 %2322
    %v2325 = vmul.f32 %v2318, %v2323
    %2327 = vrot.lane.b32.xlu0 %v2325, 32
    %v2328 = vpop.permute.xlu0 %2327
    %v2330 = vadd.f32 %v2320, %v2328
    %v2331 = vtanh.pop %v2330
    %2333 = vrot.lane.b32.xlu0 %v2331, 64
    %v2334 = vpop.permute.xlu0 %2333
    %v2336 = vmul.f32 %v2318, %v2334
    %2337 = vmatprep.subr.mxu0 0.0
    %2338 = vmatpush1.msra.mxu0 %v432
    %2339 = vmatprep.subr.mxu0 0.0
    %2340 = vmatpush1.msra.mxu0 %v433
    %2341 = vmatprep.subr.mxu0 0.0
    %2342 = vmatpush1.msra.mxu0 %v434
    %2343 = vmatprep.subr.mxu0 0.0
    %2344 = vmatpush1.msra.mxu0 %v435
    %2345 = vmatprep.subr.mxu0 0.0
    %2346 = vmatpush1.msra.mxu0 0.0
    %2347 = vmatprep.subr.mxu0 0.0
    %2348 = vmatpush1.msra.mxu0 0.0
    %2349 = vmatprep.subr.mxu0 0.0
    %2350 = vmatpush1.msra.mxu0 0.0
    %2351 = vmatprep.subr.mxu0 0.0
    %2352 = vmatpush1.msra.mxu0 0.0
    %2353 = vmatprep.subr.mxu0 0.0
    %2354 = vmatpush1.msra.mxu0 0.0
    %2355 = vmatprep.subr.mxu0 0.0
    %2356 = vmatpush1.msra.mxu0 0.0
    %2357 = vmatprep.subr.mxu0 0.0
    %2358 = vmatpush1.msra.mxu0 0.0
    %2359 = vmatprep.subr.mxu0 0.0
    %2360 = vmatpush1.msra.mxu0 0.0
    %2361 = vmatprep.subr.mxu0 0.0
    %2362 = vmatpush1.msra.mxu0 0.0
    %2363 = vmatprep.subr.mxu0 0.0
    %2364 = vmatpush1.msra.mxu0 0.0
    %2365 = vmatprep.subr.mxu0 0.0
    %2366 = vmatpush1.msra.mxu0 0.0
    %2367 = vmatprep.subr.mxu0 0.0
    %2368 = vmatpush1.msra.mxu0 0.0
    %2369 = vmatprep.subr.mxu0 0.0
    %2370 = vmatpush1.msra.mxu0 0.0
    %2371 = vmatprep.subr.mxu0 0.0
    %2372 = vmatpush1.msra.mxu0 0.0
    %2373 = vmatprep.subr.mxu0 0.0
    %2374 = vmatpush1.msra.mxu0 0.0
    %2375 = vmatprep.subr.mxu0 0.0
    %2376 = vmatpush1.msra.mxu0 0.0
    %2377 = vmatprep.subr.mxu0 0.0
    %2378 = vmatpush1.msra.mxu0 0.0
    %2379 = vmatprep.subr.mxu0 0.0
    %2380 = vmatpush1.msra.mxu0 0.0
    %2381 = vmatprep.subr.mxu0 0.0
    %2382 = vmatpush1.msra.mxu0 0.0
    %2383 = vmatprep.subr.mxu0 0.0
    %2384 = vmatpush1.msra.mxu0 0.0
    %2385 = vmatprep.subr.mxu0 0.0
    %2386 = vmatpush1.msra.mxu0 0.0
    %2387 = vmatprep.subr.mxu0 0.0
    %2388 = vmatpush1.msra.mxu0 0.0
    %2389 = vmatprep.subr.mxu0 0.0
    %2390 = vmatpush1.msra.mxu0 0.0
    %2391 = vmatprep.subr.mxu0 0.0
    %2392 = vmatpush1.msra.mxu0 0.0
    %2393 = vmatprep.subr.mxu0 0.0
    %2394 = vmatpush1.msra.mxu0 0.0
    %2395 = vmatprep.subr.mxu0 0.0
    %2396 = vmatpush1.msra.mxu0 0.0
    %2397 = vmatprep.subr.mxu0 0.0
    %2398 = vmatpush1.msra.mxu0 0.0
    %2399 = vmatprep.subr.mxu0 0.0
    %2400 = vmatpush1.msra.mxu0 0.0
    %2401 = vmatprep.mubr.f32.mxu0 0.0
    %2402 = vmatmul.mubr.f32.gmra.mrb[0].mxu0 %v2146
    %v2403 = vpop.f32.mrb[0].mxu0
    %v2404 = vadd.f32 0.0, %v2403
    %v2405 = vpop.f32.mrb[0].mxu0
    %2406 = vdwg.mxu0
    %2408 = vrot.lane.b32.xlu0 %v2336, 32
    %v2409 = vpop.permute.xlu0 %2408
    %v2410 = vsel %vm228, %v2409, 0
    %2412 = vmatprep.subr.mxu0 0.0
    %2413 = vmatpush1.msra.mxu0 %v428
    %2414 = vmatprep.subr.mxu0 0.0
    %2415 = vmatpush1.msra.mxu0 %v429
    %2416 = vmatprep.subr.mxu0 0.0
    %2417 = vmatpush1.msra.mxu0 %v430
    %2418 = vmatprep.subr.mxu0 0.0
    %2419 = vmatpush1.msra.mxu0 %v431
    %2420 = vmatprep.subr.mxu0 0.0
    %2421 = vmatpush1.msra.mxu0 0.0
    %2422 = vmatprep.subr.mxu0 0.0
    %2423 = vmatpush1.msra.mxu0 0.0
    %2424 = vmatprep.subr.mxu0 0.0
    %2425 = vmatpush1.msra.mxu0 0.0
    %2426 = vmatprep.subr.mxu0 0.0
    %2427 = vmatpush1.msra.mxu0 0.0
    %2428 = vmatprep.subr.mxu0 0.0
    %2429 = vmatpush1.msra.mxu0 0.0
    %2430 = vmatprep.subr.mxu0 0.0
    %2431 = vmatpush1.msra.mxu0 0.0
    %2432 = vmatprep.subr.mxu0 0.0
    %2433 = vmatpush1.msra.mxu0 0.0
    %2434 = vmatprep.subr.mxu0 0.0
    %2435 = vmatpush1.msra.mxu0 0.0
    %2436 = vmatprep.subr.mxu0 0.0
    %2437 = vmatpush1.msra.mxu0 0.0
    %2438 = vmatprep.subr.mxu0 0.0
    %2439 = vmatpush1.msra.mxu0 0.0
    %2440 = vmatprep.subr.mxu0 0.0
    %2441 = vmatpush1.msra.mxu0 0.0
    %2442 = vmatprep.subr.mxu0 0.0
    %2443 = vmatpush1.msra.mxu0 0.0
    %2444 = vmatprep.subr.mxu0 0.0
    %2445 = vmatpush1.msra.mxu0 0.0
    %2446 = vmatprep.subr.mxu0 0.0
    %2447 = vmatpush1.msra.mxu0 0.0
    %2448 = vmatprep.subr.mxu0 0.0
    %2449 = vmatpush1.msra.mxu0 0.0
    %2450 = vmatprep.subr.mxu0 0.0
    %2451 = vmatpush1.msra.mxu0 0.0
    %2452 = vmatprep.subr.mxu0 0.0
    %2453 = vmatpush1.msra.mxu0 0.0
    %2454 = vmatprep.subr.mxu0 0.0
    %2455 = vmatpush1.msra.mxu0 0.0
    %2456 = vmatprep.subr.mxu0 0.0
    %2457 = vmatpush1.msra.mxu0 0.0
    %2458 = vmatprep.subr.mxu0 0.0
    %2459 = vmatpush1.msra.mxu0 0.0
    %2460 = vmatprep.subr.mxu0 0.0
    %2461 = vmatpush1.msra.mxu0 0.0
    %2462 = vmatprep.subr.mxu0 0.0
    %2463 = vmatpush1.msra.mxu0 0.0
    %2464 = vmatprep.subr.mxu0 0.0
    %2465 = vmatpush1.msra.mxu0 0.0
    %2466 = vmatprep.subr.mxu0 0.0
    %2467 = vmatpush1.msra.mxu0 0.0
    %2468 = vmatprep.subr.mxu0 0.0
    %2469 = vmatpush1.msra.mxu0 0.0
    %2470 = vmatprep.subr.mxu0 0.0
    %2471 = vmatpush1.msra.mxu0 0.0
    %2472 = vmatprep.subr.mxu0 0.0
    %2473 = vmatpush1.msra.mxu0 0.0
    %2474 = vmatprep.subr.mxu0 0.0
    %2475 = vmatpush1.msra.mxu0 0.0
    %2476 = vmatprep.mubr.f32.mxu0 0.0
    %2477 = vmatmul.mubr.f32.gmra.mrb[0].mxu0 %v2410
    %v2478 = vpop.f32.mrb[0].mxu0
    %v2479 = vadd.f32 %v2404, %v2478
    %v2480 = vpop.f32.mrb[0].mxu0
    %2481 = vdwg.mxu0
    %v2482 = vadd.f32 %v2479, %v551
    %v2483 = vxor.u32 %v2482, 2147483648
    %v2484 = vmul.f32 %v2483, 1.442695
    %v2485 = vpow.pop %v2484
    %v2486 = vadd.f32 %v2485, 1.0
    %v2487 = vrcp.pop %v2486
    %v2488 = vmul.f32 1.0, %v2487
    %v2489 = vtanh.pop %v2482
    %v2490 = vmul.f32 %v2488, %v2130
    %2492 = vrot.lane.b32.xlu0 %v2489, 64
    %v2493 = vpop.permute.xlu0 %2492
    %v2495 = vmul.f32 %v2488, %v2493
    %2497 = vrot.lane.b32.xlu0 %v2495, 32
    %v2498 = vpop.permute.xlu0 %2497
    %v2500 = vadd.f32 %v2490, %v2498
    %v2501 = vtanh.pop %v2500
    %2503 = vrot.lane.b32.xlu0 %v2501, 64
    %v2504 = vpop.permute.xlu0 %2503
    %v2506 = vmul.f32 %v2488, %v2504
    %2508 = vset.pattern.permute.xlu0 3
    %2509 = vperm.xlu0 %2508, %v2242
    %v2510 = vpop.permute.xlu0 %2509
    %v2512 = vmul.f32 %v2510, %v1026
    %2514 = vrot.lane.b32.xlu0 %v2506, 32
    %v2515 = vpop.permute.xlu0 %2514
    %v2516 = vsel %vm228, %v2515, 0
    %2518 = vmatprep.subr.mxu0 0.0
    %2519 = vmatpush1.msra.mxu0 %v437
    %2520 = vmatprep.subr.mxu0 0.0
    %2521 = vmatpush1.msra.mxu0 %v438
    %2522 = vmatprep.subr.mxu0 0.0
    %2523 = vmatpush1.msra.mxu0 %v439
    %2524 = vmatprep.subr.mxu0 0.0
    %2525 = vmatpush1.msra.mxu0 %v440
    %2526 = vmatprep.subr.mxu0 0.0
    %2527 = vmatpush1.msra.mxu0 0.0
    %2528 = vmatprep.subr.mxu0 0.0
    %2529 = vmatpush1.msra.mxu0 0.0
    %2530 = vmatprep.subr.mxu0 0.0
    %2531 = vmatpush1.msra.mxu0 0.0
    %2532 = vmatprep.subr.mxu0 0.0
    %2533 = vmatpush1.msra.mxu0 0.0
    %2534 = vmatprep.subr.mxu0 0.0
    %2535 = vmatpush1.msra.mxu0 0.0
    %2536 = vmatprep.subr.mxu0 0.0
    %2537 = vmatpush1.msra.mxu0 0.0
    %2538 = vmatprep.subr.mxu0 0.0
    %2539 = vmatpush1.msra.mxu0 0.0
    %2540 = vmatprep.subr.mxu0 0.0
    %2541 = vmatpush1.msra.mxu0 0.0
    %2542 = vmatprep.subr.mxu0 0.0
    %2543 = vmatpush1.msra.mxu0 0.0
    %2544 = vmatprep.subr.mxu0 0.0
    %2545 = vmatpush1.msra.mxu0 0.0
    %2546 = vmatprep.subr.mxu0 0.0
    %2547 = vmatpush1.msra.mxu0 0.0
    %2548 = vmatprep.subr.mxu0 0.0
    %2549 = vmatpush1.msra.mxu0 0.0
    %2550 = vmatprep.subr.mxu0 0.0
    %2551 = vmatpush1.msra.mxu0 0.0
    %2552 = vmatprep.subr.mxu0 0.0
    %2553 = vmatpush1.msra.mxu0 0.0
    %2554 = vmatprep.subr.mxu0 0.0
    %2555 = vmatpush1.msra.mxu0 0.0
    %2556 = vmatprep.subr.mxu0 0.0
    %2557 = vmatpush1.msra.mxu0 0.0
    %2558 = vmatprep.subr.mxu0 0.0
    %2559 = vmatpush1.msra.mxu0 0.0
    %2560 = vmatprep.subr.mxu0 0.0
    %2561 = vmatpush1.msra.mxu0 0.0
    %2562 = vmatprep.subr.mxu0 0.0
    %2563 = vmatpush1.msra.mxu0 0.0
    %2564 = vmatprep.subr.mxu0 0.0
    %2565 = vmatpush1.msra.mxu0 0.0
    %2566 = vmatprep.subr.mxu0 0.0
    %2567 = vmatpush1.msra.mxu0 0.0
    %2568 = vmatprep.subr.mxu0 0.0
    %2569 = vmatpush1.msra.mxu0 0.0
    %2570 = vmatprep.subr.mxu0 0.0
    %2571 = vmatpush1.msra.mxu0 0.0
    %2572 = vmatprep.subr.mxu0 0.0
    %2573 = vmatpush1.msra.mxu0 0.0
    %2574 = vmatprep.subr.mxu0 0.0
    %2575 = vmatpush1.msra.mxu0 0.0
    %2576 = vmatprep.subr.mxu0 0.0
    %2577 = vmatpush1.msra.mxu0 0.0
    %2578 = vmatprep.subr.mxu0 0.0
    %2579 = vmatpush1.msra.mxu0 0.0
    %2580 = vmatprep.subr.mxu0 0.0
    %2581 = vmatpush1.msra.mxu0 0.0
    %2582 = vmatprep.mubr.f32.mxu0 0.0
    %2583 = vmatmul.mubr.f32.gmra.mrb[0].mxu0 %v2516
    %v2584 = vpop.f32.mrb[0].mxu0
    %v2585 = vadd.f32 %v2512, %v2584
    %v2586 = vpop.f32.mrb[0].mxu0
    %2587 = vdwg.mxu0
    %v2588 = vadd.f32 %v2585, %v650
    %v2589 = vxor.u32 %v2588, 2147483648
    %v2590 = vmul.f32 %v2589, 1.442695
    %v2591 = vpow.pop %v2590
    %v2592 = vadd.f32 %v2591, 1.0
    %v2593 = vrcp.pop %v2592
    %v2594 = vmul.f32 1.0, %v2593
    %v2595 = vtanh.pop %v2588
    %v2596 = vmul.f32 %v2594, %v2236
    %2598 = vrot.lane.b32.xlu0 %v2595, 126
    %v2599 = vpop.permute.xlu0 %2598
    %v2601 = vmul.f32 %v2594, %v2599
    %2603 = vrot.lane.b32.xlu0 %v2601, 1
    %v2604 = vpop.permute.xlu0 %2603
    %v2606 = vadd.f32 %v2596, %v2604
    %v2607 = vtanh.pop %v2606
    %2609 = vrot.lane.b32.xlu0 %v2607, 2
    %v2610 = vpop.permute.xlu0 %2609
    %v2612 = vmul.f32 %v2594, %v2610
    %2613 = vmatprep.subr.mxu0 0.0
    %2614 = vmatpush1.msra.mxu0 %v423
    %2615 = vmatprep.subr.mxu0 0.0
    %2616 = vmatpush1.msra.mxu0 %v424
    %2617 = vmatprep.subr.mxu0 0.0
    %2618 = vmatpush1.msra.mxu0 %v425
    %2619 = vmatprep.subr.mxu0 0.0
    %2620 = vmatpush1.msra.mxu0 %v426
    %2621 = vmatprep.subr.mxu0 0.0
    %2622 = vmatpush1.msra.mxu0 0.0
    %2623 = vmatprep.subr.mxu0 0.0
    %2624 = vmatpush1.msra.mxu0 0.0
    %2625 = vmatprep.subr.mxu0 0.0
    %2626 = vmatpush1.msra.mxu0 0.0
    %2627 = vmatprep.subr.mxu0 0.0
    %2628 = vmatpush1.msra.mxu0 0.0
    %2629 = vmatprep.subr.mxu0 0.0
    %2630 = vmatpush1.msra.mxu0 0.0
    %2631 = vmatprep.subr.mxu0 0.0
    %2632 = vmatpush1.msra.mxu0 0.0
    %2633 = vmatprep.subr.mxu0 0.0
    %2634 = vmatpush1.msra.mxu0 0.0
    %2635 = vmatprep.subr.mxu0 0.0
    %2636 = vmatpush1.msra.mxu0 0.0
    %2637 = vmatprep.subr.mxu0 0.0
    %2638 = vmatpush1.msra.mxu0 0.0
    %2639 = vmatprep.subr.mxu0 0.0
    %2640 = vmatpush1.msra.mxu0 0.0
    %2641 = vmatprep.subr.mxu0 0.0
    %2642 = vmatpush1.msra.mxu0 0.0
    %2643 = vmatprep.subr.mxu0 0.0
    %2644 = vmatpush1.msra.mxu0 0.0
    %2645 = vmatprep.subr.mxu0 0.0
    %2646 = vmatpush1.msra.mxu0 0.0
    %2647 = vmatprep.subr.mxu0 0.0
    %2648 = vmatpush1.msra.mxu0 0.0
    %2649 = vmatprep.subr.mxu0 0.0
    %2650 = vmatpush1.msra.mxu0 0.0
    %2651 = vmatprep.subr.mxu0 0.0
    %2652 = vmatpush1.msra.mxu0 0.0
    %2653 = vmatprep.subr.mxu0 0.0
    %2654 = vmatpush1.msra.mxu0 0.0
    %2655 = vmatprep.subr.mxu0 0.0
    %2656 = vmatpush1.msra.mxu0 0.0
    %2657 = vmatprep.subr.mxu0 0.0
    %2658 = vmatpush1.msra.mxu0 0.0
    %2659 = vmatprep.subr.mxu0 0.0
    %2660 = vmatpush1.msra.mxu0 0.0
    %2661 = vmatprep.subr.mxu0 0.0
    %2662 = vmatpush1.msra.mxu0 0.0
    %2663 = vmatprep.subr.mxu0 0.0
    %2664 = vmatpush1.msra.mxu0 0.0
    %2665 = vmatprep.subr.mxu0 0.0
    %2666 = vmatpush1.msra.mxu0 0.0
    %2667 = vmatprep.subr.mxu0 0.0
    %2668 = vmatpush1.msra.mxu0 0.0
    %2669 = vmatprep.subr.mxu0 0.0
    %2670 = vmatpush1.msra.mxu0 0.0
    %2671 = vmatprep.subr.mxu0 0.0
    %2672 = vmatpush1.msra.mxu0 0.0
    %2673 = vmatprep.subr.mxu0 0.0
    %2674 = vmatpush1.msra.mxu0 0.0
    %2675 = vmatprep.subr.mxu0 0.0
    %2676 = vmatpush1.msra.mxu0 0.0
    %2677 = vmatprep.mubr.f32.mxu0 0.0
    %2678 = vmatmul.mubr.f32.gmra.mrb[0].mxu0 %v2410
    %v2679 = vpop.f32.mrb[0].mxu0
    %v2680 = vadd.f32 %v447, %v2679
    %v2681 = vpop.f32.mrb[0].mxu0
    %2682 = vdwg.mxu0
    %v2683 = vxor.u32 %v2680, 2147483648
    %v2684 = vmul.f32 %v2683, 1.442695
    %v2685 = vpow.pop %v2684
    %v2686 = vadd.f32 %v2685, 1.0
    %v2687 = vrcp.pop %v2686
    %v2688 = vmul.f32 1.0, %v2687
    %v2689 = vtanh.pop %v2680
    %v2690 = vmul.f32 %v2688, %v2330
    %2692 = vrot.lane.b32.xlu0 %v2689, 64
    %v2693 = vpop.permute.xlu0 %2692
    %v2695 = vmul.f32 %v2688, %v2693
    %2697 = vrot.lane.b32.xlu0 %v2695, 32
    %v2698 = vpop.permute.xlu0 %2697
    %v2700 = vadd.f32 %v2690, %v2698
    %v2701 = vtanh.pop %v2700
    %2703 = vrot.lane.b32.xlu0 %v2701, 64
    %v2704 = vpop.permute.xlu0 %2703
    %v2706 = vmul.f32 %v2688, %v2704
    %2707 = vmatprep.subr.mxu0 0.0
    %2708 = vmatpush1.msra.mxu0 %v432
    %2709 = vmatprep.subr.mxu0 0.0
    %2710 = vmatpush1.msra.mxu0 %v433
    %2711 = vmatprep.subr.mxu0 0.0
    %2712 = vmatpush1.msra.mxu0 %v434
    %2713 = vmatprep.subr.mxu0 0.0
    %2714 = vmatpush1.msra.mxu0 %v435
    %2715 = vmatprep.subr.mxu0 0.0
    %2716 = vmatpush1.msra.mxu0 0.0
    %2717 = vmatprep.subr.mxu0 0.0
    %2718 = vmatpush1.msra.mxu0 0.0
    %2719 = vmatprep.subr.mxu0 0.0
    %2720 = vmatpush1.msra.mxu0 0.0
    %2721 = vmatprep.subr.mxu0 0.0
    %2722 = vmatpush1.msra.mxu0 0.0
    %2723 = vmatprep.subr.mxu0 0.0
    %2724 = vmatpush1.msra.mxu0 0.0
    %2725 = vmatprep.subr.mxu0 0.0
    %2726 = vmatpush1.msra.mxu0 0.0
    %2727 = vmatprep.subr.mxu0 0.0
    %2728 = vmatpush1.msra.mxu0 0.0
    %2729 = vmatprep.subr.mxu0 0.0
    %2730 = vmatpush1.msra.mxu0 0.0
    %2731 = vmatprep.subr.mxu0 0.0
    %2732 = vmatpush1.msra.mxu0 0.0
    %2733 = vmatprep.subr.mxu0 0.0
    %2734 = vmatpush1.msra.mxu0 0.0
    %2735 = vmatprep.subr.mxu0 0.0
    %2736 = vmatpush1.msra.mxu0 0.0
    %2737 = vmatprep.subr.mxu0 0.0
    %2738 = vmatpush1.msra.mxu0 0.0
    %2739 = vmatprep.subr.mxu0 0.0
    %2740 = vmatpush1.msra.mxu0 0.0
    %2741 = vmatprep.subr.mxu0 0.0
    %2742 = vmatpush1.msra.mxu0 0.0
    %2743 = vmatprep.subr.mxu0 0.0
    %2744 = vmatpush1.msra.mxu0 0.0
    %2745 = vmatprep.subr.mxu0 0.0
    %2746 = vmatpush1.msra.mxu0 0.0
    %2747 = vmatprep.subr.mxu0 0.0
    %2748 = vmatpush1.msra.mxu0 0.0
    %2749 = vmatprep.subr.mxu0 0.0
    %2750 = vmatpush1.msra.mxu0 0.0
    %2751 = vmatprep.subr.mxu0 0.0
    %2752 = vmatpush1.msra.mxu0 0.0
    %2753 = vmatprep.subr.mxu0 0.0
    %2754 = vmatpush1.msra.mxu0 0.0
    %2755 = vmatprep.subr.mxu0 0.0
    %2756 = vmatpush1.msra.mxu0 0.0
    %2757 = vmatprep.subr.mxu0 0.0
    %2758 = vmatpush1.msra.mxu0 0.0
    %2759 = vmatprep.subr.mxu0 0.0
    %2760 = vmatpush1.msra.mxu0 0.0
    %2761 = vmatprep.subr.mxu0 0.0
    %2762 = vmatpush1.msra.mxu0 0.0
    %2763 = vmatprep.subr.mxu0 0.0
    %2764 = vmatpush1.msra.mxu0 0.0
    %2765 = vmatprep.subr.mxu0 0.0
    %2766 = vmatpush1.msra.mxu0 0.0
    %2767 = vmatprep.subr.mxu0 0.0
    %2768 = vmatpush1.msra.mxu0 0.0
    %2769 = vmatprep.subr.mxu0 0.0
    %2770 = vmatpush1.msra.mxu0 0.0
    %2771 = vmatprep.mubr.f32.mxu0 0.0
    %2772 = vmatmul.mubr.f32.gmra.mrb[0].mxu0 %v2516
    %v2773 = vpop.f32.mrb[0].mxu0
    %v2774 = vadd.f32 0.0, %v2773
    %v2775 = vpop.f32.mrb[0].mxu0
    %2776 = vdwg.mxu0
    %2778 = vrot.lane.b32.xlu0 %v2706, 32
    %v2779 = vpop.permute.xlu0 %2778
    %v2780 = vsel %vm228, %v2779, 0
    %2782 = vmatprep.subr.mxu0 0.0
    %2783 = vmatpush1.msra.mxu0 %v428
    %2784 = vmatprep.subr.mxu0 0.0
    %2785 = vmatpush1.msra.mxu0 %v429
    %2786 = vmatprep.subr.mxu0 0.0
    %2787 = vmatpush1.msra.mxu0 %v430
    %2788 = vmatprep.subr.mxu0 0.0
    %2789 = vmatpush1.msra.mxu0 %v431
    %2790 = vmatprep.subr.mxu0 0.0
    %2791 = vmatpush1.msra.mxu0 0.0
    %2792 = vmatprep.subr.mxu0 0.0
    %2793 = vmatpush1.msra.mxu0 0.0
    %2794 = vmatprep.subr.mxu0 0.0
    %2795 = vmatpush1.msra.mxu0 0.0
    %2796 = vmatprep.subr.mxu0 0.0
    %2797 = vmatpush1.msra.mxu0 0.0
    %2798 = vmatprep.subr.mxu0 0.0
    %2799 = vmatpush1.msra.mxu0 0.0
    %2800 = vmatprep.subr.mxu0 0.0
    %2801 = vmatpush1.msra.mxu0 0.0
    %2802 = vmatprep.subr.mxu0 0.0
    %2803 = vmatpush1.msra.mxu0 0.0
    %2804 = vmatprep.subr.mxu0 0.0
    %2805 = vmatpush1.msra.mxu0 0.0
    %2806 = vmatprep.subr.mxu0 0.0
    %2807 = vmatpush1.msra.mxu0 0.0
    %2808 = vmatprep.subr.mxu0 0.0
    %2809 = vmatpush1.msra.mxu0 0.0
    %2810 = vmatprep.subr.mxu0 0.0
    %2811 = vmatpush1.msra.mxu0 0.0
    %2812 = vmatprep.subr.mxu0 0.0
    %2813 = vmatpush1.msra.mxu0 0.0
    %2814 = vmatprep.subr.mxu0 0.0
    %2815 = vmatpush1.msra.mxu0 0.0
    %2816 = vmatprep.subr.mxu0 0.0
    %2817 = vmatpush1.msra.mxu0 0.0
    %2818 = vmatprep.subr.mxu0 0.0
    %2819 = vmatpush1.msra.mxu0 0.0
    %2820 = vmatprep.subr.mxu0 0.0
    %2821 = vmatpush1.msra.mxu0 0.0
    %2822 = vmatprep.subr.mxu0 0.0
    %2823 = vmatpush1.msra.mxu0 0.0
    %2824 = vmatprep.subr.mxu0 0.0
    %2825 = vmatpush1.msra.mxu0 0.0
    %2826 = vmatprep.subr.mxu0 0.0
    %2827 = vmatpush1.msra.mxu0 0.0
    %2828 = vmatprep.subr.mxu0 0.0
    %2829 = vmatpush1.msra.mxu0 0.0
    %2830 = vmatprep.subr.mxu0 0.0
    %2831 = vmatpush1.msra.mxu0 0.0
    %2832 = vmatprep.subr.mxu0 0.0
    %2833 = vmatpush1.msra.mxu0 0.0
    %2834 = vmatprep.subr.mxu0 0.0
    %2835 = vmatpush1.msra.mxu0 0.0
    %2836 = vmatprep.subr.mxu0 0.0
    %2837 = vmatpush1.msra.mxu0 0.0
    %2838 = vmatprep.subr.mxu0 0.0
    %2839 = vmatpush1.msra.mxu0 0.0
    %2840 = vmatprep.subr.mxu0 0.0
    %2841 = vmatpush1.msra.mxu0 0.0
    %2842 = vmatprep.subr.mxu0 0.0
    %2843 = vmatpush1.msra.mxu0 0.0
    %2844 = vmatprep.subr.mxu0 0.0
    %2845 = vmatpush1.msra.mxu0 0.0
    %2846 = vmatprep.mubr.f32.mxu0 0.0
    %2847 = vmatmul.mubr.f32.gmra.mrb[0].mxu0 %v2780
    %v2848 = vpop.f32.mrb[0].mxu0
    %v2849 = vadd.f32 %v2774, %v2848
    %v2850 = vpop.f32.mrb[0].mxu0
    %2851 = vdwg.mxu0
    %v2852 = vadd.f32 %v2849, %v551
    %v2853 = vxor.u32 %v2852, 2147483648
    %v2854 = vmul.f32 %v2853, 1.442695
    %v2855 = vpow.pop %v2854
    %v2856 = vadd.f32 %v2855, 1.0
    %v2857 = vrcp.pop %v2856
    %v2858 = vmul.f32 1.0, %v2857
    %v2859 = vtanh.pop %v2852
    %v2860 = vmul.f32 %v2858, %v2500
    %2862 = vrot.lane.b32.xlu0 %v2859, 64
    %v2863 = vpop.permute.xlu0 %2862
    %v2865 = vmul.f32 %v2858, %v2863
    %2867 = vrot.lane.b32.xlu0 %v2865, 32
    %v2868 = vpop.permute.xlu0 %2867
    %v2870 = vadd.f32 %v2860, %v2868
    %v2871 = vtanh.pop %v2870
    %2873 = vrot.lane.b32.xlu0 %v2871, 64
    %v2874 = vpop.permute.xlu0 %2873
    %v2876 = vmul.f32 %v2858, %v2874
    %2878 = vset.pattern.permute.xlu0 3
    %2879 = vperm.xlu0 %2878, %v2612
    %v2880 = vpop.permute.xlu0 %2879
    %v2882 = vmul.f32 %v2880, %v1026
    %2884 = vrot.lane.b32.xlu0 %v2876, 32
    %v2885 = vpop.permute.xlu0 %2884
    %v2886 = vsel %vm228, %v2885, 0
    %2888 = vmatprep.subr.mxu0 0.0
    %2889 = vmatpush1.msra.mxu0 %v437
    %2890 = vmatprep.subr.mxu0 0.0
    %2891 = vmatpush1.msra.mxu0 %v438
    %2892 = vmatprep.subr.mxu0 0.0
    %2893 = vmatpush1.msra.mxu0 %v439
    %2894 = vmatprep.subr.mxu0 0.0
    %2895 = vmatpush1.msra.mxu0 %v440
    %2896 = vmatprep.subr.mxu0 0.0
    %2897 = vmatpush1.msra.mxu0 0.0
    %2898 = vmatprep.subr.mxu0 0.0
    %2899 = vmatpush1.msra.mxu0 0.0
    %2900 = vmatprep.subr.mxu0 0.0
    %2901 = vmatpush1.msra.mxu0 0.0
    %2902 = vmatprep.subr.mxu0 0.0
    %2903 = vmatpush1.msra.mxu0 0.0
    %2904 = vmatprep.subr.mxu0 0.0
    %2905 = vmatpush1.msra.mxu0 0.0
    %2906 = vmatprep.subr.mxu0 0.0
    %2907 = vmatpush1.msra.mxu0 0.0
    %2908 = vmatprep.subr.mxu0 0.0
    %2909 = vmatpush1.msra.mxu0 0.0
    %2910 = vmatprep.subr.mxu0 0.0
    %2911 = vmatpush1.msra.mxu0 0.0
    %2912 = vmatprep.subr.mxu0 0.0
    %2913 = vmatpush1.msra.mxu0 0.0
    %2914 = vmatprep.subr.mxu0 0.0
    %2915 = vmatpush1.msra.mxu0 0.0
    %2916 = vmatprep.subr.mxu0 0.0
    %2917 = vmatpush1.msra.mxu0 0.0
    %2918 = vmatprep.subr.mxu0 0.0
    %2919 = vmatpush1.msra.mxu0 0.0
    %2920 = vmatprep.subr.mxu0 0.0
    %2921 = vmatpush1.msra.mxu0 0.0
    %2922 = vmatprep.subr.mxu0 0.0
    %2923 = vmatpush1.msra.mxu0 0.0
    %2924 = vmatprep.subr.mxu0 0.0
    %2925 = vmatpush1.msra.mxu0 0.0
    %2926 = vmatprep.subr.mxu0 0.0
    %2927 = vmatpush1.msra.mxu0 0.0
    %2928 = vmatprep.subr.mxu0 0.0
    %2929 = vmatpush1.msra.mxu0 0.0
    %2930 = vmatprep.subr.mxu0 0.0
    %2931 = vmatpush1.msra.mxu0 0.0
    %2932 = vmatprep.subr.mxu0 0.0
    %2933 = vmatpush1.msra.mxu0 0.0
    %2934 = vmatprep.subr.mxu0 0.0
    %2935 = vmatpush1.msra.mxu0 0.0
    %2936 = vmatprep.subr.mxu0 0.0
    %2937 = vmatpush1.msra.mxu0 0.0
    %2938 = vmatprep.subr.mxu0 0.0
    %2939 = vmatpush1.msra.mxu0 0.0
    %2940 = vmatprep.subr.mxu0 0.0
    %2941 = vmatpush1.msra.mxu0 0.0
    %2942 = vmatprep.subr.mxu0 0.0
    %2943 = vmatpush1.msra.mxu0 0.0
    %2944 = vmatprep.subr.mxu0 0.0
    %2945 = vmatpush1.msra.mxu0 0.0
    %2946 = vmatprep.subr.mxu0 0.0
    %2947 = vmatpush1.msra.mxu0 0.0
    %2948 = vmatprep.subr.mxu0 0.0
    %2949 = vmatpush1.msra.mxu0 0.0
    %2950 = vmatprep.subr.mxu0 0.0
    %2951 = vmatpush1.msra.mxu0 0.0
    %2952 = vmatprep.mubr.f32.mxu0 0.0
    %2953 = vmatmul.mubr.f32.gmra.mrb[0].mxu0 %v2886
    %v2954 = vpop.f32.mrb[0].mxu0
    %v2955 = vadd.f32 %v2882, %v2954
    %v2956 = vpop.f32.mrb[0].mxu0
    %2957 = vdwg.mxu0
    %v2958 = vadd.f32 %v2955, %v650
    %v2959 = vxor.u32 %v2958, 2147483648
    %v2960 = vmul.f32 %v2959, 1.442695
    %v2961 = vpow.pop %v2960
    %v2962 = vadd.f32 %v2961, 1.0
    %v2963 = vrcp.pop %v2962
    %v2964 = vmul.f32 1.0, %v2963
    %v2965 = vtanh.pop %v2958
    %v2966 = vmul.f32 %v2964, %v2606
    %2968 = vrot.lane.b32.xlu0 %v2965, 126
    %v2969 = vpop.permute.xlu0 %2968
    %v2971 = vmul.f32 %v2964, %v2969
    %2973 = vrot.lane.b32.xlu0 %v2971, 1
    %v2974 = vpop.permute.xlu0 %2973
    %v2976 = vadd.f32 %v2966, %v2974
    %v2977 = vtanh.pop %v2976
    %2979 = vrot.lane.b32.xlu0 %v2977, 2
    %v2980 = vpop.permute.xlu0 %2979
    %v2982 = vmul.f32 %v2964, %v2980
    %2983 = vmatprep.subr.mxu0 0.0
    %2984 = vmatpush1.msra.mxu0 %v423
    %2985 = vmatprep.subr.mxu0 0.0
    %2986 = vmatpush1.msra.mxu0 %v424
    %2987 = vmatprep.subr.mxu0 0.0
    %2988 = vmatpush1.msra.mxu0 %v425
    %2989 = vmatprep.subr.mxu0 0.0
    %2990 = vmatpush1.msra.mxu0 %v426
    %2991 = vmatprep.subr.mxu0 0.0
    %2992 = vmatpush1.msra.mxu0 0.0
    %2993 = vmatprep.subr.mxu0 0.0
    %2994 = vmatpush1.msra.mxu0 0.0
    %2995 = vmatprep.subr.mxu0 0.0
    %2996 = vmatpush1.msra.mxu0 0.0
    %2997 = vmatprep.subr.mxu0 0.0
    %2998 = vmatpush1.msra.mxu0 0.0
    %2999 = vmatprep.subr.mxu0 0.0
    %3000 = vmatpush1.msra.mxu0 0.0
    %3001 = vmatprep.subr.mxu0 0.0
    %3002 = vmatpush1.msra.mxu0 0.0
    %3003 = vmatprep.subr.mxu0 0.0
    %3004 = vmatpush1.msra.mxu0 0.0
    %3005 = vmatprep.subr.mxu0 0.0
    %3006 = vmatpush1.msra.mxu0 0.0
    %3007 = vmatprep.subr.mxu0 0.0
    %3008 = vmatpush1.msra.mxu0 0.0
    %3009 = vmatprep.subr.mxu0 0.0
    %3010 = vmatpush1.msra.mxu0 0.0
    %3011 = vmatprep.subr.mxu0 0.0
    %3012 = vmatpush1.msra.mxu0 0.0
    %3013 = vmatprep.subr.mxu0 0.0
    %3014 = vmatpush1.msra.mxu0 0.0
    %3015 = vmatprep.subr.mxu0 0.0
    %3016 = vmatpush1.msra.mxu0 0.0
    %3017 = vmatprep.subr.mxu0 0.0
    %3018 = vmatpush1.msra.mxu0 0.0
    %3019 = vmatprep.subr.mxu0 0.0
    %3020 = vmatpush1.msra.mxu0 0.0
    %3021 = vmatprep.subr.mxu0 0.0
    %3022 = vmatpush1.msra.mxu0 0.0
    %3023 = vmatprep.subr.mxu0 0.0
    %3024 = vmatpush1.msra.mxu0 0.0
    %3025 = vmatprep.subr.mxu0 0.0
    %3026 = vmatpush1.msra.mxu0 0.0
    %3027 = vmatprep.subr.mxu0 0.0
    %3028 = vmatpush1.msra.mxu0 0.0
    %3029 = vmatprep.subr.mxu0 0.0
    %3030 = vmatpush1.msra.mxu0 0.0
    %3031 = vmatprep.subr.mxu0 0.0
    %3032 = vmatpush1.msra.mxu0 0.0
    %3033 = vmatprep.subr.mxu0 0.0
    %3034 = vmatpush1.msra.mxu0 0.0
    %3035 = vmatprep.subr.mxu0 0.0
    %3036 = vmatpush1.msra.mxu0 0.0
    %3037 = vmatprep.subr.mxu0 0.0
    %3038 = vmatpush1.msra.mxu0 0.0
    %3039 = vmatprep.subr.mxu0 0.0
    %3040 = vmatpush1.msra.mxu0 0.0
    %3041 = vmatprep.subr.mxu0 0.0
    %3042 = vmatpush1.msra.mxu0 0.0
    %3043 = vmatprep.subr.mxu0 0.0
    %3044 = vmatpush1.msra.mxu0 0.0
    %3045 = vmatprep.subr.mxu0 0.0
    %3046 = vmatpush1.msra.mxu0 0.0
    %3047 = vmatprep.mubr.f32.mxu0 0.0
    %3048 = vmatmul.mubr.f32.gmra.mrb[0].mxu0 %v2780
    %v3049 = vpop.f32.mrb[0].mxu0
    %v3050 = vadd.f32 %v447, %v3049
    %v3051 = vpop.f32.mrb[0].mxu0
    %3052 = vdwg.mxu0
    %v3053 = vxor.u32 %v3050, 2147483648
    %v3054 = vmul.f32 %v3053, 1.442695
    %v3055 = vpow.pop %v3054
    %v3056 = vadd.f32 %v3055, 1.0
    %v3057 = vrcp.pop %v3056
    %v3058 = vmul.f32 1.0, %v3057
    %v3059 = vtanh.pop %v3050
    %v3060 = vmul.f32 %v3058, %v2700
    %3062 = vrot.lane.b32.xlu0 %v3059, 64
    %v3063 = vpop.permute.xlu0 %3062
    %v3065 = vmul.f32 %v3058, %v3063
    %3067 = vrot.lane.b32.xlu0 %v3065, 32
    %v3068 = vpop.permute.xlu0 %3067
    %v3070 = vadd.f32 %v3060, %v3068
    %v3071 = vtanh.pop %v3070
    %3073 = vrot.lane.b32.xlu0 %v3071, 64
    %v3074 = vpop.permute.xlu0 %3073
    %v3076 = vmul.f32 %v3058, %v3074
    %3077 = vmatprep.subr.mxu0 0.0
    %3078 = vmatpush1.msra.mxu0 %v432
    %3079 = vmatprep.subr.mxu0 0.0
    %3080 = vmatpush1.msra.mxu0 %v433
    %3081 = vmatprep.subr.mxu0 0.0
    %3082 = vmatpush1.msra.mxu0 %v434
    %3083 = vmatprep.subr.mxu0 0.0
    %3084 = vmatpush1.msra.mxu0 %v435
    %3085 = vmatprep.subr.mxu0 0.0
    %3086 = vmatpush1.msra.mxu0 0.0
    %3087 = vmatprep.subr.mxu0 0.0
    %3088 = vmatpush1.msra.mxu0 0.0
    %3089 = vmatprep.subr.mxu0 0.0
    %3090 = vmatpush1.msra.mxu0 0.0
    %3091 = vmatprep.subr.mxu0 0.0
    %3092 = vmatpush1.msra.mxu0 0.0
    %3093 = vmatprep.subr.mxu0 0.0
    %3094 = vmatpush1.msra.mxu0 0.0
    %3095 = vmatprep.subr.mxu0 0.0
    %3096 = vmatpush1.msra.mxu0 0.0
    %3097 = vmatprep.subr.mxu0 0.0
    %3098 = vmatpush1.msra.mxu0 0.0
    %3099 = vmatprep.subr.mxu0 0.0
    %3100 = vmatpush1.msra.mxu0 0.0
    %3101 = vmatprep.subr.mxu0 0.0
    %3102 = vmatpush1.msra.mxu0 0.0
    %3103 = vmatprep.subr.mxu0 0.0
    %3104 = vmatpush1.msra.mxu0 0.0
    %3105 = vmatprep.subr.mxu0 0.0
    %3106 = vmatpush1.msra.mxu0 0.0
    %3107 = vmatprep.subr.mxu0 0.0
    %3108 = vmatpush1.msra.mxu0 0.0
    %3109 = vmatprep.subr.mxu0 0.0
    %3110 = vmatpush1.msra.mxu0 0.0
    %3111 = vmatprep.subr.mxu0 0.0
    %3112 = vmatpush1.msra.mxu0 0.0
    %3113 = vmatprep.subr.mxu0 0.0
    %3114 = vmatpush1.msra.mxu0 0.0
    %3115 = vmatprep.subr.mxu0 0.0
    %3116 = vmatpush1.msra.mxu0 0.0
    %3117 = vmatprep.subr.mxu0 0.0
    %3118 = vmatpush1.msra.mxu0 0.0
    %3119 = vmatprep.subr.mxu0 0.0
    %3120 = vmatpush1.msra.mxu0 0.0
    %3121 = vmatprep.subr.mxu0 0.0
    %3122 = vmatpush1.msra.mxu0 0.0
    %3123 = vmatprep.subr.mxu0 0.0
    %3124 = vmatpush1.msra.mxu0 0.0
    %3125 = vmatprep.subr.mxu0 0.0
    %3126 = vmatpush1.msra.mxu0 0.0
    %3127 = vmatprep.subr.mxu0 0.0
    %3128 = vmatpush1.msra.mxu0 0.0
    %3129 = vmatprep.subr.mxu0 0.0
    %3130 = vmatpush1.msra.mxu0 0.0
    %3131 = vmatprep.subr.mxu0 0.0
    %3132 = vmatpush1.msra.mxu0 0.0
    %3133 = vmatprep.subr.mxu0 0.0
    %3134 = vmatpush1.msra.mxu0 0.0
    %3135 = vmatprep.subr.mxu0 0.0
    %3136 = vmatpush1.msra.mxu0 0.0
    %3137 = vmatprep.subr.mxu0 0.0
    %3138 = vmatpush1.msra.mxu0 0.0
    %3139 = vmatprep.subr.mxu0 0.0
    %3140 = vmatpush1.msra.mxu0 0.0
    %3141 = vmatprep.mubr.f32.mxu0 0.0
    %3142 = vmatmul.mubr.f32.gmra.mrb[0].mxu0 %v2886
    %v3143 = vpop.f32.mrb[0].mxu0
    %v3144 = vadd.f32 0.0, %v3143
    %v3145 = vpop.f32.mrb[0].mxu0
    %3146 = vdwg.mxu0
    %3148 = vrot.lane.b32.xlu0 %v3076, 32
    %v3149 = vpop.permute.xlu0 %3148
    %v3150 = vsel %vm228, %v3149, 0
    %3152 = vmatprep.subr.mxu0 0.0
    %3153 = vmatpush1.msra.mxu0 %v428
    %3154 = vmatprep.subr.mxu0 0.0
    %3155 = vmatpush1.msra.mxu0 %v429
    %3156 = vmatprep.subr.mxu0 0.0
    %3157 = vmatpush1.msra.mxu0 %v430
    %3158 = vmatprep.subr.mxu0 0.0
    %3159 = vmatpush1.msra.mxu0 %v431
    %3160 = vmatprep.subr.mxu0 0.0
    %3161 = vmatpush1.msra.mxu0 0.0
    %3162 = vmatprep.subr.mxu0 0.0
    %3163 = vmatpush1.msra.mxu0 0.0
    %3164 = vmatprep.subr.mxu0 0.0
    %3165 = vmatpush1.msra.mxu0 0.0
    %3166 = vmatprep.subr.mxu0 0.0
    %3167 = vmatpush1.msra.mxu0 0.0
    %3168 = vmatprep.subr.mxu0 0.0
    %3169 = vmatpush1.msra.mxu0 0.0
    %3170 = vmatprep.subr.mxu0 0.0
    %3171 = vmatpush1.msra.mxu0 0.0
    %3172 = vmatprep.subr.mxu0 0.0
    %3173 = vmatpush1.msra.mxu0 0.0
    %3174 = vmatprep.subr.mxu0 0.0
    %3175 = vmatpush1.msra.mxu0 0.0
    %3176 = vmatprep.subr.mxu0 0.0
    %3177 = vmatpush1.msra.mxu0 0.0
    %3178 = vmatprep.subr.mxu0 0.0
    %3179 = vmatpush1.msra.mxu0 0.0
    %3180 = vmatprep.subr.mxu0 0.0
    %3181 = vmatpush1.msra.mxu0 0.0
    %3182 = vmatprep.subr.mxu0 0.0
    %3183 = vmatpush1.msra.mxu0 0.0
    %3184 = vmatprep.subr.mxu0 0.0
    %3185 = vmatpush1.msra.mxu0 0.0
    %3186 = vmatprep.subr.mxu0 0.0
    %3187 = vmatpush1.msra.mxu0 0.0
    %3188 = vmatprep.subr.mxu0 0.0
    %3189 = vmatpush1.msra.mxu0 0.0
    %3190 = vmatprep.subr.mxu0 0.0
    %3191 = vmatpush1.msra.mxu0 0.0
    %3192 = vmatprep.subr.mxu0 0.0
    %3193 = vmatpush1.msra.mxu0 0.0
    %3194 = vmatprep.subr.mxu0 0.0
    %3195 = vmatpush1.msra.mxu0 0.0
    %3196 = vmatprep.subr.mxu0 0.0
    %3197 = vmatpush1.msra.mxu0 0.0
    %3198 = vmatprep.subr.mxu0 0.0
    %3199 = vmatpush1.msra.mxu0 0.0
    %3200 = vmatprep.subr.mxu0 0.0
    %3201 = vmatpush1.msra.mxu0 0.0
    %3202 = vmatprep.subr.mxu0 0.0
    %3203 = vmatpush1.msra.mxu0 0.0
    %3204 = vmatprep.subr.mxu0 0.0
    %3205 = vmatpush1.msra.mxu0 0.0
    %3206 = vmatprep.subr.mxu0 0.0
    %3207 = vmatpush1.msra.mxu0 0.0
    %3208 = vmatprep.subr.mxu0 0.0
    %3209 = vmatpush1.msra.mxu0 0.0
    %3210 = vmatprep.subr.mxu0 0.0
    %3211 = vmatpush1.msra.mxu0 0.0
    %3212 = vmatprep.subr.mxu0 0.0
    %3213 = vmatpush1.msra.mxu0 0.0
    %3214 = vmatprep.subr.mxu0 0.0
    %3215 = vmatpush1.msra.mxu0 0.0
    %3216 = vmatprep.mubr.f32.mxu0 0.0
    %3217 = vmatmul.mubr.f32.gmra.mrb[0].mxu0 %v3150
    %v3218 = vpop.f32.mrb[0].mxu0
    %v3219 = vadd.f32 %v3144, %v3218
    %v3220 = vpop.f32.mrb[0].mxu0
    %3221 = vdwg.mxu0
    %v3222 = vadd.f32 %v3219, %v551
    %v3223 = vxor.u32 %v3222, 2147483648
    %v3224 = vmul.f32 %v3223, 1.442695
    %v3225 = vpow.pop %v3224
    %v3226 = vadd.f32 %v3225, 1.0
    %v3227 = vrcp.pop %v3226
    %v3228 = vmul.f32 1.0, %v3227
    %v3229 = vtanh.pop %v3222
    %v3230 = vmul.f32 %v3228, %v2870
    %3232 = vrot.lane.b32.xlu0 %v3229, 64
    %v3233 = vpop.permute.xlu0 %3232
    %v3235 = vmul.f32 %v3228, %v3233
    %3237 = vrot.lane.b32.xlu0 %v3235, 32
    %v3238 = vpop.permute.xlu0 %3237
    %v3240 = vadd.f32 %v3230, %v3238
    %v3241 = vtanh.pop %v3240
    %3243 = vrot.lane.b32.xlu0 %v3241, 64
    %v3244 = vpop.permute.xlu0 %3243
    %v3246 = vmul.f32 %v3228, %v3244
    %3248 = vset.pattern.permute.xlu0 3
    %3249 = vperm.xlu0 %3248, %v2982
    %v3250 = vpop.permute.xlu0 %3249
    %v3252 = vmul.f32 %v3250, %v1026
    %3254 = vrot.lane.b32.xlu0 %v3246, 32
    %v3255 = vpop.permute.xlu0 %3254
    %v3256 = vsel %vm228, %v3255, 0
    %3258 = vmatprep.subr.mxu0 0.0
    %3259 = vmatpush1.msra.mxu0 %v437
    %3260 = vmatprep.subr.mxu0 0.0
    %3261 = vmatpush1.msra.mxu0 %v438
    %3262 = vmatprep.subr.mxu0 0.0
    %3263 = vmatpush1.msra.mxu0 %v439
    %3264 = vmatprep.subr.mxu0 0.0
    %3265 = vmatpush1.msra.mxu0 %v440
    %3266 = vmatprep.subr.mxu0 0.0
    %3267 = vmatpush1.msra.mxu0 0.0
    %3268 = vmatprep.subr.mxu0 0.0
    %3269 = vmatpush1.msra.mxu0 0.0
    %3270 = vmatprep.subr.mxu0 0.0
    %3271 = vmatpush1.msra.mxu0 0.0
    %3272 = vmatprep.subr.mxu0 0.0
    %3273 = vmatpush1.msra.mxu0 0.0
    %3274 = vmatprep.subr.mxu0 0.0
    %3275 = vmatpush1.msra.mxu0 0.0
    %3276 = vmatprep.subr.mxu0 0.0
    %3277 = vmatpush1.msra.mxu0 0.0
    %3278 = vmatprep.subr.mxu0 0.0
    %3279 = vmatpush1.msra.mxu0 0.0
    %3280 = vmatprep.subr.mxu0 0.0
    %3281 = vmatpush1.msra.mxu0 0.0
    %3282 = vmatprep.subr.mxu0 0.0
    %3283 = vmatpush1.msra.mxu0 0.0
    %3284 = vmatprep.subr.mxu0 0.0
    %3285 = vmatpush1.msra.mxu0 0.0
    %3286 = vmatprep.subr.mxu0 0.0
    %3287 = vmatpush1.msra.mxu0 0.0
    %3288 = vmatprep.subr.mxu0 0.0
    %3289 = vmatpush1.msra.mxu0 0.0
    %3290 = vmatprep.subr.mxu0 0.0
    %3291 = vmatpush1.msra.mxu0 0.0
    %3292 = vmatprep.subr.mxu0 0.0
    %3293 = vmatpush1.msra.mxu0 0.0
    %3294 = vmatprep.subr.mxu0 0.0
    %3295 = vmatpush1.msra.mxu0 0.0
    %3296 = vmatprep.subr.mxu0 0.0
    %3297 = vmatpush1.msra.mxu0 0.0
    %3298 = vmatprep.subr.mxu0 0.0
    %3299 = vmatpush1.msra.mxu0 0.0
    %3300 = vmatprep.subr.mxu0 0.0
    %3301 = vmatpush1.msra.mxu0 0.0
    %3302 = vmatprep.subr.mxu0 0.0
    %3303 = vmatpush1.msra.mxu0 0.0
    %3304 = vmatprep.subr.mxu0 0.0
    %3305 = vmatpush1.msra.mxu0 0.0
    %3306 = vmatprep.subr.mxu0 0.0
    %3307 = vmatpush1.msra.mxu0 0.0
    %3308 = vmatprep.subr.mxu0 0.0
    %3309 = vmatpush1.msra.mxu0 0.0
    %3310 = vmatprep.subr.mxu0 0.0
    %3311 = vmatpush1.msra.mxu0 0.0
    %3312 = vmatprep.subr.mxu0 0.0
    %3313 = vmatpush1.msra.mxu0 0.0
    %3314 = vmatprep.subr.mxu0 0.0
    %3315 = vmatpush1.msra.mxu0 0.0
    %3316 = vmatprep.subr.mxu0 0.0
    %3317 = vmatpush1.msra.mxu0 0.0
    %3318 = vmatprep.subr.mxu0 0.0
    %3319 = vmatpush1.msra.mxu0 0.0
    %3320 = vmatprep.subr.mxu0 0.0
    %3321 = vmatpush1.msra.mxu0 0.0
    %3322 = vmatprep.mubr.f32.mxu0 0.0
    %3323 = vmatmul.mubr.f32.gmra.mrb[0].mxu0 %v3256
    %v3324 = vpop.f32.mrb[0].mxu0
    %v3325 = vadd.f32 %v3252, %v3324
    %v3326 = vpop.f32.mrb[0].mxu0
    %3327 = vdwg.mxu0
    %v3328 = vadd.f32 %v3325, %v650
    %v3329 = vxor.u32 %v3328, 2147483648
    %v3330 = vmul.f32 %v3329, 1.442695
    %v3331 = vpow.pop %v3330
    %v3332 = vadd.f32 %v3331, 1.0
    %v3333 = vrcp.pop %v3332
    %v3334 = vmul.f32 1.0, %v3333
    %v3335 = vtanh.pop %v3328
    %v3336 = vmul.f32 %v3334, %v2976
    %3338 = vrot.lane.b32.xlu0 %v3335, 126
    %v3339 = vpop.permute.xlu0 %3338
    %v3341 = vmul.f32 %v3334, %v3339
    %3343 = vrot.lane.b32.xlu0 %v3341, 1
    %v3344 = vpop.permute.xlu0 %3343
    %v3346 = vadd.f32 %v3336, %v3344
    %v3347 = vtanh.pop %v3346
    %3349 = vrot.lane.b32.xlu0 %v3347, 2
    %v3350 = vpop.permute.xlu0 %3349
    %v3352 = vmul.f32 %v3334, %v3350
    %3353 = vrot.lane.b32.xlu0 %v744, 125
    %v3354 = vpop.permute.xlu0 %3353
    %3356 = vrot.lane.b32.xlu0 %v1132, 126
    %v3357 = vpop.permute.xlu0 %3356
    %3359 = vrot.lane.b32.xlu0 %v1502, 127
    %v3360 = vpop.permute.xlu0 %3359
    %3362 = vrot.lane.b32.xlu0 %v2242, 1
    %v3363 = vpop.permute.xlu0 %3362
    %3365 = vrot.lane.b32.xlu0 %v2612, 2
    %v3366 = vpop.permute.xlu0 %3365
    %3368 = vrot.lane.b32.xlu0 %v2982, 3
    %v3369 = vpop.permute.xlu0 %3368
    %3372 = vrot.lane.b32.xlu0 %v3352, 4
    %v3373 = vpop.permute.xlu0 %3372
    %vm3375 = vcmask 7168
    %v3376 = vsel %vm3375, %v3354, %v3357
    %vm3377 = vcmask 15360
    %v3378 = vsel %vm3377, %v3376, %v3360
    %vm3379 = vcmask 23552
    %v3380 = vsel %vm3379, %v3378, %v1872
    %v3381 = vsel %vm452, %v3380, %v3363
    %vm3382 = vcmask 39936
    %v3383 = vsel %vm3382, %v3381, %v3366
    %vm3384 = vcmask 48128
    %v3385 = vsel %vm3384, %v3383, %v3369
    %vm3386 = vcmask 56320
    %v3387 = vsel %vm3386, %v3385, %v3373
    %vm3388 = vcmask 58368
    %3389 = vst.msk [vmem:[#allocation13] sm:$0x3] %vm3388, %v3387
    // Predicated region
    $region94: #{tpu_custom_call.1} parent=1 // pred_check
      _
    $region95: #{tpu_custom_call.1} parent=1 // pred_check_branch
      %3391 = sbr.rel (0) target = $region97
    $region96: #{tpu_custom_call.1} parent=1 // pred_region
      %s3393 = ssub.s32 32, 32
      %3394 = vsyncadd [#allocation4], %s3393
      %s3396 = sshll.u32 [#allocation13], 4
      %s3397 = int_to_ptr.vmem [resolvable:$true] %s3396
      %3399 = dma.vmem_to_hbm [thread:$0]  %s3397, 32, %s17, [#allocation4]
    $region97: #{tpu_custom_call.1} parent=1 // pred_fallthru
      _
    // Predicated region
    $region98: #{tpu_custom_call.1} parent=1 // pred_check
      _
    $region99: #{tpu_custom_call.1} parent=1 // pred_check_branch
      %3401 = sbr.rel (0) target = $region101
    $region100: #{tpu_custom_call.1} parent=1 // pred_region
      %s3403 = ssub.s32 16, 16
      %3404 = vsyncadd [#allocation15], %s3403
      %s3406 = sshll.u32 [#allocation14], 4
      %s3407 = int_to_ptr.vmem [resolvable:$true] %s3406
      %3409 = dma.vmem_to_hbm [thread:$0]  %s3407, 16, %s18, [#allocation15]
    $region101: #{tpu_custom_call.1} parent=1 // pred_fallthru
      _
    // Predicated region
    $region102: #{tpu_custom_call.1} parent=1 // pred_check
      _
    $region103: #{tpu_custom_call.1} parent=1 // pred_check_branch
      %3411 = sbr.rel (0) target = $region105
    $region104: #{tpu_custom_call.1} parent=1 // pred_region
      %3412 = dma.done [#allocation4], 32
    $region105: #{tpu_custom_call.1} parent=1 // pred_fallthru
      _
    // Predicated region
    $region106: #{tpu_custom_call.1} parent=1 // pred_check
      _
    $region107: #{tpu_custom_call.1} parent=1 // pred_check_branch
      %3414 = sbr.rel (0) target = $region109
    $region108: #{tpu_custom_call.1} parent=1 // pred_region
      %3415 = dma.done [#allocation15], 16
    $region109: #{tpu_custom_call.1} parent=1 // pred_fallthru
      _
    %3416 = vsyncpa [#allocation3], 1
    %3417 = vsyncpa [#allocation6], 1
    %3418 = vsyncpa [#allocation9], 1
    %3419 = vsyncpa [#allocation12], 1
    %3420 = vsyncpa [#allocation4], 1
    %3421 = vsyncpa [#allocation15], 1

</llo_original>
